<compile_context>
chip_gen: v7x
topology: tpu7x:2x2x1
jax: 0.10.0
libtpu: 0.0.40
codegen_flags: <defaults>
</compile_context>

<pallas_src>
import functools

import jax
import jax.numpy as jnp
from jax import lax
from jax.experimental import pallas as pl
from jax.experimental.pallas import tpu as pltpu

EPS = 1e-5     # torch.nn.GroupNorm default eps
SLOPE = 0.2    # LeakyReLU negative slope


def _lrelu(a):
    return jnp.where(a > 0, a, SLOPE * a)


def _accumulate_stats(sum_ref, sq_ref, values, t):
    """Accumulate per-channel sum / sum-of-squares (f32) into (1,1,1,C) output
    blocks that stay resident across the row-tile ('arbitrary') grid axis."""
    C = values.shape[-1]
    v2 = values.reshape(-1, C)
    vs = jnp.sum(v2, axis=0).reshape(sum_ref.shape)
    vq = jnp.sum(v2 * v2, axis=0).reshape(sq_ref.shape)

    @pl.when(t == 0)
    def _():
        sum_ref[...] = vs
        sq_ref[...] = vq

    @pl.when(t != 0)
    def _():
        sum_ref[...] = sum_ref[...] + vs
        sq_ref[...] = sq_ref[...] + vq


# --------------------------------------------------------------------------- #
# Stage A: single f32 read of x -> bf16 copy of x + 1x1 expand -> GN1 stats.
# The expanded activation is cheap to recompute, so it is never written to HBM.
# --------------------------------------------------------------------------- #
def _expand_stats_kernel(x_ref, w1_ref, xbf_ref, s1_ref, q1_ref):
    t = pl.program_id(2)
    _, TH, W, Cin = x_ref.shape
    xb = x_ref[0].astype(jnp.bfloat16)
    xbf_ref[0] = xb                                          # fused f32->bf16 copy
    a = jnp.dot(xb.reshape(TH * W, Cin), w1_ref[...],
                preferred_element_type=jnp.float32)          # (TH*W, Cb) f32
    _accumulate_stats(s1_ref, q1_ref, a, t)


# --------------------------------------------------------------------------- #
# Stage B: recompute expand (row halo), folded GN1 + LReLU straight into the pad
# scratch, column reflection, 3x3 depthwise conv (bias fused) -> bf16 act + GN2.
# --------------------------------------------------------------------------- #
def _depthwise_kernel(x_top_ref, x_ctr_ref, x_bot_ref, w1_ref, sc1_ref, sh1_ref,
                      wd_ref, bd_ref, b_out_ref, s2_ref, q2_ref, pad_ref,
                      *, dw_dtype):
    t = pl.program_id(2)
    _, TH, W, Cin = x_ctr_ref.shape
    Cb = w1_ref.shape[1]

    scale1 = sc1_ref[0]                                      # (1, Cb) f32
    shift1 = sh1_ref[0]

    def expand(x2d):                                         # (M,Cin) bf16 -> (M,Cb)
        a = jnp.dot(x2d, w1_ref[...], preferred_element_type=jnp.float32)
        return _lrelu(a * scale1 + shift1).astype(dw_dtype)

    # Fill the (TH+2, W+2, Cb) pad scratch with three slice stores (center tile
    # + two 1-row halos); no concatenate / no separate `rows` temporary.
    pad_ref[1:TH + 1, 1:W + 1, :] = expand(
        x_ctr_ref[0].reshape(TH * W, Cin)).reshape(TH, W, Cb)
    pad_ref[0:1, 1:W + 1, :] = expand(
        x_top_ref[0].reshape(W, Cin)).reshape(1, W, Cb)
    pad_ref[TH + 1:TH + 2, 1:W + 1, :] = expand(
        x_bot_ref[0].reshape(W, Cin)).reshape(1, W, Cb)
    # Column reflection taken from the scratch itself (pad col0 <- g col1, ...).
    pad_ref[:, 0:1, :] = pad_ref[:, 2:3, :]
    pad_ref[:, W + 1:W + 2, :] = pad_ref[:, W - 1:W, :]

    # 3x3 depthwise conv: 9 hoisted per-channel taps, bias fused into tap (0,0).
    # Multiply-accumulate in dw_dtype (bf16 on v6e/v7x, f32 on v5e).
    wd = wd_ref[...].astype(dw_dtype)                        # (3, 3, Cb)
    bias = bd_ref[...].reshape(1, 1, Cb).astype(dw_dtype)
    acc = pad_ref[0:TH, 0:W, :] * wd[0:1, 0:1, :] + bias
    for dh in range(3):
        for dww in range(3):
            if dh == 0 and dww == 0:
                continue
            acc = acc + pad_ref[dh:dh + TH, dww:dww + W, :] * wd[dh:dh + 1, dww:dww + 1, :]

    acc_bf = acc.astype(jnp.bfloat16)
    b_out_ref[0] = acc_bf
    # GN2 stats from the *stored* bf16 values so the next stage's folded
    # normalization is self-consistent with what it reads back.
    _accumulate_stats(s2_ref, q2_ref, acc_bf.astype(jnp.float32), t)


# --------------------------------------------------------------------------- #
# Stage C: folded GN2 + LReLU + 1x1 project (bf16 MXU) -> bf16 act + GN3 stats.
# --------------------------------------------------------------------------- #
def _project_kernel(b_ref, sc2_ref, sh2_ref, w2_ref, c_out_ref, s3_ref, q3_ref):
    t = pl.program_id(2)
    _, TH, W, Cb = b_ref.shape
    Cout = w2_ref.shape[1]
    h = _lrelu(b_ref[0].reshape(TH * W, Cb).astype(jnp.float32)
               * sc2_ref[0] + sh2_ref[0])
    c = jnp.dot(h.astype(jnp.bfloat16), w2_ref[...],
                preferred_element_type=jnp.float32)          # (TH*W, Cout)
    c_bf = c.astype(jnp.bfloat16)
    c_out_ref[0] = c_bf.reshape(TH, W, Cout)
    _accumulate_stats(s3_ref, q3_ref, c_bf.astype(jnp.float32), t)


# --------------------------------------------------------------------------- #
# Stage D: folded GN3 (+ residual add from the bf16 x copy when Cin == Cout).
# --------------------------------------------------------------------------- #
def _finalize_kernel(*refs, use_res):
    if use_res:
        c_ref, sc3_ref, sh3_ref, x_ref, o_ref = refs
    else:
        c_ref, sc3_ref, sh3_ref, o_ref = refs
        x_ref = None
    _, TH, W, Cout = c_ref.shape
    y = c_ref[0].reshape(TH * W, Cout).astype(jnp.float32) * sc3_ref[0] + sh3_ref[0]
    if use_res:
        y = y + x_ref[0].reshape(TH * W, Cout).astype(jnp.float32)
    o_ref[0] = y.reshape(TH, W, Cout).astype(o_ref.dtype)


# --------------------------------------------------------------------------- #
# Wrapper-side GroupNorm fold (tiny XLA op between stages: hoists the cross-lane
# reduce / rsqrt / broadcasts out of every grid step).
# --------------------------------------------------------------------------- #
def _gn_scale_shift(ssum, ssq, gamma, beta, count):
    # ssum/ssq: (S, B, 1, C) per-split per-channel partial sums.
    # One-pass variance (E[x^2]-mean^2) in f32; torch GN is effectively two-pass,
    # difference is within tolerance at these scales (documented limitation).
    s = jnp.sum(ssum, axis=(0, 3))                    # (B, 1)
    q = jnp.sum(ssq, axis=(0, 3))
    mean = s / count
    var = jnp.maximum(q / count - mean * mean, 0.0)   # biased variance (torch GN)
    rstd = lax.rsqrt(var + EPS)
    scale = gamma.reshape(1, 1, -1) * rstd[:, :, None]        # (B, 1, C)
    shift = beta.reshape(1, 1, -1) - mean[:, :, None] * scale  # (B, 1, C)
    return scale, shift


def _device_kind():
    try:
        return jax.devices()[0].device_kind.lower()
    except Exception:
        return ""


def _vmem_capacity_bytes(kind):
    try:
        cap = int(getattr(pltpu.get_tpu_info(), "vmem_capacity_bytes", 0))
        if cap > 0:
            return cap
    except Exception:
        pass
    return (64 if "v7" in kind else 128) * 1024 * 1024


# --------------------------------------------------------------------------- #
# NHWC entry point (channels on the lane axis, no wrapper transposes).
# --------------------------------------------------------------------------- #
@functools.partial(jax.jit, static_argnames=("row_tile", "stats_splits",
                                             "depthwise_dtype", "out_dtype"))
def inverted_res_block_nhwc(x, params, *, row_tile=None, stats_splits=None,
                            depthwise_dtype=None, out_dtype=None):
    """InvertedResBlock forward. x: (B, H, W, Cin). Returns (B, H, W, Cout)."""
    (w1, g1, b1, wd, bd, g2, b2, w2, g3, b3) = params
    B, H, W, Cin = x.shape
    Cb = w1.shape[1]
    Cout = w2.shape[1]
    use_res = (Cin == Cout)
    out_dtype = x.dtype if out_dtype is None else out_dtype
    if H < 2 or W < 2:
        raise ValueError("reflection padding requires H >= 2 and W >= 2")
    # TODO(synk): pad W to a multiple of 8 (keeping the true-W reflection inside
    # the padded buffer) so (rows, W, C) <-> (rows*W, C) reshapes stay tile-aligned
    # for arbitrary widths.

    kind = _device_kind()

    # bf16 depthwise MAC on chips with a bf16 VPU (v6e/v7x); f32 on v5e/unknown
    # (no bf16 VALU there -> converts would add ops instead of removing them).
    if depthwise_dtype is None:
        depthwise_dtype = jnp.bfloat16 if ("v6" in kind or "v7" in kind) else jnp.float32
    dwb = jnp.dtype(depthwise_dtype).itemsize

    # Per-generation VMEM sizing: scoped limit ~= 75% of physical, and a tighter
    # working-set budget used to derive the per-stage row tiles.
    cap = _vmem_capacity_bytes(kind)
    vmem_limit = min(int(cap * 0.75), 100 * 1024 * 1024)
    budget = int(vmem_limit * 0.80)

    # Core-split of the stats passes: on v7x (2 TensorCores) with batch 1, add a
    # leading 'parallel' axis over row-range halves so both cores do work.
    if stats_splits is None:
        stats_splits = 2 if ("v7" in kind and B == 1) else 1
    S = max(1, int(stats_splits))
    if S > 1 and not any(H % th == 0 and (H // th) % S == 0 for th in range(1, H + 1)):
        S = 1

    # --- per-stage VMEM byte models (per grid step, double-buffered I/O) ------
    def bytes_a(th):
        io = 2 * th * W * Cin * 4 + 2 * th * W * Cin * 2          # f32 in, bf16 out
        tmp = th * W * (Cin * 2 + Cb * 4)                          # bf16 cast + f32 matmul
        wts = 2 * Cin * Cb * 2 + 8 * Cb * 4
        return io + tmp + wts

    def bytes_b(th):
        xin = 2 * (th + 2) * W * Cin * 2                           # bf16 ctr + halos
        out = 2 * th * W * Cb * 2                                  # bf16 activation
        pad = (th + 2) * (W + 2) * Cb * dwb                        # pad scratch
        tmp = (th + 2) * W * Cb * (4 + dwb) + th * W * Cb * (dwb + 2 + 4)
        wts = 2 * (Cin * Cb * 2 + 9 * Cb * 4 + 8 * Cb * 4)
        return xin + out + pad + tmp + wts

    def bytes_c(th):
        io = 2 * th * W * Cb * 2 + 2 * th * W * Cout * 2
        tmp = th * W * (Cb * 4 + Cb * 2 + Cout * 4 + Cout * 2)
        wts = 2 * Cb * Cout * 2 + 8 * (Cb + Cout) * 4
        return io + tmp + wts

    def bytes_d(th):
        io = 2 * th * W * Cout * 2 + 2 * th * W * Cout * jnp.dtype(out_dtype).itemsize
        if use_res:
            io += 2 * th * W * Cin * 2
        return io + th * W * Cout * 4

    def pick_th(bytes_fn, splits):
        cands = [th for th in range(1, H + 1)
                 if H % th == 0 and (H // th) % splits == 0]
        if row_tile is not None:
            capped = [th for th in cands if th <= int(row_tile)]
            cands = capped if capped else cands[:1]
        fits = [th for th in cands if bytes_fn(th) <= budget]
        # TODO(synk): when H has no convenient divisor, pad/mask the last row
        # tile (pl.cdiv grid) instead of falling back to a tiny divisor.
        return max(fits) if fits else min(cands)

    th_a = pick_th(bytes_a, S)
    th_b = pick_th(bytes_b, S)
    th_c = pick_th(bytes_c, S)
    th_d = pick_th(bytes_d, 1)
    tpa = (H // th_a) // S
    tpb = (H // th_b) // S
    tpc = (H // th_c) // S
    n_tiles_b = H // th_b

    # Pre-cast matmul weights once: bf16 MXU operands, f32 accumulation.
    w1_bf = w1.astype(jnp.bfloat16)
    w2_bf = w2.astype(jnp.bfloat16)

    # --- BlockSpec helpers ----------------------------------------------------
    def row_spec(th, ch, tper):
        def m(s, b, t):
            return (b, s * tper + t, 0, 0)
        return pl.BlockSpec((1, th, W, ch), m)

    def halo_top_map(s, b, t):
        at = s * tpb + t
        return (b, jnp.where(at == 0, 1, at * th_b - 1), 0, 0)

    def halo_bot_map(s, b, t):
        at = s * tpb + t
        return (b, jnp.where(at == n_tiles_b - 1, H - 2, (at + 1) * th_b), 0, 0)

    vecb_spec = pl.BlockSpec((1, 1, Cb), lambda s, b, t: (b, 0, 0))
    w1_spec = pl.BlockSpec((Cin, Cb), lambda s, b, t: (0, 0))
    w2_spec = pl.BlockSpec((Cb, Cout), lambda s, b, t: (0, 0))
    wd_spec = pl.BlockSpec((3, 3, Cb), lambda s, b, t: (0, 0, 0))
    bd_spec = pl.BlockSpec((1, Cb), lambda s, b, t: (0, 0))
    statsb_spec = pl.BlockSpec((1, 1, 1, Cb), lambda s, b, t: (s, b, 0, 0))
    statso_spec = pl.BlockSpec((1, 1, 1, Cout), lambda s, b, t: (s, b, 0, 0))

    cp_acc = pltpu.CompilerParams(
        dimension_semantics=("parallel", "parallel", "arbitrary"),
        vmem_limit_bytes=vmem_limit)
    cp_par = pltpu.CompilerParams(
        dimension_semantics=("parallel", "parallel"),
        vmem_limit_bytes=vmem_limit)

    # --- Stage A: bf16 x copy + 1x1 expand -> GN1 partial stats ---------------
    x_bf, s1, q1 = pl.pallas_call(
        _expand_stats_kernel,
        out_shape=(jax.ShapeDtypeStruct((B, H, W, Cin), jnp.bfloat16),
                   jax.ShapeDtypeStruct((S, B, 1, Cb), jnp.float32),
                   jax.ShapeDtypeStruct((S, B, 1, Cb), jnp.float32)),
        grid=(S, B, tpa),
        in_specs=[row_spec(th_a, Cin, tpa), w1_spec],
        out_specs=(row_spec(th_a, Cin, tpa), statsb_spec, statsb_spec),
        compiler_params=cp_acc,
    )(x, w1_bf)

    sc1, sh1 = _gn_scale_shift(s1, q1, g1, b1, H * W * Cb)

    # --- Stage B: GN1+LReLU, reflect-pad, 3x3 depthwise -> bf16 act + GN2 -----
    b_act, s2, q2 = pl.pallas_call(
        functools.partial(_depthwise_kernel, dw_dtype=depthwise_dtype),
        out_shape=(jax.ShapeDtypeStruct((B, H, W, Cb), jnp.bfloat16),
                   jax.ShapeDtypeStruct((S, B, 1, Cb), jnp.float32),
                   jax.ShapeDtypeStruct((S, B, 1, Cb), jnp.float32)),
        grid=(S, B, tpb),
        in_specs=[pl.BlockSpec((1, 1, W, Cin), halo_top_map),
                  row_spec(th_b, Cin, tpb),
                  pl.BlockSpec((1, 1, W, Cin), halo_bot_map),
                  w1_spec, vecb_spec, vecb_spec, wd_spec, bd_spec],
        out_specs=(row_spec(th_b, Cb, tpb), statsb_spec, statsb_spec),
        scratch_shapes=[pltpu.VMEM((th_b + 2, W + 2, Cb), depthwise_dtype)],
        compiler_params=cp_acc,
    )(x_bf, x_bf, x_bf, w1_bf, sc1, sh1, wd, bd)

    sc2, sh2 = _gn_scale_shift(s2, q2, g2, b2, H * W * Cb)

    # --- Stage C: GN2+LReLU + 1x1 project -> bf16 act + GN3 stats -------------
    c_act, s3, q3 = pl.pallas_call(
        _project_kernel,
        out_shape=(jax.ShapeDtypeStruct((B, H, W, Cout), jnp.bfloat16),
                   jax.ShapeDtypeStruct((S, B, 1, Cout), jnp.float32),
                   jax.ShapeDtypeStruct((S, B, 1, Cout), jnp.float32)),
        grid=(S, B, tpc),
        in_specs=[row_spec(th_c, Cb, tpc), vecb_spec, vecb_spec, w2_spec],
        out_specs=(row_spec(th_c, Cout, tpc), statso_spec, statso_spec),
        compiler_params=cp_acc,
    )(b_act, sc2, sh2, w2_bf)

    sc3, sh3 = _gn_scale_shift(s3, q3, g3, b3, H * W * Cout)

    # --- Stage D: GN3 (+ residual) ---------------------------------------------
    def d_row(ch):
        return pl.BlockSpec((1, th_d, W, ch), lambda b, t: (b, t, 0, 0))
    d_vec = pl.BlockSpec((1, 1, Cout), lambda b, t: (b, 0, 0))

    in_specs = [d_row(Cout), d_vec, d_vec]
    args = [c_act, sc3, sh3]
    if use_res:
        in_specs.append(d_row(Cin))
        args.append(x_bf)
    y = pl.pallas_call(
        functools.partial(_finalize_kernel, use_res=use_res),
        out_shape=jax.ShapeDtypeStruct((B, H, W, Cout), out_dtype),
        grid=(B, H // th_d),
        in_specs=in_specs,
        out_specs=d_row(Cout),
        compiler_params=cp_par,
    )(*args)

    return y


def inverted_res_block(x_nchw, params, **kwargs):
    """Drop-in NCHW adapter matching the PyTorch layout. For this HBM-bound
    block prefer `inverted_res_block_nhwc` (avoids two full-tensor transposes)."""
    x = jnp.transpose(x_nchw, (0, 2, 3, 1))
    y = inverted_res_block_nhwc(x, params, **kwargs)
    return jnp.transpose(y, (0, 3, 1, 2))


# --------------------------------------------------------------------------- #
# Pure-JAX f32 reference (NHWC) and parameter init (for verification).
# --------------------------------------------------------------------------- #
def reference_forward_nhwc(x, params):
    (w1, g1, b1, wd, bd, g2, b2, w2, g3, b3) = params
    x = x.astype(jnp.float32)
    B, H, W, Cin = x.shape
    Cb = w1.shape[1]

    def gn(a, gamma, beta):
        m = jnp.mean(a, axis=(1, 2, 3), keepdims=True)
        v = jnp.mean(jnp.square(a - m), axis=(1, 2, 3), keepdims=True)
        return (a - m) * lax.rsqrt(v + EPS) * gamma.reshape(1, 1, 1, -1) + beta.reshape(1, 1, 1, -1)

    lrelu = lambda a: jnp.where(a > 0, a, SLOPE * a)
    a = jnp.einsum("bhwi,io->bhwo", x, w1)
    a = lrelu(gn(a, g1, b1))
    p = jnp.pad(a, ((0, 0), (1, 1), (1, 1), (0, 0)), mode="reflect")
    acc = jnp.broadcast_to(bd.reshape(1, 1, 1, Cb), (B, H, W, Cb))
    for dh in range(3):
        for dww in range(3):
            acc = acc + p[:, dh:dh + H, dww:dww + W, :] * wd[dh, dww]
    b = lrelu(gn(acc, g2, b2))
    c = jnp.einsum("bhwi,io->bhwo", b, w2)
    c = gn(c, g3, b3)
    if Cin == w2.shape[1]:
        c = c + x
    return c


def init_params(key, in_ch, out_ch, expansion_ratio=2):
    bottleneck = int(round(in_ch * expansion_ratio))
    ks = jax.random.split(key, 8)
    w1 = 0.2 * jax.random.normal(ks[0], (in_ch, bottleneck), jnp.float32)
    g1 = 1.0 + 0.1 * jax.random.normal(ks[1], (1, bottleneck), jnp.float32)
    b1 = 0.1 * jax.random.normal(ks[2], (1, bottleneck), jnp.float32)
    wd = 0.2 * jax.random.normal(ks[3], (3, 3, bottleneck), jnp.float32)
    bd = 0.1 * jax.random.normal(ks[4], (1, bottleneck), jnp.float32)
    g2 = 1.0 + 0.1 * jax.random.normal(ks[5], (1, bottleneck), jnp.float32)
    b2 = 0.1 * jax.random.normal(ks[6], (1, bottleneck), jnp.float32)
    w2 = 0.2 * jax.random.normal(ks[7], (bottleneck, out_ch), jnp.float32)
    g3 = jnp.ones((1, out_ch), jnp.float32) * 1.05
    b3 = jnp.full((1, out_ch), 0.02, jnp.float32)
    return (w1, g1, b1, wd, bd, g2, b2, w2, g3, b3)


if __name__ == "__main__":
    key = jax.random.PRNGKey(0)
    kx, kp, kx2, kp2 = jax.random.split(key, 4)

    B, C, H, W = 2, 4, 16, 16

    # Test 1: in_ch == out_ch (residual), multi-row-tile grid -> exercises the
    # reflection halo index maps and resident stats accumulation. f32 depthwise
    # for a tight tolerance (bf16 / inter-stage activations still in play).
    x1 = jax.random.normal(kx, (B, H, W, C), jnp.float32)
    p1 = init_params(kp, in_ch=C, out_ch=C, expansion_ratio=2)
    out1 = jax.block_until_ready(
        inverted_res_block_nhwc(x1, p1, row_tile=8, depthwise_dtype=jnp.float32))
    ref1 = jax.block_until_ready(reference_forward_nhwc(x1, p1))
    assert out1.shape == (B, H, W, C)
    err1 = float(jnp.max(jnp.abs(out1 - ref1)))
    assert jnp.allclose(out1, ref1, rtol=5e-2, atol=5e-2), err1

    # Test 2: in_ch != out_ch (no residual), forced stats core-split (S=2) with a
    # small row tile -> exercises the (s * T_per + t) split index maps.
    C_OUT = 8
    x2 = jax.random.normal(kx2, (B, H, W, C), jnp.float32)
    p2 = init_params(kp2, in_ch=C, out_ch=C_OUT, expansion_ratio=2)
    out2 = jax.block_until_ready(
        inverted_res_block_nhwc(x2, p2, row_tile=4, stats_splits=2,
                                depthwise_dtype=jnp.float32))
    ref2 = jax.block_until_ready(reference_forward_nhwc(x2, p2))
    assert out2.shape == (B, H, W, C_OUT)
    err2 = float(jnp.max(jnp.abs(out2 - ref2)))
    assert jnp.allclose(out2, ref2, rtol=5e-2, atol=5e-2), err2

    # Test 3: auto per-generation config (budget-driven tiles, possibly bf16
    # depthwise on v6e/v7x) through the drop-in NCHW adapter. Loose tolerance
    # because the depthwise MAC may run in bf16 here.
    x3 = jnp.transpose(x1, (0, 3, 1, 2))
    out3 = jax.block_until_ready(inverted_res_block(x3, p1))
    ref3 = jnp.transpose(ref1, (0, 3, 1, 2))
    assert out3.shape == (B, C, H, W)
    err3 = float(jnp.max(jnp.abs(out3 - ref3)))
    assert jnp.allclose(out3, ref3, rtol=2.5e-1, atol=2.5e-1), err3

    print("KERNEL_OK")
</pallas_src>

<mosaic_0001>
module attributes {stable_mosaic.version = 11 : i64} {
  func.func @_expand_stats_kernel(%arg0: i32, %arg1: i32, %arg2: i32, %arg3: memref<1x8x16x4xf32, #tpu.memory_space<vmem>>, %arg4: memref<4x8xbf16, #tpu.memory_space<vmem>>, %arg5: memref<1x8x16x4xbf16, #tpu.memory_space<vmem>>, %arg6: memref<1x1x1x8xf32, #tpu.memory_space<vmem>>, %arg7: memref<1x1x1x8xf32, #tpu.memory_space<vmem>>) attributes {dimension_semantics = [#tpu.dimension_semantics<parallel>, #tpu.dimension_semantics<parallel>, #tpu.dimension_semantics<arbitrary>], iteration_bounds = array<i64: 1, 2, 2>, scalar_prefetch = 0 : i64, scratch_operands = 0 : i64, tpu.core_type = #tpu.core_type<tc>, window_params = [{transform_indices = @transform_0, window_bounds = array<i64: 1, 8, 16, 4>}, {pipeline_mode = #tpu.pipeline_mode<synchronous>, transform_indices = @transform_1, window_bounds = array<i64: 4, 8>}, {transform_indices = @transform_2, window_bounds = array<i64: 1, 8, 16, 4>}, {transform_indices = @transform_3, window_bounds = array<i64: 1, 1, 1, 8>}, {transform_indices = @transform_4, window_bounds = array<i64: 1, 1, 1, 8>}]} {
    %c0 = arith.constant 0 : index
    %c0_0 = arith.constant 0 : index
    %c0_1 = arith.constant 0 : index
    %c0_2 = arith.constant 0 : index
    %0 = vector.load %arg3[%c0, %c0_0, %c0_1, %c0_2] : memref<1x8x16x4xf32, #tpu.memory_space<vmem>>, vector<1x8x16x4xf32>
    %1 = vector.shape_cast %0 : vector<1x8x16x4xf32> to vector<8x16x4xf32>
    %2 = arith.truncf %1 : vector<8x16x4xf32> to vector<8x16x4xbf16>
    %c0_3 = arith.constant 0 : index
    %c0_4 = arith.constant 0 : index
    %c0_5 = arith.constant 0 : index
    %c0_6 = arith.constant 0 : index
    %3 = vector.load %arg5[%c0_3, %c0_4, %c0_5, %c0_6] : memref<1x8x16x4xbf16, #tpu.memory_space<vmem>>, vector<1x8x16x4xbf16>
    %4 = vector.shape_cast %3 : vector<1x8x16x4xbf16> to vector<8x16x4xbf16>
    %5 = vector.shape_cast %2 : vector<8x16x4xbf16> to vector<1x8x16x4xbf16>
    tpu.vector_store %arg5[%c0_3, %c0_4, %c0_5, %c0_6], %5 {strides = array<i32>} : memref<1x8x16x4xbf16, #tpu.memory_space<vmem>>, vector<1x8x16x4xbf16>,
    %6 = vector.shape_cast %2 : vector<8x16x4xbf16> to vector<128x4xbf16>
    %c0_7 = arith.constant 0 : index
    %c0_8 = arith.constant 0 : index
    %7 = vector.load %arg4[%c0_7, %c0_8] : memref<4x8xbf16, #tpu.memory_space<vmem>>, vector<4x8xbf16>
    %cst = arith.constant dense<0.000000e+00> : vector<128x8xf32>
    %8 = tpu.matmul %6, %7, %cst {dimension_numbers = #tpu.dot_dimension_numbers<[1], [0], [0], [1], [0, 0, 1, 1], [], []>} : vector<128x4xbf16>, vector<4x8xbf16>, vector<128x8xf32> -> vector<128x8xf32>
    %cst_9 = arith.constant dense<0.000000e+00> : vector<8xf32>
    %9 = vector.multi_reduction <add>, %8, %cst_9 [0] : vector<128x8xf32> to vector<8xf32>
    %10 = vector.shape_cast %9 : vector<8xf32> to vector<1x1x1x8xf32>
    %11 = arith.mulf %8, %8 : vector<128x8xf32>
    %cst_10 = arith.constant dense<0.000000e+00> : vector<8xf32>
    %12 = vector.multi_reduction <add>, %11, %cst_10 [0] : vector<128x8xf32> to vector<8xf32>
    %13 = vector.shape_cast %12 : vector<8xf32> to vector<1x1x1x8xf32>
    %c0_i32 = arith.constant 0 : i32
    %14 = arith.cmpi eq, %arg2, %c0_i32 : i32
    %15 = arith.extui %14 : i1 to i32
    %c0_i32_11 = arith.constant 0 : i32
    %16 = arith.cmpi ne, %15, %c0_i32_11 : i32
    scf.if %16 {
      %c0_14 = arith.constant 0 : index
      %c0_15 = arith.constant 0 : index
      %c0_16 = arith.constant 0 : index
      %c0_17 = arith.constant 0 : index
      %20 = vector.load %arg6[%c0_14, %c0_15, %c0_16, %c0_17] : memref<1x1x1x8xf32, #tpu.memory_space<vmem>>, vector<1x1x1x8xf32>
      tpu.vector_store %arg6[%c0_14, %c0_15, %c0_16, %c0_17], %10 {strides = array<i32>} : memref<1x1x1x8xf32, #tpu.memory_space<vmem>>, vector<1x1x1x8xf32>,
      %c0_18 = arith.constant 0 : index
      %c0_19 = arith.constant 0 : index
      %c0_20 = arith.constant 0 : index
      %c0_21 = arith.constant 0 : index
      %21 = vector.load %arg7[%c0_18, %c0_19, %c0_20, %c0_21] : memref<1x1x1x8xf32, #tpu.memory_space<vmem>>, vector<1x1x1x8xf32>
      tpu.vector_store %arg7[%c0_18, %c0_19, %c0_20, %c0_21], %13 {strides = array<i32>} : memref<1x1x1x8xf32, #tpu.memory_space<vmem>>, vector<1x1x1x8xf32>,
    } else {
    }
    %c0_i32_12 = arith.constant 0 : i32
    %17 = arith.cmpi ne, %arg2, %c0_i32_12 : i32
    %18 = arith.extui %17 : i1 to i32
    %c0_i32_13 = arith.constant 0 : i32
    %19 = arith.cmpi ne, %18, %c0_i32_13 : i32
    scf.if %19 {
      %c0_14 = arith.constant 0 : index
      %c0_15 = arith.constant 0 : index
      %c0_16 = arith.constant 0 : index
      %c0_17 = arith.constant 0 : index
      %20 = vector.load %arg6[%c0_14, %c0_15, %c0_16, %c0_17] : memref<1x1x1x8xf32, #tpu.memory_space<vmem>>, vector<1x1x1x8xf32>
      %21 = arith.addf %20, %10 : vector<1x1x1x8xf32>
      %c0_18 = arith.constant 0 : index
      %c0_19 = arith.constant 0 : index
      %c0_20 = arith.constant 0 : index
      %c0_21 = arith.constant 0 : index
      %22 = vector.load %arg6[%c0_18, %c0_19, %c0_20, %c0_21] : memref<1x1x1x8xf32, #tpu.memory_space<vmem>>, vector<1x1x1x8xf32>
      tpu.vector_store %arg6[%c0_18, %c0_19, %c0_20, %c0_21], %21 {strides = array<i32>} : memref<1x1x1x8xf32, #tpu.memory_space<vmem>>, vector<1x1x1x8xf32>,
      %c0_22 = arith.constant 0 : index
      %c0_23 = arith.constant 0 : index
      %c0_24 = arith.constant 0 : index
      %c0_25 = arith.constant 0 : index
      %23 = vector.load %arg7[%c0_22, %c0_23, %c0_24, %c0_25] : memref<1x1x1x8xf32, #tpu.memory_space<vmem>>, vector<1x1x1x8xf32>
      %24 = arith.addf %23, %13 : vector<1x1x1x8xf32>
      %c0_26 = arith.constant 0 : index
      %c0_27 = arith.constant 0 : index
      %c0_28 = arith.constant 0 : index
      %c0_29 = arith.constant 0 : index
      %25 = vector.load %arg7[%c0_26, %c0_27, %c0_28, %c0_29] : memref<1x1x1x8xf32, #tpu.memory_space<vmem>>, vector<1x1x1x8xf32>
      tpu.vector_store %arg7[%c0_26, %c0_27, %c0_28, %c0_29], %24 {strides = array<i32>} : memref<1x1x1x8xf32, #tpu.memory_space<vmem>>, vector<1x1x1x8xf32>,
    } else {
    }
    return
  }
  func.func @transform_0(%arg0: i32, %arg1: i32, %arg2: i32) -> (i32, i32, i32, i32) {
    %c2_i32 = arith.constant 2 : i32
    %0 = arith.muli %arg0, %c2_i32 : i32
    %1 = arith.addi %0, %arg2 : i32
    %c0_i32 = arith.constant 0 : i32
    %c0_i32_0 = arith.constant 0 : i32
    %c0_i32_1 = arith.constant 0 : i32
    return %arg1, %1, %c0_i32, %c0_i32_0 : i32, i32, i32, i32
  }
  func.func @transform_1(%arg0: i32, %arg1: i32, %arg2: i32) -> (i32, i32) {
    %c0_i32 = arith.constant 0 : i32
    %c0_i32_0 = arith.constant 0 : i32
    %c0_i32_1 = arith.constant 0 : i32
    return %c0_i32, %c0_i32_0 : i32, i32
  }
  func.func @transform_2(%arg0: i32, %arg1: i32, %arg2: i32) -> (i32, i32, i32, i32) {
    %c2_i32 = arith.constant 2 : i32
    %0 = arith.muli %arg0, %c2_i32 : i32
    %1 = arith.addi %0, %arg2 : i32
    %c0_i32 = arith.constant 0 : i32
    %c0_i32_0 = arith.constant 0 : i32
    %c0_i32_1 = arith.constant 0 : i32
    return %arg1, %1, %c0_i32, %c0_i32_0 : i32, i32, i32, i32
  }
  func.func @transform_3(%arg0: i32, %arg1: i32, %arg2: i32) -> (i32, i32, i32, i32) {
    %c0_i32 = arith.constant 0 : i32
    %c0_i32_0 = arith.constant 0 : i32
    %c0_i32_1 = arith.constant 0 : i32
    return %arg0, %arg1, %c0_i32, %c0_i32_0 : i32, i32, i32, i32
  }
  func.func @transform_4(%arg0: i32, %arg1: i32, %arg2: i32) -> (i32, i32, i32, i32) {
    %c0_i32 = arith.constant 0 : i32
    %c0_i32_0 = arith.constant 0 : i32
    %c0_i32_1 = arith.constant 0 : i32
    return %arg0, %arg1, %c0_i32, %c0_i32_0 : i32, i32, i32, i32
  }
}

module attributes {stable_mosaic.version = 11 : i64} {
  func.func @_project_kernel(%arg0: i32, %arg1: i32, %arg2: i32, %arg3: memref<1x8x16x8xbf16, #tpu.memory_space<vmem>>, %arg4: memref<1x1x8xf32, #tpu.memory_space<vmem>>, %arg5: memref<1x1x8xf32, #tpu.memory_space<vmem>>, %arg6: memref<8x4xbf16, #tpu.memory_space<vmem>>, %arg7: memref<1x8x16x4xbf16, #tpu.memory_space<vmem>>, %arg8: memref<1x1x1x4xf32, #tpu.memory_space<vmem>>, %arg9: memref<1x1x1x4xf32, #tpu.memory_space<vmem>>) attributes {dimension_semantics = [#tpu.dimension_semantics<parallel>, #tpu.dimension_semantics<parallel>, #tpu.dimension_semantics<arbitrary>], iteration_bounds = array<i64: 1, 2, 2>, scalar_prefetch = 0 : i64, scratch_operands = 0 : i64, tpu.core_type = #tpu.core_type<tc>, window_params = [{transform_indices = @transform_0, window_bounds = array<i64: 1, 8, 16, 8>}, {transform_indices = @transform_1, window_bounds = array<i64: 1, 1, 8>}, {transform_indices = @transform_2, window_bounds = array<i64: 1, 1, 8>}, {pipeline_mode = #tpu.pipeline_mode<synchronous>, transform_indices = @transform_3, window_bounds = array<i64: 8, 4>}, {transform_indices = @transform_4, window_bounds = array<i64: 1, 8, 16, 4>}, {transform_indices = @transform_5, window_bounds = array<i64: 1, 1, 1, 4>}, {transform_indices = @transform_6, window_bounds = array<i64: 1, 1, 1, 4>}]} {
    %c0 = arith.constant 0 : index
    %c0_0 = arith.constant 0 : index
    %c0_1 = arith.constant 0 : index
    %c0_2 = arith.constant 0 : index
    %0 = vector.load %arg3[%c0, %c0_0, %c0_1, %c0_2] : memref<1x8x16x8xbf16, #tpu.memory_space<vmem>>, vector<1x8x16x8xbf16>
    %1 = vector.shape_cast %0 : vector<1x8x16x8xbf16> to vector<8x16x8xbf16>
    %2 = vector.shape_cast %1 : vector<8x16x8xbf16> to vector<128x8xbf16>
    %3 = arith.extf %2 : vector<128x8xbf16> to vector<128x8xf32>
    %c0_3 = arith.constant 0 : index
    %c0_4 = arith.constant 0 : index
    %c0_5 = arith.constant 0 : index
    %4 = vector.load %arg4[%c0_3, %c0_4, %c0_5] : memref<1x1x8xf32, #tpu.memory_space<vmem>>, vector<1x1x8xf32>
    %5 = vector.shape_cast %4 : vector<1x1x8xf32> to vector<1x8xf32>
    %6 = vector.broadcast %5 : vector<1x8xf32> to vector<128x8xf32>
    %7 = arith.mulf %3, %6 : vector<128x8xf32>
    %c0_6 = arith.constant 0 : index
    %c0_7 = arith.constant 0 : index
    %c0_8 = arith.constant 0 : index
    %8 = vector.load %arg5[%c0_6, %c0_7, %c0_8] : memref<1x1x8xf32, #tpu.memory_space<vmem>>, vector<1x1x8xf32>
    %9 = vector.shape_cast %8 : vector<1x1x8xf32> to vector<1x8xf32>
    %10 = vector.broadcast %9 : vector<1x8xf32> to vector<128x8xf32>
    %11 = arith.addf %7, %10 : vector<128x8xf32>
    %cst = arith.constant 0.000000e+00 : f32
    %12 = vector.broadcast %cst : f32 to vector<128x8xf32>
    %13 = arith.cmpf ogt, %11, %12 : vector<128x8xf32>
    %cst_9 = arith.constant 2.000000e-01 : f32
    %14 = vector.broadcast %cst_9 : f32 to vector<128x8xf32>
    %15 = arith.mulf %14, %11 : vector<128x8xf32>
    %16 = arith.select %13, %11, %15 : vector<128x8xi1>, vector<128x8xf32>
    %17 = arith.truncf %16 : vector<128x8xf32> to vector<128x8xbf16>
    %c0_10 = arith.constant 0 : index
    %c0_11 = arith.constant 0 : index
    %18 = vector.load %arg6[%c0_10, %c0_11] : memref<8x4xbf16, #tpu.memory_space<vmem>>, vector<8x4xbf16>
    %cst_12 = arith.constant dense<0.000000e+00> : vector<128x4xf32>
    %19 = tpu.matmul %17, %18, %cst_12 {dimension_numbers = #tpu.dot_dimension_numbers<[1], [0], [0], [1], [0, 0, 1, 1], [], []>} : vector<128x8xbf16>, vector<8x4xbf16>, vector<128x4xf32> -> vector<128x4xf32>
    %20 = arith.truncf %19 : vector<128x4xf32> to vector<128x4xbf16>
    %21 = vector.shape_cast %20 : vector<128x4xbf16> to vector<8x16x4xbf16>
    %c0_13 = arith.constant 0 : index
    %c0_14 = arith.constant 0 : index
    %c0_15 = arith.constant 0 : index
    %c0_16 = arith.constant 0 : index
    %22 = vector.load %arg7[%c0_13, %c0_14, %c0_15, %c0_16] : memref<1x8x16x4xbf16, #tpu.memory_space<vmem>>, vector<1x8x16x4xbf16>
    %23 = vector.shape_cast %22 : vector<1x8x16x4xbf16> to vector<8x16x4xbf16>
    %24 = vector.shape_cast %21 : vector<8x16x4xbf16> to vector<1x8x16x4xbf16>
    tpu.vector_store %arg7[%c0_13, %c0_14, %c0_15, %c0_16], %24 {strides = array<i32>} : memref<1x8x16x4xbf16, #tpu.memory_space<vmem>>, vector<1x8x16x4xbf16>,
    %25 = arith.extf %20 : vector<128x4xbf16> to vector<128x4xf32>
    %cst_17 = arith.constant dense<0.000000e+00> : vector<4xf32>
    %26 = vector.multi_reduction <add>, %25, %cst_17 [0] : vector<128x4xf32> to vector<4xf32>
    %27 = vector.shape_cast %26 : vector<4xf32> to vector<1x1x1x4xf32>
    %28 = arith.mulf %25, %25 : vector<128x4xf32>
    %cst_18 = arith.constant dense<0.000000e+00> : vector<4xf32>
    %29 = vector.multi_reduction <add>, %28, %cst_18 [0] : vector<128x4xf32> to vector<4xf32>
    %30 = vector.shape_cast %29 : vector<4xf32> to vector<1x1x1x4xf32>
    %c0_i32 = arith.constant 0 : i32
    %31 = arith.cmpi eq, %arg2, %c0_i32 : i32
    %32 = arith.extui %31 : i1 to i32
    %c0_i32_19 = arith.constant 0 : i32
    %33 = arith.cmpi ne, %32, %c0_i32_19 : i32
    scf.if %33 {
      %c0_22 = arith.constant 0 : index
      %c0_23 = arith.constant 0 : index
      %c0_24 = arith.constant 0 : index
      %c0_25 = arith.constant 0 : index
      %37 = vector.load %arg8[%c0_22, %c0_23, %c0_24, %c0_25] : memref<1x1x1x4xf32, #tpu.memory_space<vmem>>, vector<1x1x1x4xf32>
      tpu.vector_store %arg8[%c0_22, %c0_23, %c0_24, %c0_25], %27 {strides = array<i32>} : memref<1x1x1x4xf32, #tpu.memory_space<vmem>>, vector<1x1x1x4xf32>,
      %c0_26 = arith.constant 0 : index
      %c0_27 = arith.constant 0 : index
      %c0_28 = arith.constant 0 : index
      %c0_29 = arith.constant 0 : index
      %38 = vector.load %arg9[%c0_26, %c0_27, %c0_28, %c0_29] : memref<1x1x1x4xf32, #tpu.memory_space<vmem>>, vector<1x1x1x4xf32>
      tpu.vector_store %arg9[%c0_26, %c0_27, %c0_28, %c0_29], %30 {strides = array<i32>} : memref<1x1x1x4xf32, #tpu.memory_space<vmem>>, vector<1x1x1x4xf32>,
    } else {
    }
    %c0_i32_20 = arith.constant 0 : i32
    %34 = arith.cmpi ne, %arg2, %c0_i32_20 : i32
    %35 = arith.extui %34 : i1 to i32
    %c0_i32_21 = arith.constant 0 : i32
    %36 = arith.cmpi ne, %35, %c0_i32_21 : i32
    scf.if %36 {
      %c0_22 = arith.constant 0 : index
      %c0_23 = arith.constant 0 : index
      %c0_24 = arith.constant 0 : index
      %c0_25 = arith.constant 0 : index
      %37 = vector.load %arg8[%c0_22, %c0_23, %c0_24, %c0_25] : memref<1x1x1x4xf32, #tpu.memory_space<vmem>>, vector<1x1x1x4xf32>
      %38 = arith.addf %37, %27 : vector<1x1x1x4xf32>
      %c0_26 = arith.constant 0 : index
      %c0_27 = arith.constant 0 : index
      %c0_28 = arith.constant 0 : index
      %c0_29 = arith.constant 0 : index
      %39 = vector.load %arg8[%c0_26, %c0_27, %c0_28, %c0_29] : memref<1x1x1x4xf32, #tpu.memory_space<vmem>>, vector<1x1x1x4xf32>
      tpu.vector_store %arg8[%c0_26, %c0_27, %c0_28, %c0_29], %38 {strides = array<i32>} : memref<1x1x1x4xf32, #tpu.memory_space<vmem>>, vector<1x1x1x4xf32>,
      %c0_30 = arith.constant 0 : index
      %c0_31 = arith.constant 0 : index
      %c0_32 = arith.constant 0 : index
      %c0_33 = arith.constant 0 : index
      %40 = vector.load %arg9[%c0_30, %c0_31, %c0_32, %c0_33] : memref<1x1x1x4xf32, #tpu.memory_space<vmem>>, vector<1x1x1x4xf32>
      %41 = arith.addf %40, %30 : vector<1x1x1x4xf32>
      %c0_34 = arith.constant 0 : index
      %c0_35 = arith.constant 0 : index
      %c0_36 = arith.constant 0 : index
      %c0_37 = arith.constant 0 : index
      %42 = vector.load %arg9[%c0_34, %c0_35, %c0_36, %c0_37] : memref<1x1x1x4xf32, #tpu.memory_space<vmem>>, vector<1x1x1x4xf32>
      tpu.vector_store %arg9[%c0_34, %c0_35, %c0_36, %c0_37], %41 {strides = array<i32>} : memref<1x1x1x4xf32, #tpu.memory_space<vmem>>, vector<1x1x1x4xf32>,
    } else {
    }
    return
  }
  func.func @transform_0(%arg0: i32, %arg1: i32, %arg2: i32) -> (i32, i32, i32, i32) {
    %c2_i32 = arith.constant 2 : i32
    %0 = arith.muli %arg0, %c2_i32 : i32
    %1 = arith.addi %0, %arg2 : i32
    %c0_i32 = arith.constant 0 : i32
    %c0_i32_0 = arith.constant 0 : i32
    %c0_i32_1 = arith.constant 0 : i32
    return %arg1, %1, %c0_i32, %c0_i32_0 : i32, i32, i32, i32
  }
  func.func @transform_1(%arg0: i32, %arg1: i32, %arg2: i32) -> (i32, i32, i32) {
    %c0_i32 = arith.constant 0 : i32
    %c0_i32_0 = arith.constant 0 : i32
    %c0_i32_1 = arith.constant 0 : i32
    return %arg1, %c0_i32, %c0_i32_0 : i32, i32, i32
  }
  func.func @transform_2(%arg0: i32, %arg1: i32, %arg2: i32) -> (i32, i32, i32) {
    %c0_i32 = arith.constant 0 : i32
    %c0_i32_0 = arith.constant 0 : i32
    %c0_i32_1 = arith.constant 0 : i32
    return %arg1, %c0_i32, %c0_i32_0 : i32, i32, i32
  }
  func.func @transform_3(%arg0: i32, %arg1: i32, %arg2: i32) -> (i32, i32) {
    %c0_i32 = arith.constant 0 : i32
    %c0_i32_0 = arith.constant 0 : i32
    %c0_i32_1 = arith.constant 0 : i32
    return %c0_i32, %c0_i32_0 : i32, i32
  }
  func.func @transform_4(%arg0: i32, %arg1: i32, %arg2: i32) -> (i32, i32, i32, i32) {
    %c2_i32 = arith.constant 2 : i32
    %0 = arith.muli %arg0, %c2_i32 : i32
    %1 = arith.addi %0, %arg2 : i32
    %c0_i32 = arith.constant 0 : i32
    %c0_i32_0 = arith.constant 0 : i32
    %c0_i32_1 = arith.constant 0 : i32
    return %arg1, %1, %c0_i32, %c0_i32_0 : i32, i32, i32, i32
  }
  func.func @transform_5(%arg0: i32, %arg1: i32, %arg2: i32) -> (i32, i32, i32, i32) {
    %c0_i32 = arith.constant 0 : i32
    %c0_i32_0 = arith.constant 0 : i32
    %c0_i32_1 = arith.constant 0 : i32
    return %arg0, %arg1, %c0_i32, %c0_i32_0 : i32, i32, i32, i32
  }
  func.func @transform_6(%arg0: i32, %arg1: i32, %arg2: i32) -> (i32, i32, i32, i32) {
    %c0_i32 = arith.constant 0 : i32
    %c0_i32_0 = arith.constant 0 : i32
    %c0_i32_1 = arith.constant 0 : i32
    return %arg0, %arg1, %c0_i32, %c0_i32_0 : i32, i32, i32, i32
  }
}

module attributes {stable_mosaic.version = 11 : i64} {
  func.func @_depthwise_kernel(%arg0: i32, %arg1: i32, %arg2: i32, %arg3: memref<1x1x16x4xbf16, #tpu.memory_space<vmem>>, %arg4: memref<1x8x16x4xbf16, #tpu.memory_space<vmem>>, %arg5: memref<1x1x16x4xbf16, #tpu.memory_space<vmem>>, %arg6: memref<4x8xbf16, #tpu.memory_space<vmem>>, %arg7: memref<1x1x8xf32, #tpu.memory_space<vmem>>, %arg8: memref<1x1x8xf32, #tpu.memory_space<vmem>>, %arg9: memref<3x3x8xf32, #tpu.memory_space<vmem>>, %arg10: memref<1x8xf32, #tpu.memory_space<vmem>>, %arg11: memref<1x8x16x8xbf16, #tpu.memory_space<vmem>>, %arg12: memref<1x1x1x8xf32, #tpu.memory_space<vmem>>, %arg13: memref<1x1x1x8xf32, #tpu.memory_space<vmem>>, %arg14: memref<10x18x8xf32, #tpu.memory_space<vmem>>) attributes {dimension_semantics = [#tpu.dimension_semantics<parallel>, #tpu.dimension_semantics<parallel>, #tpu.dimension_semantics<arbitrary>], iteration_bounds = array<i64: 1, 2, 2>, scalar_prefetch = 0 : i64, scratch_operands = 1 : i64, tpu.core_type = #tpu.core_type<tc>, window_params = [{transform_indices = @transform_0, window_bounds = array<i64: 1, 1, 16, 4>}, {transform_indices = @transform_1, window_bounds = array<i64: 1, 8, 16, 4>}, {transform_indices = @transform_2, window_bounds = array<i64: 1, 1, 16, 4>}, {pipeline_mode = #tpu.pipeline_mode<synchronous>, transform_indices = @transform_3, window_bounds = array<i64: 4, 8>}, {transform_indices = @transform_4, window_bounds = array<i64: 1, 1, 8>}, {transform_indices = @transform_5, window_bounds = array<i64: 1, 1, 8>}, {pipeline_mode = #tpu.pipeline_mode<synchronous>, transform_indices = @transform_6, window_bounds = array<i64: 3, 3, 8>}, {pipeline_mode = #tpu.pipeline_mode<synchronous>, transform_indices = @transform_7, window_bounds = array<i64: 1, 8>}, {transform_indices = @transform_8, window_bounds = array<i64: 1, 8, 16, 8>}, {transform_indices = @transform_9, window_bounds = array<i64: 1, 1, 1, 8>}, {transform_indices = @transform_10, window_bounds = array<i64: 1, 1, 1, 8>}]} {
    %c0 = arith.constant 0 : index
    %c0_0 = arith.constant 0 : index
    %c0_1 = arith.constant 0 : index
    %0 = vector.load %arg7[%c0, %c0_0, %c0_1] : memref<1x1x8xf32, #tpu.memory_space<vmem>>, vector<1x1x8xf32>
    %1 = vector.shape_cast %0 : vector<1x1x8xf32> to vector<1x8xf32>
    %c0_2 = arith.constant 0 : index
    %c0_3 = arith.constant 0 : index
    %c0_4 = arith.constant 0 : index
    %2 = vector.load %arg8[%c0_2, %c0_3, %c0_4] : memref<1x1x8xf32, #tpu.memory_space<vmem>>, vector<1x1x8xf32>
    %3 = vector.shape_cast %2 : vector<1x1x8xf32> to vector<1x8xf32>
    %c0_5 = arith.constant 0 : index
    %c0_6 = arith.constant 0 : index
    %c0_7 = arith.constant 0 : index
    %c0_8 = arith.constant 0 : index
    %4 = vector.load %arg4[%c0_5, %c0_6, %c0_7, %c0_8] : memref<1x8x16x4xbf16, #tpu.memory_space<vmem>>, vector<1x8x16x4xbf16>
    %5 = vector.shape_cast %4 : vector<1x8x16x4xbf16> to vector<8x16x4xbf16>
    %6 = vector.shape_cast %5 : vector<8x16x4xbf16> to vector<128x4xbf16>
    %c0_9 = arith.constant 0 : index
    %c0_10 = arith.constant 0 : index
    %7 = vector.load %arg6[%c0_9, %c0_10] : memref<4x8xbf16, #tpu.memory_space<vmem>>, vector<4x8xbf16>
    %cst = arith.constant dense<0.000000e+00> : vector<128x8xf32>
    %8 = tpu.matmul %6, %7, %cst {dimension_numbers = #tpu.dot_dimension_numbers<[1], [0], [0], [1], [0, 0, 1, 1], [], []>} : vector<128x4xbf16>, vector<4x8xbf16>, vector<128x8xf32> -> vector<128x8xf32>
    %9 = vector.broadcast %1 : vector<1x8xf32> to vector<128x8xf32>
    %10 = arith.mulf %8, %9 : vector<128x8xf32>
    %11 = vector.broadcast %3 : vector<1x8xf32> to vector<128x8xf32>
    %12 = arith.addf %10, %11 : vector<128x8xf32>
    %cst_11 = arith.constant 0.000000e+00 : f32
    %13 = vector.broadcast %cst_11 : f32 to vector<128x8xf32>
    %14 = arith.cmpf ogt, %12, %13 : vector<128x8xf32>
    %cst_12 = arith.constant 2.000000e-01 : f32
    %15 = vector.broadcast %cst_12 : f32 to vector<128x8xf32>
    %16 = arith.mulf %15, %12 : vector<128x8xf32>
    %17 = arith.select %14, %12, %16 : vector<128x8xi1>, vector<128x8xf32>
    %18 = vector.shape_cast %17 : vector<128x8xf32> to vector<8x16x8xf32>
    %c1 = arith.constant 1 : index
    %c1_13 = arith.constant 1 : index
    %c0_14 = arith.constant 0 : index
    %19 = vector.load %arg14[%c1, %c1_13, %c0_14] : memref<10x18x8xf32, #tpu.memory_space<vmem>>, vector<8x16x8xf32>
    tpu.vector_store %arg14[%c1, %c1_13, %c0_14], %18 {strides = array<i32>} : memref<10x18x8xf32, #tpu.memory_space<vmem>>, vector<8x16x8xf32>,
    %c0_15 = arith.constant 0 : index
    %c0_16 = arith.constant 0 : index
    %c0_17 = arith.constant 0 : index
    %c0_18 = arith.constant 0 : index
    %20 = vector.load %arg3[%c0_15, %c0_16, %c0_17, %c0_18] : memref<1x1x16x4xbf16, #tpu.memory_space<vmem>>, vector<1x1x16x4xbf16>
    %21 = vector.shape_cast %20 : vector<1x1x16x4xbf16> to vector<1x16x4xbf16>
    %22 = vector.shape_cast %21 : vector<1x16x4xbf16> to vector<16x4xbf16>
    %c0_19 = arith.constant 0 : index
    %c0_20 = arith.constant 0 : index
    %23 = vector.load %arg6[%c0_19, %c0_20] : memref<4x8xbf16, #tpu.memory_space<vmem>>, vector<4x8xbf16>
    %cst_21 = arith.constant dense<0.000000e+00> : vector<16x8xf32>
    %24 = tpu.matmul %22, %23, %cst_21 {dimension_numbers = #tpu.dot_dimension_numbers<[1], [0], [0], [1], [0, 0, 1, 1], [], []>} : vector<16x4xbf16>, vector<4x8xbf16>, vector<16x8xf32> -> vector<16x8xf32>
    %25 = vector.broadcast %1 : vector<1x8xf32> to vector<16x8xf32>
    %26 = arith.mulf %24, %25 : vector<16x8xf32>
    %27 = vector.broadcast %3 : vector<1x8xf32> to vector<16x8xf32>
    %28 = arith.addf %26, %27 : vector<16x8xf32>
    %cst_22 = arith.constant 0.000000e+00 : f32
    %29 = vector.broadcast %cst_22 : f32 to vector<16x8xf32>
    %30 = arith.cmpf ogt, %28, %29 : vector<16x8xf32>
    %cst_23 = arith.constant 2.000000e-01 : f32
    %31 = vector.broadcast %cst_23 : f32 to vector<16x8xf32>
    %32 = arith.mulf %31, %28 : vector<16x8xf32>
    %33 = arith.select %30, %28, %32 : vector<16x8xi1>, vector<16x8xf32>
    %34 = vector.shape_cast %33 : vector<16x8xf32> to vector<1x16x8xf32>
    %c0_24 = arith.constant 0 : index
    %c1_25 = arith.constant 1 : index
    %c0_26 = arith.constant 0 : index
    %35 = vector.load %arg14[%c0_24, %c1_25, %c0_26] : memref<10x18x8xf32, #tpu.memory_space<vmem>>, vector<1x16x8xf32>
    tpu.vector_store %arg14[%c0_24, %c1_25, %c0_26], %34 {strides = array<i32>} : memref<10x18x8xf32, #tpu.memory_space<vmem>>, vector<1x16x8xf32>,
    %c0_27 = arith.constant 0 : index
    %c0_28 = arith.constant 0 : index
    %c0_29 = arith.constant 0 : index
    %c0_30 = arith.constant 0 : index
    %36 = vector.load %arg5[%c0_27, %c0_28, %c0_29, %c0_30] : memref<1x1x16x4xbf16, #tpu.memory_space<vmem>>, vector<1x1x16x4xbf16>
    %37 = vector.shape_cast %36 : vector<1x1x16x4xbf16> to vector<1x16x4xbf16>
    %38 = vector.shape_cast %37 : vector<1x16x4xbf16> to vector<16x4xbf16>
    %c0_31 = arith.constant 0 : index
    %c0_32 = arith.constant 0 : index
    %39 = vector.load %arg6[%c0_31, %c0_32] : memref<4x8xbf16, #tpu.memory_space<vmem>>, vector<4x8xbf16>
    %cst_33 = arith.constant dense<0.000000e+00> : vector<16x8xf32>
    %40 = tpu.matmul %38, %39, %cst_33 {dimension_numbers = #tpu.dot_dimension_numbers<[1], [0], [0], [1], [0, 0, 1, 1], [], []>} : vector<16x4xbf16>, vector<4x8xbf16>, vector<16x8xf32> -> vector<16x8xf32>
    %41 = vector.broadcast %1 : vector<1x8xf32> to vector<16x8xf32>
    %42 = arith.mulf %40, %41 : vector<16x8xf32>
    %43 = vector.broadcast %3 : vector<1x8xf32> to vector<16x8xf32>
    %44 = arith.addf %42, %43 : vector<16x8xf32>
    %cst_34 = arith.constant 0.000000e+00 : f32
    %45 = vector.broadcast %cst_34 : f32 to vector<16x8xf32>
    %46 = arith.cmpf ogt, %44, %45 : vector<16x8xf32>
    %cst_35 = arith.constant 2.000000e-01 : f32
    %47 = vector.broadcast %cst_35 : f32 to vector<16x8xf32>
    %48 = arith.mulf %47, %44 : vector<16x8xf32>
    %49 = arith.select %46, %44, %48 : vector<16x8xi1>, vector<16x8xf32>
    %50 = vector.shape_cast %49 : vector<16x8xf32> to vector<1x16x8xf32>
    %c9 = arith.constant 9 : index
    %c1_36 = arith.constant 1 : index
    %c0_37 = arith.constant 0 : index
    %51 = vector.load %arg14[%c9, %c1_36, %c0_37] : memref<10x18x8xf32, #tpu.memory_space<vmem>>, vector<1x16x8xf32>
    tpu.vector_store %arg14[%c9, %c1_36, %c0_37], %50 {strides = array<i32>} : memref<10x18x8xf32, #tpu.memory_space<vmem>>, vector<1x16x8xf32>,
    %c0_38 = arith.constant 0 : index
    %c2 = arith.constant 2 : index
    %c0_39 = arith.constant 0 : index
    %52 = vector.load %arg14[%c0_38, %c2, %c0_39] : memref<10x18x8xf32, #tpu.memory_space<vmem>>, vector<10x1x8xf32>
    %c0_40 = arith.constant 0 : index
    %c0_41 = arith.constant 0 : index
    %c0_42 = arith.constant 0 : index
    %53 = vector.load %arg14[%c0_40, %c0_41, %c0_42] : memref<10x18x8xf32, #tpu.memory_space<vmem>>, vector<10x1x8xf32>
    tpu.vector_store %arg14[%c0_40, %c0_41, %c0_42], %52 {strides = array<i32>} : memref<10x18x8xf32, #tpu.memory_space<vmem>>, vector<10x1x8xf32>,
    %c0_43 = arith.constant 0 : index
    %c15 = arith.constant 15 : index
    %c0_44 = arith.constant 0 : index
    %54 = vector.load %arg14[%c0_43, %c15, %c0_44] : memref<10x18x8xf32, #tpu.memory_space<vmem>>, vector<10x1x8xf32>
    %c0_45 = arith.constant 0 : index
    %c17 = arith.constant 17 : index
    %c0_46 = arith.constant 0 : index
    %55 = vector.load %arg14[%c0_45, %c17, %c0_46] : memref<10x18x8xf32, #tpu.memory_space<vmem>>, vector<10x1x8xf32>
    tpu.vector_store %arg14[%c0_45, %c17, %c0_46], %54 {strides = array<i32>} : memref<10x18x8xf32, #tpu.memory_space<vmem>>, vector<10x1x8xf32>,
    %c0_47 = arith.constant 0 : index
    %c0_48 = arith.constant 0 : index
    %c0_49 = arith.constant 0 : index
    %56 = vector.load %arg9[%c0_47, %c0_48, %c0_49] : memref<3x3x8xf32, #tpu.memory_space<vmem>>, vector<3x3x8xf32>
    %c0_50 = arith.constant 0 : index
    %c0_51 = arith.constant 0 : index
    %57 = vector.load %arg10[%c0_50, %c0_51] : memref<1x8xf32, #tpu.memory_space<vmem>>, vector<1x8xf32>
    %58 = vector.shape_cast %57 : vector<1x8xf32> to vector<1x1x8xf32>
    %c0_52 = arith.constant 0 : index
    %c0_53 = arith.constant 0 : index
    %c0_54 = arith.constant 0 : index
    %59 = vector.load %arg14[%c0_52, %c0_53, %c0_54] : memref<10x18x8xf32, #tpu.memory_space<vmem>>, vector<8x16x8xf32>
    %60 = vector.extract_strided_slice %56 {offsets = [0, 0, 0], sizes = [1, 1, 8], strides = [1, 1, 1]} : vector<3x3x8xf32> to vector<1x1x8xf32>
    %61 = vector.broadcast %60 : vector<1x1x8xf32> to vector<8x16x8xf32>
    %62 = arith.mulf %59, %61 : vector<8x16x8xf32>
    %63 = vector.broadcast %58 : vector<1x1x8xf32> to vector<8x16x8xf32>
    %64 = arith.addf %62, %63 : vector<8x16x8xf32>
    %c0_55 = arith.constant 0 : index
    %c1_56 = arith.constant 1 : index
    %c0_57 = arith.constant 0 : index
    %65 = vector.load %arg14[%c0_55, %c1_56, %c0_57] : memref<10x18x8xf32, #tpu.memory_space<vmem>>, vector<8x16x8xf32>
    %66 = vector.extract_strided_slice %56 {offsets = [0, 1, 0], sizes = [1, 1, 8], strides = [1, 1, 1]} : vector<3x3x8xf32> to vector<1x1x8xf32>
    %67 = vector.broadcast %66 : vector<1x1x8xf32> to vector<8x16x8xf32>
    %68 = arith.mulf %65, %67 : vector<8x16x8xf32>
    %69 = arith.addf %64, %68 : vector<8x16x8xf32>
    %c0_58 = arith.constant 0 : index
    %c2_59 = arith.constant 2 : index
    %c0_60 = arith.constant 0 : index
    %70 = vector.load %arg14[%c0_58, %c2_59, %c0_60] : memref<10x18x8xf32, #tpu.memory_space<vmem>>, vector<8x16x8xf32>
    %71 = vector.extract_strided_slice %56 {offsets = [0, 2, 0], sizes = [1, 1, 8], strides = [1, 1, 1]} : vector<3x3x8xf32> to vector<1x1x8xf32>
    %72 = vector.broadcast %71 : vector<1x1x8xf32> to vector<8x16x8xf32>
    %73 = arith.mulf %70, %72 : vector<8x16x8xf32>
    %74 = arith.addf %69, %73 : vector<8x16x8xf32>
    %c1_61 = arith.constant 1 : index
    %c0_62 = arith.constant 0 : index
    %c0_63 = arith.constant 0 : index
    %75 = vector.load %arg14[%c1_61, %c0_62, %c0_63] : memref<10x18x8xf32, #tpu.memory_space<vmem>>, vector<8x16x8xf32>
    %76 = vector.extract_strided_slice %56 {offsets = [1, 0, 0], sizes = [1, 1, 8], strides = [1, 1, 1]} : vector<3x3x8xf32> to vector<1x1x8xf32>
    %77 = vector.broadcast %76 : vector<1x1x8xf32> to vector<8x16x8xf32>
    %78 = arith.mulf %75, %77 : vector<8x16x8xf32>
    %79 = arith.addf %74, %78 : vector<8x16x8xf32>
    %c1_64 = arith.constant 1 : index
    %c1_65 = arith.constant 1 : index
    %c0_66 = arith.constant 0 : index
    %80 = vector.load %arg14[%c1_64, %c1_65, %c0_66] : memref<10x18x8xf32, #tpu.memory_space<vmem>>, vector<8x16x8xf32>
    %81 = vector.extract_strided_slice %56 {offsets = [1, 1, 0], sizes = [1, 1, 8], strides = [1, 1, 1]} : vector<3x3x8xf32> to vector<1x1x8xf32>
    %82 = vector.broadcast %81 : vector<1x1x8xf32> to vector<8x16x8xf32>
    %83 = arith.mulf %80, %82 : vector<8x16x8xf32>
    %84 = arith.addf %79, %83 : vector<8x16x8xf32>
    %c1_67 = arith.constant 1 : index
    %c2_68 = arith.constant 2 : index
    %c0_69 = arith.constant 0 : index
    %85 = vector.load %arg14[%c1_67, %c2_68, %c0_69] : memref<10x18x8xf32, #tpu.memory_space<vmem>>, vector<8x16x8xf32>
    %86 = vector.extract_strided_slice %56 {offsets = [1, 2, 0], sizes = [1, 1, 8], strides = [1, 1, 1]} : vector<3x3x8xf32> to vector<1x1x8xf32>
    %87 = vector.broadcast %86 : vector<1x1x8xf32> to vector<8x16x8xf32>
    %88 = arith.mulf %85, %87 : vector<8x16x8xf32>
    %89 = arith.addf %84, %88 : vector<8x16x8xf32>
    %c2_70 = arith.constant 2 : index
    %c0_71 = arith.constant 0 : index
    %c0_72 = arith.constant 0 : index
    %90 = vector.load %arg14[%c2_70, %c0_71, %c0_72] : memref<10x18x8xf32, #tpu.memory_space<vmem>>, vector<8x16x8xf32>
    %91 = vector.extract_strided_slice %56 {offsets = [2, 0, 0], sizes = [1, 1, 8], strides = [1, 1, 1]} : vector<3x3x8xf32> to vector<1x1x8xf32>
    %92 = vector.broadcast %91 : vector<1x1x8xf32> to vector<8x16x8xf32>
    %93 = arith.mulf %90, %92 : vector<8x16x8xf32>
    %94 = arith.addf %89, %93 : vector<8x16x8xf32>
    %c2_73 = arith.constant 2 : index
    %c1_74 = arith.constant 1 : index
    %c0_75 = arith.constant 0 : index
    %95 = vector.load %arg14[%c2_73, %c1_74, %c0_75] : memref<10x18x8xf32, #tpu.memory_space<vmem>>, vector<8x16x8xf32>
    %96 = vector.extract_strided_slice %56 {offsets = [2, 1, 0], sizes = [1, 1, 8], strides = [1, 1, 1]} : vector<3x3x8xf32> to vector<1x1x8xf32>
    %97 = vector.broadcast %96 : vector<1x1x8xf32> to vector<8x16x8xf32>
    %98 = arith.mulf %95, %97 : vector<8x16x8xf32>
    %99 = arith.addf %94, %98 : vector<8x16x8xf32>
    %c2_76 = arith.constant 2 : index
    %c2_77 = arith.constant 2 : index
    %c0_78 = arith.constant 0 : index
    %100 = vector.load %arg14[%c2_76, %c2_77, %c0_78] : memref<10x18x8xf32, #tpu.memory_space<vmem>>, vector<8x16x8xf32>
    %101 = vector.extract_strided_slice %56 {offsets = [2, 2, 0], sizes = [1, 1, 8], strides = [1, 1, 1]} : vector<3x3x8xf32> to vector<1x1x8xf32>
    %102 = vector.broadcast %101 : vector<1x1x8xf32> to vector<8x16x8xf32>
    %103 = arith.mulf %100, %102 : vector<8x16x8xf32>
    %104 = arith.addf %99, %103 : vector<8x16x8xf32>
    %105 = arith.truncf %104 : vector<8x16x8xf32> to vector<8x16x8xbf16>
    %c0_79 = arith.constant 0 : index
    %c0_80 = arith.constant 0 : index
    %c0_81 = arith.constant 0 : index
    %c0_82 = arith.constant 0 : index
    %106 = vector.load %arg11[%c0_79, %c0_80, %c0_81, %c0_82] : memref<1x8x16x8xbf16, #tpu.memory_space<vmem>>, vector<1x8x16x8xbf16>
    %107 = vector.shape_cast %106 : vector<1x8x16x8xbf16> to vector<8x16x8xbf16>
    %108 = vector.shape_cast %105 : vector<8x16x8xbf16> to vector<1x8x16x8xbf16>
    tpu.vector_store %arg11[%c0_79, %c0_80, %c0_81, %c0_82], %108 {strides = array<i32>} : memref<1x8x16x8xbf16, #tpu.memory_space<vmem>>, vector<1x8x16x8xbf16>,
    %109 = arith.extf %105 : vector<8x16x8xbf16> to vector<8x16x8xf32>
    %110 = vector.shape_cast %109 : vector<8x16x8xf32> to vector<128x8xf32>
    %cst_83 = arith.constant dense<0.000000e+00> : vector<8xf32>
    %111 = vector.multi_reduction <add>, %110, %cst_83 [0] : vector<128x8xf32> to vector<8xf32>
    %112 = vector.shape_cast %111 : vector<8xf32> to vector<1x1x1x8xf32>
    %113 = arith.mulf %110, %110 : vector<128x8xf32>
    %cst_84 = arith.constant dense<0.000000e+00> : vector<8xf32>
    %114 = vector.multi_reduction <add>, %113, %cst_84 [0] : vector<128x8xf32> to vector<8xf32>
    %115 = vector.shape_cast %114 : vector<8xf32> to vector<1x1x1x8xf32>
    %c0_i32 = arith.constant 0 : i32
    %116 = arith.cmpi eq, %arg2, %c0_i32 : i32
    %117 = arith.extui %116 : i1 to i32
    %c0_i32_85 = arith.constant 0 : i32
    %118 = arith.cmpi ne, %117, %c0_i32_85 : i32
    scf.if %118 {
      %c0_88 = arith.constant 0 : index
      %c0_89 = arith.constant 0 : index
      %c0_90 = arith.constant 0 : index
      %c0_91 = arith.constant 0 : index
      %122 = vector.load %arg12[%c0_88, %c0_89, %c0_90, %c0_91] : memref<1x1x1x8xf32, #tpu.memory_space<vmem>>, vector<1x1x1x8xf32>
      tpu.vector_store %arg12[%c0_88, %c0_89, %c0_90, %c0_91], %112 {strides = array<i32>} : memref<1x1x1x8xf32, #tpu.memory_space<vmem>>, vector<1x1x1x8xf32>,
      %c0_92 = arith.constant 0 : index
      %c0_93 = arith.constant 0 : index
      %c0_94 = arith.constant 0 : index
      %c0_95 = arith.constant 0 : index
      %123 = vector.load %arg13[%c0_92, %c0_93, %c0_94, %c0_95] : memref<1x1x1x8xf32, #tpu.memory_space<vmem>>, vector<1x1x1x8xf32>
      tpu.vector_store %arg13[%c0_92, %c0_93, %c0_94, %c0_95], %115 {strides = array<i32>} : memref<1x1x1x8xf32, #tpu.memory_space<vmem>>, vector<1x1x1x8xf32>,
    } else {
    }
    %c0_i32_86 = arith.constant 0 : i32
    %119 = arith.cmpi ne, %arg2, %c0_i32_86 : i32
    %120 = arith.extui %119 : i1 to i32
    %c0_i32_87 = arith.constant 0 : i32
    %121 = arith.cmpi ne, %120, %c0_i32_87 : i32
    scf.if %121 {
      %c0_88 = arith.constant 0 : index
      %c0_89 = arith.constant 0 : index
      %c0_90 = arith.constant 0 : index
      %c0_91 = arith.constant 0 : index
      %122 = vector.load %arg12[%c0_88, %c0_89, %c0_90, %c0_91] : memref<1x1x1x8xf32, #tpu.memory_space<vmem>>, vector<1x1x1x8xf32>
      %123 = arith.addf %122, %112 : vector<1x1x1x8xf32>
      %c0_92 = arith.constant 0 : index
      %c0_93 = arith.constant 0 : index
      %c0_94 = arith.constant 0 : index
      %c0_95 = arith.constant 0 : index
      %124 = vector.load %arg12[%c0_92, %c0_93, %c0_94, %c0_95] : memref<1x1x1x8xf32, #tpu.memory_space<vmem>>, vector<1x1x1x8xf32>
      tpu.vector_store %arg12[%c0_92, %c0_93, %c0_94, %c0_95], %123 {strides = array<i32>} : memref<1x1x1x8xf32, #tpu.memory_space<vmem>>, vector<1x1x1x8xf32>,
      %c0_96 = arith.constant 0 : index
      %c0_97 = arith.constant 0 : index
      %c0_98 = arith.constant 0 : index
      %c0_99 = arith.constant 0 : index
      %125 = vector.load %arg13[%c0_96, %c0_97, %c0_98, %c0_99] : memref<1x1x1x8xf32, #tpu.memory_space<vmem>>, vector<1x1x1x8xf32>
      %126 = arith.addf %125, %115 : vector<1x1x1x8xf32>
      %c0_100 = arith.constant 0 : index
      %c0_101 = arith.constant 0 : index
      %c0_102 = arith.constant 0 : index
      %c0_103 = arith.constant 0 : index
      %127 = vector.load %arg13[%c0_100, %c0_101, %c0_102, %c0_103] : memref<1x1x1x8xf32, #tpu.memory_space<vmem>>, vector<1x1x1x8xf32>
      tpu.vector_store %arg13[%c0_100, %c0_101, %c0_102, %c0_103], %126 {strides = array<i32>} : memref<1x1x1x8xf32, #tpu.memory_space<vmem>>, vector<1x1x1x8xf32>,
    } else {
    }
    return
  }
  func.func @transform_0(%arg0: i32, %arg1: i32, %arg2: i32) -> (i32, i32, i32, i32) {
    %c2_i32 = arith.constant 2 : i32
    %0 = arith.muli %arg0, %c2_i32 : i32
    %1 = arith.addi %0, %arg2 : i32
    %c0_i32 = arith.constant 0 : i32
    %2 = arith.cmpi eq, %1, %c0_i32 : i32
    %c8_i32 = arith.constant 8 : i32
    %3 = arith.muli %1, %c8_i32 : i32
    %c1_i32 = arith.constant 1 : i32
    %4 = arith.subi %3, %c1_i32 : i32
    %c1_i32_0 = arith.constant 1 : i32
    %5 = arith.select %2, %c1_i32_0, %4 : i32
    %c0_i32_1 = arith.constant 0 : i32
    %c0_i32_2 = arith.constant 0 : i32
    %c0_i32_3 = arith.constant 0 : i32
    return %arg1, %5, %c0_i32_1, %c0_i32_2 : i32, i32, i32, i32
  }
  func.func @transform_1(%arg0: i32, %arg1: i32, %arg2: i32) -> (i32, i32, i32, i32) {
    %c2_i32 = arith.constant 2 : i32
    %0 = arith.muli %arg0, %c2_i32 : i32
    %1 = arith.addi %0, %arg2 : i32
    %c0_i32 = arith.constant 0 : i32
    %c0_i32_0 = arith.constant 0 : i32
    %c0_i32_1 = arith.constant 0 : i32
    return %arg1, %1, %c0_i32, %c0_i32_0 : i32, i32, i32, i32
  }
  func.func @transform_2(%arg0: i32, %arg1: i32, %arg2: i32) -> (i32, i32, i32, i32) {
    %c2_i32 = arith.constant 2 : i32
    %0 = arith.muli %arg0, %c2_i32 : i32
    %1 = arith.addi %0, %arg2 : i32
    %c1_i32 = arith.constant 1 : i32
    %2 = arith.cmpi eq, %1, %c1_i32 : i32
    %c1_i32_0 = arith.constant 1 : i32
    %3 = arith.addi %1, %c1_i32_0 : i32
    %c8_i32 = arith.constant 8 : i32
    %4 = arith.muli %3, %c8_i32 : i32
    %c14_i32 = arith.constant 14 : i32
    %5 = arith.select %2, %c14_i32, %4 : i32
    %c0_i32 = arith.constant 0 : i32
    %c0_i32_1 = arith.constant 0 : i32
    %c0_i32_2 = arith.constant 0 : i32
    return %arg1, %5, %c0_i32, %c0_i32_1 : i32, i32, i32, i32
  }
  func.func @transform_3(%arg0: i32, %arg1: i32, %arg2: i32) -> (i32, i32) {
    %c0_i32 = arith.constant 0 : i32
    %c0_i32_0 = arith.constant 0 : i32
    %c0_i32_1 = arith.constant 0 : i32
    return %c0_i32, %c0_i32_0 : i32, i32
  }
  func.func @transform_4(%arg0: i32, %arg1: i32, %arg2: i32) -> (i32, i32, i32) {
    %c0_i32 = arith.constant 0 : i32
    %c0_i32_0 = arith.constant 0 : i32
    %c0_i32_1 = arith.constant 0 : i32
    return %arg1, %c0_i32, %c0_i32_0 : i32, i32, i32
  }
  func.func @transform_5(%arg0: i32, %arg1: i32, %arg2: i32) -> (i32, i32, i32) {
    %c0_i32 = arith.constant 0 : i32
    %c0_i32_0 = arith.constant 0 : i32
    %c0_i32_1 = arith.constant 0 : i32
    return %arg1, %c0_i32, %c0_i32_0 : i32, i32, i32
  }
  func.func @transform_6(%arg0: i32, %arg1: i32, %arg2: i32) -> (i32, i32, i32) {
    %c0_i32 = arith.constant 0 : i32
    %c0_i32_0 = arith.constant 0 : i32
    %c0_i32_1 = arith.constant 0 : i32
    %c0_i32_2 = arith.constant 0 : i32
    return %c0_i32, %c0_i32_0, %c0_i32_1 : i32, i32, i32
  }
  func.func @transform_7(%arg0: i32, %arg1: i32, %arg2: i32) -> (i32, i32) {
    %c0_i32 = arith.constant 0 : i32
    %c0_i32_0 = arith.constant 0 : i32
    %c0_i32_1 = arith.constant 0 : i32
    return %c0_i32, %c0_i32_0 : i32, i32
  }
  func.func @transform_8(%arg0: i32, %arg1: i32, %arg2: i32) -> (i32, i32, i32, i32) {
    %c2_i32 = arith.constant 2 : i32
    %0 = arith.muli %arg0, %c2_i32 : i32
    %1 = arith.addi %0, %arg2 : i32
    %c0_i32 = arith.constant 0 : i32
    %c0_i32_0 = arith.constant 0 : i32
    %c0_i32_1 = arith.constant 0 : i32
    return %arg1, %1, %c0_i32, %c0_i32_0 : i32, i32, i32, i32
  }
  func.func @transform_9(%arg0: i32, %arg1: i32, %arg2: i32) -> (i32, i32, i32, i32) {
    %c0_i32 = arith.constant 0 : i32
    %c0_i32_0 = arith.constant 0 : i32
    %c0_i32_1 = arith.constant 0 : i32
    return %arg0, %arg1, %c0_i32, %c0_i32_0 : i32, i32, i32, i32
  }
  func.func @transform_10(%arg0: i32, %arg1: i32, %arg2: i32) -> (i32, i32, i32, i32) {
    %c0_i32 = arith.constant 0 : i32
    %c0_i32_0 = arith.constant 0 : i32
    %c0_i32_1 = arith.constant 0 : i32
    return %arg0, %arg1, %c0_i32, %c0_i32_0 : i32, i32, i32, i32
  }
}

module attributes {stable_mosaic.version = 11 : i64} {
  func.func @_finalize_kernel(%arg0: i32, %arg1: i32, %arg2: memref<1x8x16x4xbf16, #tpu.memory_space<vmem>>, %arg3: memref<1x1x4xf32, #tpu.memory_space<vmem>>, %arg4: memref<1x1x4xf32, #tpu.memory_space<vmem>>, %arg5: memref<1x8x16x4xbf16, #tpu.memory_space<vmem>>, %arg6: memref<1x8x16x4xf32, #tpu.memory_space<vmem>>) attributes {dimension_semantics = [#tpu.dimension_semantics<parallel>, #tpu.dimension_semantics<parallel>], iteration_bounds = array<i64: 2, 2>, scalar_prefetch = 0 : i64, scratch_operands = 0 : i64, tpu.core_type = #tpu.core_type<tc>, window_params = [{transform_indices = @transform_0, window_bounds = array<i64: 1, 8, 16, 4>}, {transform_indices = @transform_1, window_bounds = array<i64: 1, 1, 4>}, {transform_indices = @transform_2, window_bounds = array<i64: 1, 1, 4>}, {transform_indices = @transform_3, window_bounds = array<i64: 1, 8, 16, 4>}, {transform_indices = @transform_4, window_bounds = array<i64: 1, 8, 16, 4>}]} {
    %c0 = arith.constant 0 : index
    %c0_0 = arith.constant 0 : index
    %c0_1 = arith.constant 0 : index
    %c0_2 = arith.constant 0 : index
    %0 = vector.load %arg2[%c0, %c0_0, %c0_1, %c0_2] : memref<1x8x16x4xbf16, #tpu.memory_space<vmem>>, vector<1x8x16x4xbf16>
    %1 = vector.shape_cast %0 : vector<1x8x16x4xbf16> to vector<8x16x4xbf16>
    %2 = vector.shape_cast %1 : vector<8x16x4xbf16> to vector<128x4xbf16>
    %3 = arith.extf %2 : vector<128x4xbf16> to vector<128x4xf32>
    %c0_3 = arith.constant 0 : index
    %c0_4 = arith.constant 0 : index
    %c0_5 = arith.constant 0 : index
    %4 = vector.load %arg3[%c0_3, %c0_4, %c0_5] : memref<1x1x4xf32, #tpu.memory_space<vmem>>, vector<1x1x4xf32>
    %5 = vector.shape_cast %4 : vector<1x1x4xf32> to vector<1x4xf32>
    %6 = vector.broadcast %5 : vector<1x4xf32> to vector<128x4xf32>
    %7 = arith.mulf %3, %6 : vector<128x4xf32>
    %c0_6 = arith.constant 0 : index
    %c0_7 = arith.constant 0 : index
    %c0_8 = arith.constant 0 : index
    %8 = vector.load %arg4[%c0_6, %c0_7, %c0_8] : memref<1x1x4xf32, #tpu.memory_space<vmem>>, vector<1x1x4xf32>
    %9 = vector.shape_cast %8 : vector<1x1x4xf32> to vector<1x4xf32>
    %10 = vector.broadcast %9 : vector<1x4xf32> to vector<128x4xf32>
    %11 = arith.addf %7, %10 : vector<128x4xf32>
    %c0_9 = arith.constant 0 : index
    %c0_10 = arith.constant 0 : index
    %c0_11 = arith.constant 0 : index
    %c0_12 = arith.constant 0 : index
    %12 = vector.load %arg5[%c0_9, %c0_10, %c0_11, %c0_12] : memref<1x8x16x4xbf16, #tpu.memory_space<vmem>>, vector<1x8x16x4xbf16>
    %13 = vector.shape_cast %12 : vector<1x8x16x4xbf16> to vector<8x16x4xbf16>
    %14 = vector.shape_cast %13 : vector<8x16x4xbf16> to vector<128x4xbf16>
    %15 = arith.extf %14 : vector<128x4xbf16> to vector<128x4xf32>
    %16 = arith.addf %11, %15 : vector<128x4xf32>
    %17 = vector.shape_cast %16 : vector<128x4xf32> to vector<8x16x4xf32>
    %c0_13 = arith.constant 0 : index
    %c0_14 = arith.constant 0 : index
    %c0_15 = arith.constant 0 : index
    %c0_16 = arith.constant 0 : index
    %18 = vector.load %arg6[%c0_13, %c0_14, %c0_15, %c0_16] : memref<1x8x16x4xf32, #tpu.memory_space<vmem>>, vector<1x8x16x4xf32>
    %19 = vector.shape_cast %18 : vector<1x8x16x4xf32> to vector<8x16x4xf32>
    %20 = vector.shape_cast %17 : vector<8x16x4xf32> to vector<1x8x16x4xf32>
    tpu.vector_store %arg6[%c0_13, %c0_14, %c0_15, %c0_16], %20 {strides = array<i32>} : memref<1x8x16x4xf32, #tpu.memory_space<vmem>>, vector<1x8x16x4xf32>,
    return
  }
  func.func @transform_0(%arg0: i32, %arg1: i32) -> (i32, i32, i32, i32) {
    %c0_i32 = arith.constant 0 : i32
    %c0_i32_0 = arith.constant 0 : i32
    %c0_i32_1 = arith.constant 0 : i32
    return %arg0, %arg1, %c0_i32, %c0_i32_0 : i32, i32, i32, i32
  }
  func.func @transform_1(%arg0: i32, %arg1: i32) -> (i32, i32, i32) {
    %c0_i32 = arith.constant 0 : i32
    %c0_i32_0 = arith.constant 0 : i32
    %c0_i32_1 = arith.constant 0 : i32
    return %arg0, %c0_i32, %c0_i32_0 : i32, i32, i32
  }
  func.func @transform_2(%arg0: i32, %arg1: i32) -> (i32, i32, i32) {
    %c0_i32 = arith.constant 0 : i32
    %c0_i32_0 = arith.constant 0 : i32
    %c0_i32_1 = arith.constant 0 : i32
    return %arg0, %c0_i32, %c0_i32_0 : i32, i32, i32
  }
  func.func @transform_3(%arg0: i32, %arg1: i32) -> (i32, i32, i32, i32) {
    %c0_i32 = arith.constant 0 : i32
    %c0_i32_0 = arith.constant 0 : i32
    %c0_i32_1 = arith.constant 0 : i32
    return %arg0, %arg1, %c0_i32, %c0_i32_0 : i32, i32, i32, i32
  }
  func.func @transform_4(%arg0: i32, %arg1: i32) -> (i32, i32, i32, i32) {
    %c0_i32 = arith.constant 0 : i32
    %c0_i32_0 = arith.constant 0 : i32
    %c0_i32_1 = arith.constant 0 : i32
    return %arg0, %arg1, %c0_i32, %c0_i32_0 : i32, i32, i32, i32
  }
}

</mosaic_0001>

<llo_original>
// kernel: inverted_res_block_nhwc.4
$region0: #{inverted_res_block_nhwc.4}
  #allocation0 [shape = 'u32[]', space=smem, size = 0x4, offset = 0x4, fixed_abs, tag = 'smem constant byte address 0x4 - core index']
  #allocation1 [shape = 'u32[144,128]{1,0:T(1,128)}', space=vmem, size = 0x12000, scoped, tag = 'internal scratch']
  %s0 = inlined_call_operand.hbm [shape: f32[2,16,16,4], index: 0, kind: input, shape index: {}]
  %s1 = inlined_call_operand.hbm [shape: bf16[4,8], index: 1, kind: input, shape index: {}]
  %s2 = inlined_call_operand.hbm [shape: bf16[2,16,16,4], index: 2, kind: output, shape index: {0}]
  %s3 = inlined_call_operand.hbm [shape: f32[1,2,1,8], index: 3, kind: output, shape index: {1}]
  %s4 = inlined_call_operand.hbm [shape: f32[1,2,1,8], index: 4, kind: output, shape index: {2}]
  %5 = xla_tuple %s2, %s3, %s4
  %s6 = sld [smem:[#allocation0]]
  $region73: #{inverted_res_block_nhwc.4} parent=0
    _
  %s8 = ssub.s32 1, %s6
  %s9 = scalar_select 0, %s8, %s6
  $region1: #{inverted_res_block_nhwc.4} parent=0
    #allocation2 [shape = 'u8[131072]{0}', space=vmem, size = 0x20000, scoped, tag = 'input window, operand 0']
    #allocation3 [shape = 's32[2]{0}', space=sflag, size = 0x8, scoped, tag = 'scoped memory for inverted_res_block_nhwc.4']
    #allocation4 [shape = 's32[2]{0}', space=sflag, size = 0x8, scoped, tag = 'scoped memory for inverted_res_block_nhwc.4']
    #allocation5 [shape = 'u8[1024]{0}', space=vmem, size = 0x400, scoped, tag = 'input window, operand 1, single buffered']
    #allocation6 [shape = 's32[1]{0}', space=sflag, size = 0x4, scoped, tag = 'scoped memory for inverted_res_block_nhwc.4']
    #allocation7 [shape = 'u8[65536]{0}', space=vmem, size = 0x10000, scoped, tag = 'output window, operand 0']
    #allocation8 [shape = 'u8[1024]{0}', space=vmem, size = 0x400, scoped, tag = 'output window, operand 1']
    #allocation9 [shape = 's32[2]{0}', space=sflag, size = 0x8, scoped, tag = 'scoped memory for inverted_res_block_nhwc.4']
    #allocation10 [shape = 'u8[1024]{0}', space=vmem, size = 0x400, scoped, tag = 'output window, operand 2']
    %10 = vsyncpa [#allocation3], 0
    %s11 = scalar_lea.sflag [#allocation3], 1
    %12 = vsyncpa %s11, 0
    %13 = vsyncpa [#allocation6], 0
    %14 = vsyncpa [#allocation4], 0
    %s15 = scalar_lea.sflag [#allocation4], 1
    %16 = vsyncpa %s15, 0
    %17 = vsyncpa [#allocation9], 0
    %s18 = scalar_lea.sflag [#allocation9], 1
    %19 = vsyncpa %s18, 0
    loop: start=0, step=1, limit=6
    $region2: #{inverted_res_block_nhwc.4} parent=1 // loop_pre_header
      _
    $region3: #{inverted_res_block_nhwc.4} parent=1 // loop_header
      %s21 = sphi 0, %s25
      %p22 = scmp.ge.s32.totalorder %s21, 6
      %s28 = sphi 0, %s47
      %s29 = sphi 0, %s43
      %s30 = sphi 0, %s39
      %s31 = sphi 0, %s28
      %s32 = sphi 0, %s29
      %s33 = sphi 0, %s30
      %s34 = sphi 0, %s31
      %s35 = sphi 0, %s32
      %s36 = sphi 0, %s33
      %s56 = sphi 0, %s58
      %s59 = sphi 0, %s56
      %s60 = sphi 0, %s59
      %s76 = sphi 0, %s60
      %s80 = sphi 0, %s80
      %s82 = sphi 0, %s80
      %s83 = sphi 0, %s82
      %s97 = sphi 0, %s83
      %s109 = sphi 0, %s111
      %s112 = sphi 0, %s109
      %s113 = sphi 0, %s112
      %s129 = sphi 0, %s113
      %s137 = sphi 0, %s139
      %s140 = sphi 0, %s137
      %s141 = sphi 0, %s140
      %s157 = sphi 0, %s141
      %s165 = sphi 0, %s167
      %s168 = sphi 0, %s165
      %s169 = sphi 0, %s168
      %s185 = sphi 0, %s169
    $region4: #{inverted_res_block_nhwc.4} parent=1 // loop_header_branch
      %24 = sbr.rel (%p22) target = $region8
    $region5: #{inverted_res_block_nhwc.4} parent=1 // loop_body
      %s26 = ssub.s32 %s21, 1
      %s27 = ssub.s32 %s21, 2
      %s37 = sadd.s32 1, %s30
      %p38 = scmp.ge.s32.totalorder %s37, 2
      %s39 = scalar_select %p38, 0, %s37
      %s40 = sadd.s32 1, %s29
      %s41 = scalar_select %p38, %s40, %s29
      %p42 = scmp.ge.s32.totalorder %s41, 2
      %s43 = scalar_select %p42, 0, %s41
      %s44 = sadd.s32 1, %s28
      %s45 = scalar_select %p42, %s44, %s28
      %p46 = scmp.ge.s32.totalorder %s45, 1
      %s47 = scalar_select %p46, 0, %s45
      %s48 = smul.u32 %s28, 2
      %s49 = sadd.s32 %s48, %s30
      %s50 = smul.u32 %s47, 2
      %s51 = sadd.s32 %s50, %s39
      %s52 = ssub.s32 %s29, %s43
      %s53 = ssub.s32 %s49, %s51
      %s54 = sor.u32 %s52, %s53
      %p55 = scmp.eq.s32.totalorder %s54, 0
      %s57 = sadd.s32 %s56, 1
      %s58 = scalar_select %p55, %s56, %s57
      %p61 = pneg %p55
      %p62 = scmp.eq.s32.totalorder %s21, 3
      %p63 = por %p61, %p62
      %p64 = scmp.ne.s32.totalorder %s56, %s59
      %p65 = scmp.eq.s32.totalorder %s21, 0
      %p66 = por %p64, %p65
      %p67 = scmp.ne.s32.totalorder %s56, %s59
      %p68 = scmp.eq.s32.totalorder %s26, 3
      %p69 = por %p67, %p68
      %p70 = scmp.ne.s32.totalorder %s59, %s60
      %p71 = scmp.eq.s32.totalorder %s26, 0
      %p72 = por %p70, %p71
      %p73 = scmp.ne.s32.totalorder %s59, %s60
      %p74 = scmp.eq.s32.totalorder %s27, 3
      %p75 = por %p73, %p74
      %p77 = scmp.ne.s32.totalorder %s60, %s76
      %p78 = scmp.eq.s32.totalorder %s27, 0
      %p79 = por %p77, %p78
      %s81 = sadd.s32 %s80, 1
      %p84 = scmp.eq.s32.totalorder %s21, 3
      %p85 = scmp.ne.s32.totalorder %s80, %s82
      %p86 = scmp.eq.s32.totalorder %s21, 0
      %p87 = por %p85, %p86
      %p88 = scmp.ne.s32.totalorder %s80, %s82
      %p89 = scmp.eq.s32.totalorder %s26, 3
      %p90 = por %p88, %p89
      %p91 = scmp.ne.s32.totalorder %s82, %s83
      %p92 = scmp.eq.s32.totalorder %s26, 0
      %p93 = por %p91, %p92
      %p94 = scmp.ne.s32.totalorder %s82, %s83
      %p95 = scmp.eq.s32.totalorder %s27, 3
      %p96 = por %p94, %p95
      %p98 = scmp.ne.s32.totalorder %s83, %s97
      %p99 = scmp.eq.s32.totalorder %s27, 0
      %p100 = por %p98, %p99
      %s101 = smul.u32 %s28, 2
      %s102 = sadd.s32 %s101, %s30
      %s103 = smul.u32 %s47, 2
      %s104 = sadd.s32 %s103, %s39
      %s105 = ssub.s32 %s29, %s43
      %s106 = ssub.s32 %s102, %s104
      %s107 = sor.u32 %s105, %s106
      %p108 = scmp.eq.s32.totalorder %s107, 0
      %s110 = sadd.s32 %s109, 1
      %s111 = scalar_select %p108, %s109, %s110
      %p114 = pneg %p108
      %p115 = scmp.eq.s32.totalorder %s21, 3
      %p116 = por %p114, %p115
      %p117 = scmp.ne.s32.totalorder %s109, %s112
      %p118 = scmp.eq.s32.totalorder %s21, 0
      %p119 = por %p117, %p118
      %p120 = scmp.ne.s32.totalorder %s109, %s112
      %p121 = scmp.eq.s32.totalorder %s26, 3
      %p122 = por %p120, %p121
      %p123 = scmp.ne.s32.totalorder %s112, %s113
      %p124 = scmp.eq.s32.totalorder %s26, 0
      %p125 = por %p123, %p124
      %p126 = scmp.ne.s32.totalorder %s112, %s113
      %p127 = scmp.eq.s32.totalorder %s27, 3
      %p128 = por %p126, %p127
      %p130 = scmp.ne.s32.totalorder %s113, %s129
      %p131 = scmp.eq.s32.totalorder %s27, 0
      %p132 = por %p130, %p131
      %s133 = ssub.s32 %s28, %s47
      %s134 = ssub.s32 %s29, %s43
      %s135 = sor.u32 %s133, %s134
      %p136 = scmp.eq.s32.totalorder %s135, 0
      %s138 = sadd.s32 %s137, 1
      %s139 = scalar_select %p136, %s137, %s138
      %p142 = pneg %p136
      %p143 = scmp.eq.s32.totalorder %s21, 3
      %p144 = por %p142, %p143
      %p145 = scmp.ne.s32.totalorder %s137, %s140
      %p146 = scmp.eq.s32.totalorder %s21, 0
      %p147 = por %p145, %p146
      %p148 = scmp.ne.s32.totalorder %s137, %s140
      %p149 = scmp.eq.s32.totalorder %s26, 3
      %p150 = por %p148, %p149
      %p151 = scmp.ne.s32.totalorder %s140, %s141
      %p152 = scmp.eq.s32.totalorder %s26, 0
      %p153 = por %p151, %p152
      %p154 = scmp.ne.s32.totalorder %s140, %s141
      %p155 = scmp.eq.s32.totalorder %s27, 3
      %p156 = por %p154, %p155
      %p158 = scmp.ne.s32.totalorder %s141, %s157
      %p159 = scmp.eq.s32.totalorder %s27, 0
      %p160 = por %p158, %p159
      %s161 = ssub.s32 %s28, %s47
      %s162 = ssub.s32 %s29, %s43
      %s163 = sor.u32 %s161, %s162
      %p164 = scmp.eq.s32.totalorder %s163, 0
      %s166 = sadd.s32 %s165, 1
      %s167 = scalar_select %p164, %s165, %s166
      %p170 = pneg %p164
      %p171 = scmp.eq.s32.totalorder %s21, 3
      %p172 = por %p170, %p171
      %p173 = scmp.ne.s32.totalorder %s165, %s168
      %p174 = scmp.eq.s32.totalorder %s21, 0
      %p175 = por %p173, %p174
      %p176 = scmp.ne.s32.totalorder %s165, %s168
      %p177 = scmp.eq.s32.totalorder %s26, 3
      %p178 = por %p176, %p177
      %p179 = scmp.ne.s32.totalorder %s168, %s169
      %p180 = scmp.eq.s32.totalorder %s26, 0
      %p181 = por %p179, %p180
      %p182 = scmp.ne.s32.totalorder %s168, %s169
      %p183 = scmp.eq.s32.totalorder %s27, 3
      %p184 = por %p182, %p183
      %p186 = scmp.ne.s32.totalorder %s169, %s185
      %p187 = scmp.eq.s32.totalorder %s27, 0
      %p188 = por %p186, %p187
      %p189 = scmp.le.s32.totalorder 1, %s21
      %p190 = scmp.lt.s32.totalorder %s21, 5
      %p191 = pnand %p189, %p190
      %p192 = pneg %p191
      // Predicated region
      $region9: #{inverted_res_block_nhwc.4} parent=5 // pred_check
        _
      $region10: #{inverted_res_block_nhwc.4} parent=5 // pred_check_branch
        %194 = sbr.rel (%p191) target = $region12
      $region11: #{inverted_res_block_nhwc.4} parent=5 // pred_region
        %s195 = ssub.s32 %s21, 1
        // Predicated region
        $region13: #{inverted_res_block_nhwc.4} parent=11 // pred_check
          %p196 = pneg %p93
        $region14: #{inverted_res_block_nhwc.4} parent=11 // pred_check_branch
          %198 = sbr.rel (%p196) target = $region16
        $region15: #{inverted_res_block_nhwc.4} parent=11 // pred_region
          %s200 = ssub.s32 32, 32
          %201 = vsyncadd [#allocation6], %s200
          %s203 = sshll.u32 [#allocation5], 4
          %s204 = int_to_ptr.vmem [resolvable:$true] %s203
          %206 = dma.hbm_to_vmem [thread:$0]  %s1, 32, %s204, [#allocation6]
        $region16: #{inverted_res_block_nhwc.4} parent=11 // pred_fallthru
          _
      $region12: #{inverted_res_block_nhwc.4} parent=5 // pred_fallthru
        _
      %p207 = scmp.lt.s32.totalorder %s21, 4
      // Predicated region
      $region17: #{inverted_res_block_nhwc.4} parent=5 // pred_check
        %p208 = pneg %p207
      $region18: #{inverted_res_block_nhwc.4} parent=5 // pred_check_branch
        %210 = sbr.rel (%p208) target = $region20
      $region19: #{inverted_res_block_nhwc.4} parent=5 // pred_region
        // Predicated region
        $region21: #{inverted_res_block_nhwc.4} parent=19 // pred_check
          %p211 = pneg %p66
        $region22: #{inverted_res_block_nhwc.4} parent=19 // pred_check_branch
          %213 = sbr.rel (%p211) target = $region24
        $region23: #{inverted_res_block_nhwc.4} parent=19 // pred_region
          %s214 = sand.u32 %s56, 1
          %s215 = scalar_lea.sflag [#allocation3], %s214
          %s216 = sand.u32 %s56, 1
          %s217 = smul.addr %s216, 128
          %s218 = scalar_lea.vmem [#allocation2], %s217
          %s219 = smul.u32 %s28, 2
          %s220 = sadd.s32 %s219, %s30
          %s221 = smul.u32 8, %s220
          %s223 = ssub.s32 2048, 2048
          %224 = vsyncadd %s215, %s223
          %s225 = smul.addr %s221, 2
          %s226 = smul.addr %s29, 32
          %s227 = sadd.s32 %s225, %s226
          %s228 = smul.addr %s227, 128
          %s229 = scalar_lea.hbm %s0, %s228
          %s230 = sshll.u32 %s218, 4
          %s231 = int_to_ptr.vmem [resolvable:$true] %s230
          %236 = dma.hbm_to_vmem [thread:$0]  %s229, 2048, %s231, %s215, 128, 128, 8
        $region24: #{inverted_res_block_nhwc.4} parent=19 // pred_fallthru
          _
      $region20: #{inverted_res_block_nhwc.4} parent=5 // pred_fallthru
        _
      %p237 = scmp.le.s32.totalorder 1, %s21
      %p238 = scmp.lt.s32.totalorder %s21, 5
      %p239 = pnand %p237, %p238
      %p240 = pneg %p239
      // Predicated region
      $region25: #{inverted_res_block_nhwc.4} parent=5 // pred_check
        _
      $region26: #{inverted_res_block_nhwc.4} parent=5 // pred_check_branch
        %242 = sbr.rel (%p239) target = $region28
      $region27: #{inverted_res_block_nhwc.4} parent=5 // pred_region
        %s243 = ssub.s32 %s21, 1
        %s244 = sand.u32 %s59, 1
        %s245 = scalar_lea.sflag [#allocation3], %s244
        %s246 = sand.u32 %s59, 1
        %s247 = smul.addr %s246, 128
        %s248 = scalar_lea.vmem [#allocation2], %s247
        // Predicated region
        $region29: #{inverted_res_block_nhwc.4} parent=27 // pred_check
          %p249 = pneg %p72
        $region30: #{inverted_res_block_nhwc.4} parent=27 // pred_check_branch
          %251 = sbr.rel (%p249) target = $region32
        $region31: #{inverted_res_block_nhwc.4} parent=27 // pred_region
          %252 = dma.done %s245, 2048
        $region32: #{inverted_res_block_nhwc.4} parent=27 // pred_fallthru
          _
        // Predicated region
        $region33: #{inverted_res_block_nhwc.4} parent=27 // pred_check
          %p253 = pneg %p93
        $region34: #{inverted_res_block_nhwc.4} parent=27 // pred_check_branch
          %255 = sbr.rel (%p253) target = $region36
        $region35: #{inverted_res_block_nhwc.4} parent=27 // pred_region
          %256 = dma.done [#allocation6], 32
        $region36: #{inverted_res_block_nhwc.4} parent=27 // pred_fallthru
          _
        %s257 = sand.u32 %s59, 1
        %s258 = scalar_lea.sflag [#allocation3], %s257
        %s259 = sand.u32 %s59, 1
        %s260 = smul.addr %s259, 128
        %s261 = scalar_lea.vmem [#allocation2], %s260
        %p262 = pneg %p72
        %p263 = pneg %p69
        %p264 = pneg %p93
        %p265 = pneg %p90
        %p266 = pneg %p125
        %p267 = pneg %p122
        %s268 = sand.u32 %s112, 1
        %s269 = scalar_lea.sflag [#allocation4], %s268
        %s270 = sand.u32 %s112, 1
        %s271 = smul.addr %s270, 64
        %s272 = scalar_lea.vmem [#allocation7], %s271
        %p273 = pneg %p153
        %p274 = pneg %p150
        %s275 = sand.u32 %s26, 1
        %s276 = scalar_lea.sflag [#allocation9], %s275
        %s277 = sand.u32 %s140, 1
        %s278 = scalar_lea.vmem [#allocation8], %s277
        %p279 = pneg %p181
        %p280 = pneg %p178
        %s281 = sand.u32 %s26, 1
        %s282 = scalar_lea.sflag [#allocation9], %s281
        %s283 = sand.u32 %s168, 1
        %s284 = scalar_lea.vmem [#allocation10], %s283
        %s285 = smul.u32 %s31, 2
        %s286 = sadd.s32 %s285, %s33
        %s287 = smul.u32 8, %s286
        %s288 = smul.u32 %s31, 2
        %s289 = sadd.s32 %s288, %s33
        %s290 = smul.u32 8, %s289
        %v292 = vld [vmem:[%s248] sm:$0xff]
        %v293 = vld [vmem:[%s248 + $0x8] sm:$0xff]
        %v294 = vld [vmem:[%s248 + $0x10] sm:$0xff]
        %v295 = vld [vmem:[%s248 + $0x18] sm:$0xff]
        %v296 = vld [vmem:[%s248 + $0x20] sm:$0xff]
        %v297 = vld [vmem:[%s248 + $0x28] sm:$0xff]
        %v298 = vld [vmem:[%s248 + $0x30] sm:$0xff]
        %v299 = vld [vmem:[%s248 + $0x38] sm:$0xff]
        %v300 = vld [vmem:[%s248 + $0x40] sm:$0xff]
        %v301 = vld [vmem:[%s248 + $0x48] sm:$0xff]
        %v302 = vld [vmem:[%s248 + $0x50] sm:$0xff]
        %v303 = vld [vmem:[%s248 + $0x58] sm:$0xff]
        %v304 = vld [vmem:[%s248 + $0x60] sm:$0xff]
        %v305 = vld [vmem:[%s248 + $0x68] sm:$0xff]
        %v306 = vld [vmem:[%s248 + $0x70] sm:$0xff]
        %v307 = vld [vmem:[%s248 + $0x78] sm:$0xff]
        %v308 = vpack.c.bf16 %v293, %v292
        %v309 = vpack.c.bf16 %v295, %v294
        %v310 = vpack.c.bf16 %v297, %v296
        %v311 = vpack.c.bf16 %v299, %v298
        %v312 = vpack.c.bf16 %v301, %v300
        %v313 = vpack.c.bf16 %v303, %v302
        %v314 = vpack.c.bf16 %v305, %v304
        %v315 = vpack.c.bf16 %v307, %v306
        %v324 = vunpack.c.l.b16 %v308
        %v325 = vunpack.c.h.b16 %v308
        %v326 = vunpack.c.l.b16 %v309
        %v327 = vunpack.c.h.b16 %v309
        %v328 = vunpack.c.l.b16 %v310
        %v329 = vunpack.c.h.b16 %v310
        %v330 = vunpack.c.l.b16 %v311
        %v331 = vunpack.c.h.b16 %v311
        %v332 = vunpack.c.l.b16 %v312
        %v333 = vunpack.c.h.b16 %v312
        %v334 = vunpack.c.l.b16 %v313
        %v335 = vunpack.c.h.b16 %v313
        %v336 = vunpack.c.l.b16 %v314
        %v337 = vunpack.c.h.b16 %v314
        %v338 = vunpack.c.l.b16 %v315
        %v339 = vunpack.c.h.b16 %v315
        %v340 = vpack.c.b16 %v324, %v324
        %v341 = vpack.c.b16 %v325, %v325
        %v342 = vpack.c.b16 %v326, %v326
        %v343 = vpack.c.b16 %v327, %v327
        %v344 = vpack.c.b16 %v328, %v328
        %v345 = vpack.c.b16 %v329, %v329
        %v346 = vpack.c.b16 %v330, %v330
        %v347 = vpack.c.b16 %v331, %v331
        %v348 = vpack.c.b16 %v332, %v332
        %v349 = vpack.c.b16 %v333, %v333
        %v350 = vpack.c.b16 %v334, %v334
        %v351 = vpack.c.b16 %v335, %v335
        %v352 = vpack.c.b16 %v336, %v336
        %v353 = vpack.c.b16 %v337, %v337
        %v354 = vpack.c.b16 %v338, %v338
        %v355 = vpack.c.b16 %v339, %v339
        %vm372 = vcmask 27648
        %373 = vst.msk [vmem:[%s272] sm:$0xf] %vm372, %v340
        %374 = vst.msk [vmem:[%s272 + $0x4] sm:$0xf] %vm372, %v341
        %375 = vst.msk [vmem:[%s272 + $0x8] sm:$0xf] %vm372, %v342
        %376 = vst.msk [vmem:[%s272 + $0xc] sm:$0xf] %vm372, %v343
        %377 = vst.msk [vmem:[%s272 + $0x10] sm:$0xf] %vm372, %v344
        %378 = vst.msk [vmem:[%s272 + $0x14] sm:$0xf] %vm372, %v345
        %379 = vst.msk [vmem:[%s272 + $0x18] sm:$0xf] %vm372, %v346
        %380 = vst.msk [vmem:[%s272 + $0x1c] sm:$0xf] %vm372, %v347
        %381 = vst.msk [vmem:[%s272 + $0x20] sm:$0xf] %vm372, %v348
        %382 = vst.msk [vmem:[%s272 + $0x24] sm:$0xf] %vm372, %v349
        %383 = vst.msk [vmem:[%s272 + $0x28] sm:$0xf] %vm372, %v350
        %384 = vst.msk [vmem:[%s272 + $0x2c] sm:$0xf] %vm372, %v351
        %385 = vst.msk [vmem:[%s272 + $0x30] sm:$0xf] %vm372, %v352
        %386 = vst.msk [vmem:[%s272 + $0x34] sm:$0xf] %vm372, %v353
        %387 = vst.msk [vmem:[%s272 + $0x38] sm:$0xf] %vm372, %v354
        %388 = vst.msk [vmem:[%s272 + $0x3c] sm:$0xf] %vm372, %v355
        %v389 = vld [vmem:[#allocation5] sm:$0x3]
        %vm390 = vcmask 31744
        %v392 = vsel %vm390, %v308, 0
        %v395 = vsel %vm390, %v309, 0
        %v398 = vsel %vm390, %v310, 0
        %v401 = vsel %vm390, %v311, 0
        %v404 = vsel %vm390, %v312, 0
        %v407 = vsel %vm390, %v313, 0
        %v410 = vsel %vm390, %v314, 0
        %v413 = vsel %vm390, %v315, 0
        %vm415 = vcmask 1041408
        %v417 = vsel %vm415, %v389, 0
        %419 = vmatprep.subr.bf16.mxu0 0
        %420 = vmatpush1.bf16.msra.mxu0 %v417
        %421 = vmatprep.subr.bf16.mxu0 0
        %422 = vmatpush1.bf16.msra.mxu0 0
        %423 = vmatprep.subr.bf16.mxu0 0
        %424 = vmatpush1.bf16.msra.mxu0 0
        %425 = vmatprep.subr.bf16.mxu0 0
        %426 = vmatpush1.bf16.msra.mxu0 0
        %427 = vmatprep.subr.bf16.mxu0 0
        %428 = vmatpush1.bf16.msra.mxu0 0
        %429 = vmatprep.subr.bf16.mxu0 0
        %430 = vmatpush1.bf16.msra.mxu0 0
        %431 = vmatprep.subr.bf16.mxu0 0
        %432 = vmatpush1.bf16.msra.mxu0 0
        %433 = vmatprep.subr.bf16.mxu0 0
        %434 = vmatpush1.bf16.msra.mxu0 0
        %435 = vmatprep.subr.bf16.mxu0 0
        %436 = vmatpush1.bf16.msra.mxu0 0
        %437 = vmatprep.subr.bf16.mxu0 0
        %438 = vmatpush1.bf16.msra.mxu0 0
        %439 = vmatprep.subr.bf16.mxu0 0
        %440 = vmatpush1.bf16.msra.mxu0 0
        %441 = vmatprep.subr.bf16.mxu0 0
        %442 = vmatpush1.bf16.msra.mxu0 0
        %443 = vmatprep.subr.bf16.mxu0 0
        %444 = vmatpush1.bf16.msra.mxu0 0
        %445 = vmatprep.subr.bf16.mxu0 0
        %446 = vmatpush1.bf16.msra.mxu0 0
        %447 = vmatprep.subr.bf16.mxu0 0
        %448 = vmatpush1.bf16.msra.mxu0 0
        %449 = vmatprep.subr.bf16.mxu0 0
        %450 = vmatpush1.bf16.msra.mxu0 0
        %451 = vmatprep.mubr.bf16.mxu0 0
        %452 = vmatmul.mubr.bf16.gmra.mrb[0].mxu0 %v392
        %v453 = vpop.f32.mrb[0].mxu0
        %v454 = vadd.f32 0.0, %v453
        %v455 = vpop.f32.mrb[0].mxu0
        %v456 = vpop.f32.mrb[0].mxu0
        %v457 = vadd.f32 0.0, %v456
        %v458 = vpop.f32.mrb[0].mxu0
        %459 = vmatprep.mubr.bf16.mxu0 0
        %460 = vmatmul.mubr.bf16.gmra.mrb[0].mxu0 %v395
        %v461 = vpop.f32.mrb[0].mxu0
        %v462 = vadd.f32 0.0, %v461
        %v463 = vpop.f32.mrb[0].mxu0
        %v464 = vpop.f32.mrb[0].mxu0
        %v465 = vadd.f32 0.0, %v464
        %v466 = vpop.f32.mrb[0].mxu0
        %467 = vmatprep.mubr.bf16.mxu0 0
        %468 = vmatmul.mubr.bf16.gmra.mrb[0].mxu0 %v398
        %v469 = vpop.f32.mrb[0].mxu0
        %v470 = vadd.f32 0.0, %v469
        %v471 = vpop.f32.mrb[0].mxu0
        %v472 = vpop.f32.mrb[0].mxu0
        %v473 = vadd.f32 0.0, %v472
        %v474 = vpop.f32.mrb[0].mxu0
        %475 = vmatprep.mubr.bf16.mxu0 0
        %476 = vmatmul.mubr.bf16.gmra.mrb[0].mxu0 %v401
        %v477 = vpop.f32.mrb[0].mxu0
        %v478 = vadd.f32 0.0, %v477
        %v479 = vpop.f32.mrb[0].mxu0
        %v480 = vpop.f32.mrb[0].mxu0
        %v481 = vadd.f32 0.0, %v480
        %v482 = vpop.f32.mrb[0].mxu0
        %483 = vmatprep.mubr.bf16.mxu0 0
        %484 = vmatmul.mubr.bf16.gmra.mrb[0].mxu0 %v404
        %v485 = vpop.f32.mrb[0].mxu0
        %v486 = vadd.f32 0.0, %v485
        %v487 = vpop.f32.mrb[0].mxu0
        %v488 = vpop.f32.mrb[0].mxu0
        %v489 = vadd.f32 0.0, %v488
        %v490 = vpop.f32.mrb[0].mxu0
        %491 = vmatprep.mubr.bf16.mxu0 0
        %492 = vmatmul.mubr.bf16.gmra.mrb[0].mxu0 %v407
        %v493 = vpop.f32.mrb[0].mxu0
        %v494 = vadd.f32 0.0, %v493
        %v495 = vpop.f32.mrb[0].mxu0
        %v496 = vpop.f32.mrb[0].mxu0
        %v497 = vadd.f32 0.0, %v496
        %v498 = vpop.f32.mrb[0].mxu0
        %499 = vmatprep.mubr.bf16.mxu0 0
        %500 = vmatmul.mubr.bf16.gmra.mrb[0].mxu0 %v410
        %v501 = vpop.f32.mrb[0].mxu0
        %v502 = vadd.f32 0.0, %v501
        %v503 = vpop.f32.mrb[0].mxu0
        %v504 = vpop.f32.mrb[0].mxu0
        %v505 = vadd.f32 0.0, %v504
        %v506 = vpop.f32.mrb[0].mxu0
        %507 = vmatprep.mubr.bf16.mxu0 0
        %508 = vmatmul.mubr.bf16.gmra.mrb[0].mxu0 %v413
        %v509 = vpop.f32.mrb[0].mxu0
        %v510 = vadd.f32 0.0, %v509
        %v511 = vpop.f32.mrb[0].mxu0
        %v512 = vpop.f32.mrb[0].mxu0
        %v513 = vadd.f32 0.0, %v512
        %v514 = vpop.f32.mrb[0].mxu0
        %515 = vdwg.mxu0
        %vm516 = vcmask 64512
        %v517 = vsel %vm516, %v454, 0.0
        %v518 = vsel %vm516, %v457, 0.0
        %v519 = vadd.f32 %v517, %v518
        %v520 = vsel %vm516, %v462, 0.0
        %v521 = vadd.f32 %v519, %v520
        %v522 = vsel %vm516, %v465, 0.0
        %v523 = vadd.f32 %v521, %v522
        %v524 = vsel %vm516, %v470, 0.0
        %v525 = vadd.f32 %v523, %v524
        %v526 = vsel %vm516, %v473, 0.0
        %v527 = vadd.f32 %v525, %v526
        %v528 = vsel %vm516, %v478, 0.0
        %v529 = vadd.f32 %v527, %v528
        %v530 = vsel %vm516, %v481, 0.0
        %v531 = vadd.f32 %v529, %v530
        %v532 = vsel %vm516, %v486, 0.0
        %v533 = vadd.f32 %v531, %v532
        %v534 = vsel %vm516, %v489, 0.0
        %v535 = vadd.f32 %v533, %v534
        %v536 = vsel %vm516, %v494, 0.0
        %v537 = vadd.f32 %v535, %v536
        %v538 = vsel %vm516, %v497, 0.0
        %v539 = vadd.f32 %v537, %v538
        %v540 = vsel %vm516, %v502, 0.0
        %v541 = vadd.f32 %v539, %v540
        %v542 = vsel %vm516, %v505, 0.0
        %v543 = vadd.f32 %v541, %v542
        %v544 = vsel %vm516, %v510, 0.0
        %v545 = vadd.f32 %v543, %v544
        %v546 = vsel %vm516, %v513, 0.0
        %v547 = vadd.f32 %v545, %v546
        %v548 = vrot.slane %v547, 4
        %v549 = vadd.f32 %v547, %v548
        %v550 = vrot.slane %v549, 2
        %v551 = vadd.f32 %v549, %v550
        %v552 = vrot.slane %v551, 1
        %v553 = vadd.f32 %v551, %v552
        %v554 = vmul.f32 %v454, %v454
        %v555 = vmul.f32 %v457, %v457
        %v556 = vmul.f32 %v462, %v462
        %v557 = vmul.f32 %v465, %v465
        %v558 = vmul.f32 %v470, %v470
        %v559 = vmul.f32 %v473, %v473
        %v560 = vmul.f32 %v478, %v478
        %v561 = vmul.f32 %v481, %v481
        %v562 = vmul.f32 %v486, %v486
        %v563 = vmul.f32 %v489, %v489
        %v564 = vmul.f32 %v494, %v494
        %v565 = vmul.f32 %v497, %v497
        %v566 = vmul.f32 %v502, %v502
        %v567 = vmul.f32 %v505, %v505
        %v568 = vmul.f32 %v510, %v510
        %v569 = vmul.f32 %v513, %v513
        %v570 = vsel %vm516, %v554, 0.0
        %v571 = vsel %vm516, %v555, 0.0
        %v572 = vadd.f32 %v570, %v571
        %v573 = vsel %vm516, %v556, 0.0
        %v574 = vadd.f32 %v572, %v573
        %v575 = vsel %vm516, %v557, 0.0
        %v576 = vadd.f32 %v574, %v575
        %v577 = vsel %vm516, %v558, 0.0
        %v578 = vadd.f32 %v576, %v577
        %v579 = vsel %vm516, %v559, 0.0
        %v580 = vadd.f32 %v578, %v579
        %v581 = vsel %vm516, %v560, 0.0
        %v582 = vadd.f32 %v580, %v581
        %v583 = vsel %vm516, %v561, 0.0
        %v584 = vadd.f32 %v582, %v583
        %v585 = vsel %vm516, %v562, 0.0
        %v586 = vadd.f32 %v584, %v585
        %v587 = vsel %vm516, %v563, 0.0
        %v588 = vadd.f32 %v586, %v587
        %v589 = vsel %vm516, %v564, 0.0
        %v590 = vadd.f32 %v588, %v589
        %v591 = vsel %vm516, %v565, 0.0
        %v592 = vadd.f32 %v590, %v591
        %v593 = vsel %vm516, %v566, 0.0
        %v594 = vadd.f32 %v592, %v593
        %v595 = vsel %vm516, %v567, 0.0
        %v596 = vadd.f32 %v594, %v595
        %v597 = vsel %vm516, %v568, 0.0
        %v598 = vadd.f32 %v596, %v597
        %v599 = vsel %vm516, %v569, 0.0
        %v600 = vadd.f32 %v598, %v599
        %v601 = vrot.slane %v600, 4
        %v602 = vadd.f32 %v600, %v601
        %v603 = vrot.slane %v602, 2
        %v604 = vadd.f32 %v602, %v603
        %v605 = vrot.slane %v604, 1
        %v606 = vadd.f32 %v604, %v605
        %p607 = scmp.eq.s32.totalorder %s33, 0
        // Predicated region
        $region37: #{inverted_res_block_nhwc.4} parent=27 // pred_check
          %p608 = pneg %p607
        $region38: #{inverted_res_block_nhwc.4} parent=27 // pred_check_branch
          %610 = sbr.rel (%p608) target = $region40
        $region39: #{inverted_res_block_nhwc.4} parent=27 // pred_region
          %vm611 = vcmask 57344
          %612 = vst.msk [vmem:[%s278] sm:$0x1] %vm611, %v553
          %613 = vst.msk [vmem:[%s284] sm:$0x1] %vm611, %v606
        $region40: #{inverted_res_block_nhwc.4} parent=27 // pred_fallthru
          _
        %p614 = scmp.ne.s32.totalorder %s33, 0
        // Predicated region
        $region41: #{inverted_res_block_nhwc.4} parent=27 // pred_check
          %p615 = pneg %p614
        $region42: #{inverted_res_block_nhwc.4} parent=27 // pred_check_branch
          %617 = sbr.rel (%p615) target = $region44
        $region43: #{inverted_res_block_nhwc.4} parent=27 // pred_region
          %v618 = vld [vmem:[%s278] sm:$0x1]
          %v619 = vadd.f32 %v618, %v553
          %vm620 = vcmask 57344
          %621 = vst.msk [vmem:[%s278] sm:$0x1] %vm620, %v619
          %v622 = vld [vmem:[%s284] sm:$0x1]
          %v623 = vadd.f32 %v622, %v606
          %624 = vst.msk [vmem:[%s284] sm:$0x1] %vm620, %v623
        $region44: #{inverted_res_block_nhwc.4} parent=27 // pred_fallthru
          _
        %s625 = sand.u32 %s112, 1
        %s626 = scalar_lea.sflag [#allocation4], %s625
        %s627 = sand.u32 %s112, 1
        %s628 = smul.addr %s627, 64
        %s629 = scalar_lea.vmem [#allocation7], %s628
        %s630 = sand.u32 %s26, 1
        %s631 = scalar_lea.sflag [#allocation9], %s630
        %s632 = sand.u32 %s140, 1
        %s633 = scalar_lea.vmem [#allocation8], %s632
        %s634 = sand.u32 %s26, 1
        %s635 = scalar_lea.sflag [#allocation9], %s634
        %s636 = sand.u32 %s168, 1
        %s637 = scalar_lea.vmem [#allocation10], %s636
        // Predicated region
        $region45: #{inverted_res_block_nhwc.4} parent=27 // pred_check
          %p638 = pneg %p122
        $region46: #{inverted_res_block_nhwc.4} parent=27 // pred_check_branch
          %640 = sbr.rel (%p638) target = $region48
        $region47: #{inverted_res_block_nhwc.4} parent=27 // pred_region
          %s641 = smul.u32 %s31, 2
          %s642 = sadd.s32 %s641, %s33
          %s643 = smul.u32 8, %s642
          %s645 = ssub.s32 1024, 1024
          %646 = vsyncadd %s626, %s645
          %s647 = smul.addr %s643, 2
          %s648 = smul.addr %s32, 32
          %s649 = sadd.s32 %s647, %s648
          %s650 = smul.addr %s649, 64
          %s651 = scalar_lea.hbm %s2, %s650
          %s652 = sshll.u32 %s629, 4
          %s653 = int_to_ptr.vmem [resolvable:$true] %s652
          %658 = dma.vmem_to_hbm [thread:$0]  %s653, 1024, %s651, %s626, 64, 64, 4
        $region48: #{inverted_res_block_nhwc.4} parent=27 // pred_fallthru
          _
        // Predicated region
        $region49: #{inverted_res_block_nhwc.4} parent=27 // pred_check
          %p659 = pneg %p150
        $region50: #{inverted_res_block_nhwc.4} parent=27 // pred_check_branch
          %661 = sbr.rel (%p659) target = $region52
        $region51: #{inverted_res_block_nhwc.4} parent=27 // pred_region
          %s663 = ssub.s32 16, 16
          %664 = vsyncadd %s631, %s663
          %s665 = smul.addr %s31, 2
          %s666 = sadd.s32 %s32, %s665
          %s667 = smul.addr %s666, 16
          %s668 = scalar_lea.hbm %s3, %s667
          %s670 = sshll.u32 %s633, 4
          %s671 = int_to_ptr.vmem [resolvable:$true] %s670
          %673 = dma.vmem_to_hbm [thread:$0]  %s671, 16, %s668, %s631
        $region52: #{inverted_res_block_nhwc.4} parent=27 // pred_fallthru
          _
        // Predicated region
        $region53: #{inverted_res_block_nhwc.4} parent=27 // pred_check
          %p674 = pneg %p178
        $region54: #{inverted_res_block_nhwc.4} parent=27 // pred_check_branch
          %676 = sbr.rel (%p674) target = $region56
        $region55: #{inverted_res_block_nhwc.4} parent=27 // pred_region
          %s678 = ssub.s32 16, 16
          %679 = vsyncadd %s635, %s678
          %s680 = smul.addr %s31, 2
          %s681 = sadd.s32 %s32, %s680
          %s682 = smul.addr %s681, 16
          %s683 = scalar_lea.hbm %s4, %s682
          %s685 = sshll.u32 %s637, 4
          %s686 = int_to_ptr.vmem [resolvable:$true] %s685
          %688 = dma.vmem_to_hbm [thread:$0]  %s686, 16, %s683, %s635
        $region56: #{inverted_res_block_nhwc.4} parent=27 // pred_fallthru
          _
      $region28: #{inverted_res_block_nhwc.4} parent=5 // pred_fallthru
        _
      %p689 = scmp.le.s32.totalorder 2, %s21
      // Predicated region
      $region57: #{inverted_res_block_nhwc.4} parent=5 // pred_check
        %p690 = pneg %p689
      $region58: #{inverted_res_block_nhwc.4} parent=5 // pred_check_branch
        %692 = sbr.rel (%p690) target = $region60
      $region59: #{inverted_res_block_nhwc.4} parent=5 // pred_region
        %s693 = ssub.s32 %s21, 2
        // Predicated region
        $region61: #{inverted_res_block_nhwc.4} parent=59 // pred_check
          %p694 = pneg %p128
        $region62: #{inverted_res_block_nhwc.4} parent=59 // pred_check_branch
          %696 = sbr.rel (%p694) target = $region64
        $region63: #{inverted_res_block_nhwc.4} parent=59 // pred_region
          %s697 = sand.u32 %s113, 1
          %s698 = scalar_lea.sflag [#allocation4], %s697
          %s699 = sand.u32 %s113, 1
          %s700 = smul.addr %s699, 64
          %s701 = scalar_lea.vmem [#allocation7], %s700
          %702 = dma.done %s698, 1024
        $region64: #{inverted_res_block_nhwc.4} parent=59 // pred_fallthru
          _
        // Predicated region
        $region65: #{inverted_res_block_nhwc.4} parent=59 // pred_check
          %p703 = pneg %p156
        $region66: #{inverted_res_block_nhwc.4} parent=59 // pred_check_branch
          %705 = sbr.rel (%p703) target = $region68
        $region67: #{inverted_res_block_nhwc.4} parent=59 // pred_region
          %s706 = sand.u32 %s27, 1
          %s707 = scalar_lea.sflag [#allocation9], %s706
          %s708 = sand.u32 %s141, 1
          %s709 = scalar_lea.vmem [#allocation8], %s708
          %710 = dma.done %s707, 16
        $region68: #{inverted_res_block_nhwc.4} parent=59 // pred_fallthru
          _
        // Predicated region
        $region69: #{inverted_res_block_nhwc.4} parent=59 // pred_check
          %p711 = pneg %p184
        $region70: #{inverted_res_block_nhwc.4} parent=59 // pred_check_branch
          %713 = sbr.rel (%p711) target = $region72
        $region71: #{inverted_res_block_nhwc.4} parent=59 // pred_region
          %s714 = sand.u32 %s27, 1
          %s715 = scalar_lea.sflag [#allocation9], %s714
          %s716 = sand.u32 %s169, 1
          %s717 = scalar_lea.vmem [#allocation10], %s716
          %718 = dma.done %s715, 16
        $region72: #{inverted_res_block_nhwc.4} parent=59 // pred_fallthru
          _
      $region60: #{inverted_res_block_nhwc.4} parent=5 // pred_fallthru
        _
    $region6: #{inverted_res_block_nhwc.4} parent=1 // loop_footer
      %s25 = sadd.s32 1, %s21
    $region7: #{inverted_res_block_nhwc.4} parent=1 // loop_footer_branch
      %20 = sbr.rel target = $region3
    $region8: #{inverted_res_block_nhwc.4} parent=1 // loop_exit
      _
    %719 = vsyncpa [#allocation3], 1
    %s720 = scalar_lea.sflag [#allocation3], 1
    %721 = vsyncpa %s720, 1
    %722 = vsyncpa [#allocation6], 1
    %723 = vsyncpa [#allocation4], 1
    %s724 = scalar_lea.sflag [#allocation4], 1
    %725 = vsyncpa %s724, 1
    %726 = vsyncpa [#allocation9], 1
    %s727 = scalar_lea.sflag [#allocation9], 1
    %728 = vsyncpa %s727, 1

// kernel: inverted_res_block_nhwc.6
$region0: #{inverted_res_block_nhwc.6}
  #allocation0 [shape = 'u32[]', space=smem, size = 0x4, offset = 0x4, fixed_abs, tag = 'smem constant byte address 0x4 - core index']
  #allocation1 [shape = 'u32[144,128]{1,0:T(1,128)}', space=vmem, size = 0x12000, scoped, tag = 'internal scratch']
  %s0 = inlined_call_operand.hbm [shape: bf16[2,16,16,8], index: 0, kind: input, shape index: {}]
  %s1 = inlined_call_operand.hbm [shape: f32[2,1,8], index: 1, kind: input, shape index: {}]
  %s2 = inlined_call_operand.hbm [shape: f32[2,1,8], index: 2, kind: input, shape index: {}]
  %s3 = inlined_call_operand.hbm [shape: bf16[8,4], index: 3, kind: input, shape index: {}]
  %s4 = inlined_call_operand.hbm [shape: bf16[2,16,16,4], index: 4, kind: output, shape index: {0}]
  %s5 = inlined_call_operand.hbm [shape: f32[1,2,1,4], index: 5, kind: output, shape index: {1}]
  %s6 = inlined_call_operand.hbm [shape: f32[1,2,1,4], index: 6, kind: output, shape index: {2}]
  %7 = xla_tuple %s4, %s5, %s6
  %s8 = sld [smem:[#allocation0]]
  $region89: #{inverted_res_block_nhwc.6} parent=0
    _
  %s10 = ssub.s32 1, %s8
  %s11 = scalar_select 0, %s10, %s8
  $region1: #{inverted_res_block_nhwc.6} parent=0
    #allocation2 [shape = 'u8[65536]{0}', space=vmem, size = 0x10000, scoped, tag = 'input window, operand 0']
    #allocation3 [shape = 's32[2]{0}', space=sflag, size = 0x8, scoped, tag = 'scoped memory for inverted_res_block_nhwc.6']
    #allocation4 [shape = 's32[2]{0}', space=sflag, size = 0x8, scoped, tag = 'scoped memory for inverted_res_block_nhwc.6']
    #allocation5 [shape = 'u8[1024]{0}', space=vmem, size = 0x400, scoped, tag = 'input window, operand 1']
    #allocation6 [shape = 's32[2]{0}', space=sflag, size = 0x8, scoped, tag = 'scoped memory for inverted_res_block_nhwc.6']
    #allocation7 [shape = 'u8[1024]{0}', space=vmem, size = 0x400, scoped, tag = 'input window, operand 2']
    #allocation8 [shape = 'u8[2048]{0}', space=vmem, size = 0x800, scoped, tag = 'input window, operand 3, single buffered']
    #allocation9 [shape = 's32[1]{0}', space=sflag, size = 0x4, scoped, tag = 'scoped memory for inverted_res_block_nhwc.6']
    #allocation10 [shape = 'u8[65536]{0}', space=vmem, size = 0x10000, scoped, tag = 'output window, operand 0']
    #allocation11 [shape = 'u8[1024]{0}', space=vmem, size = 0x400, scoped, tag = 'output window, operand 1']
    #allocation12 [shape = 's32[2]{0}', space=sflag, size = 0x8, scoped, tag = 'scoped memory for inverted_res_block_nhwc.6']
    #allocation13 [shape = 'u8[1024]{0}', space=vmem, size = 0x400, scoped, tag = 'output window, operand 2']
    %12 = vsyncpa [#allocation3], 0
    %s13 = scalar_lea.sflag [#allocation3], 1
    %14 = vsyncpa %s13, 0
    %15 = vsyncpa [#allocation6], 0
    %s16 = scalar_lea.sflag [#allocation6], 1
    %17 = vsyncpa %s16, 0
    %18 = vsyncpa [#allocation9], 0
    %19 = vsyncpa [#allocation4], 0
    %s20 = scalar_lea.sflag [#allocation4], 1
    %21 = vsyncpa %s20, 0
    %22 = vsyncpa [#allocation12], 0
    %s23 = scalar_lea.sflag [#allocation12], 1
    %24 = vsyncpa %s23, 0
    loop: start=0, step=1, limit=6
    $region2: #{inverted_res_block_nhwc.6} parent=1 // loop_pre_header
      _
    $region3: #{inverted_res_block_nhwc.6} parent=1 // loop_header
      %s26 = sphi 0, %s30
      %p27 = scmp.ge.s32.totalorder %s26, 6
      %s33 = sphi 0, %s52
      %s34 = sphi 0, %s48
      %s35 = sphi 0, %s44
      %s36 = sphi 0, %s33
      %s37 = sphi 0, %s34
      %s38 = sphi 0, %s35
      %s39 = sphi 0, %s36
      %s40 = sphi 0, %s37
      %s41 = sphi 0, %s38
      %s61 = sphi 0, %s63
      %s64 = sphi 0, %s61
      %s65 = sphi 0, %s64
      %s81 = sphi 0, %s65
      %s87 = sphi 0, %s89
      %s90 = sphi 0, %s87
      %s91 = sphi 0, %s90
      %s107 = sphi 0, %s91
      %s113 = sphi 0, %s115
      %s116 = sphi 0, %s113
      %s117 = sphi 0, %s116
      %s133 = sphi 0, %s117
      %s137 = sphi 0, %s137
      %s139 = sphi 0, %s137
      %s140 = sphi 0, %s139
      %s154 = sphi 0, %s140
      %s166 = sphi 0, %s168
      %s169 = sphi 0, %s166
      %s170 = sphi 0, %s169
      %s186 = sphi 0, %s170
      %s194 = sphi 0, %s196
      %s197 = sphi 0, %s194
      %s198 = sphi 0, %s197
      %s214 = sphi 0, %s198
      %s222 = sphi 0, %s224
      %s225 = sphi 0, %s222
      %s226 = sphi 0, %s225
      %s242 = sphi 0, %s226
    $region4: #{inverted_res_block_nhwc.6} parent=1 // loop_header_branch
      %29 = sbr.rel (%p27) target = $region8
    $region5: #{inverted_res_block_nhwc.6} parent=1 // loop_body
      %s31 = ssub.s32 %s26, 1
      %s32 = ssub.s32 %s26, 2
      %s42 = sadd.s32 1, %s35
      %p43 = scmp.ge.s32.totalorder %s42, 2
      %s44 = scalar_select %p43, 0, %s42
      %s45 = sadd.s32 1, %s34
      %s46 = scalar_select %p43, %s45, %s34
      %p47 = scmp.ge.s32.totalorder %s46, 2
      %s48 = scalar_select %p47, 0, %s46
      %s49 = sadd.s32 1, %s33
      %s50 = scalar_select %p47, %s49, %s33
      %p51 = scmp.ge.s32.totalorder %s50, 1
      %s52 = scalar_select %p51, 0, %s50
      %s53 = smul.u32 %s33, 2
      %s54 = sadd.s32 %s53, %s35
      %s55 = smul.u32 %s52, 2
      %s56 = sadd.s32 %s55, %s44
      %s57 = ssub.s32 %s34, %s48
      %s58 = ssub.s32 %s54, %s56
      %s59 = sor.u32 %s57, %s58
      %p60 = scmp.eq.s32.totalorder %s59, 0
      %s62 = sadd.s32 %s61, 1
      %s63 = scalar_select %p60, %s61, %s62
      %p66 = pneg %p60
      %p67 = scmp.eq.s32.totalorder %s26, 3
      %p68 = por %p66, %p67
      %p69 = scmp.ne.s32.totalorder %s61, %s64
      %p70 = scmp.eq.s32.totalorder %s26, 0
      %p71 = por %p69, %p70
      %p72 = scmp.ne.s32.totalorder %s61, %s64
      %p73 = scmp.eq.s32.totalorder %s31, 3
      %p74 = por %p72, %p73
      %p75 = scmp.ne.s32.totalorder %s64, %s65
      %p76 = scmp.eq.s32.totalorder %s31, 0
      %p77 = por %p75, %p76
      %p78 = scmp.ne.s32.totalorder %s64, %s65
      %p79 = scmp.eq.s32.totalorder %s32, 3
      %p80 = por %p78, %p79
      %p82 = scmp.ne.s32.totalorder %s65, %s81
      %p83 = scmp.eq.s32.totalorder %s32, 0
      %p84 = por %p82, %p83
      %s85 = ssub.s32 %s34, %s48
      %p86 = scmp.eq.s32.totalorder %s85, 0
      %s88 = sadd.s32 %s87, 1
      %s89 = scalar_select %p86, %s87, %s88
      %p92 = pneg %p86
      %p93 = scmp.eq.s32.totalorder %s26, 3
      %p94 = por %p92, %p93
      %p95 = scmp.ne.s32.totalorder %s87, %s90
      %p96 = scmp.eq.s32.totalorder %s26, 0
      %p97 = por %p95, %p96
      %p98 = scmp.ne.s32.totalorder %s87, %s90
      %p99 = scmp.eq.s32.totalorder %s31, 3
      %p100 = por %p98, %p99
      %p101 = scmp.ne.s32.totalorder %s90, %s91
      %p102 = scmp.eq.s32.totalorder %s31, 0
      %p103 = por %p101, %p102
      %p104 = scmp.ne.s32.totalorder %s90, %s91
      %p105 = scmp.eq.s32.totalorder %s32, 3
      %p106 = por %p104, %p105
      %p108 = scmp.ne.s32.totalorder %s91, %s107
      %p109 = scmp.eq.s32.totalorder %s32, 0
      %p110 = por %p108, %p109
      %s111 = ssub.s32 %s34, %s48
      %p112 = scmp.eq.s32.totalorder %s111, 0
      %s114 = sadd.s32 %s113, 1
      %s115 = scalar_select %p112, %s113, %s114
      %p118 = pneg %p112
      %p119 = scmp.eq.s32.totalorder %s26, 3
      %p120 = por %p118, %p119
      %p121 = scmp.ne.s32.totalorder %s113, %s116
      %p122 = scmp.eq.s32.totalorder %s26, 0
      %p123 = por %p121, %p122
      %p124 = scmp.ne.s32.totalorder %s113, %s116
      %p125 = scmp.eq.s32.totalorder %s31, 3
      %p126 = por %p124, %p125
      %p127 = scmp.ne.s32.totalorder %s116, %s117
      %p128 = scmp.eq.s32.totalorder %s31, 0
      %p129 = por %p127, %p128
      %p130 = scmp.ne.s32.totalorder %s116, %s117
      %p131 = scmp.eq.s32.totalorder %s32, 3
      %p132 = por %p130, %p131
      %p134 = scmp.ne.s32.totalorder %s117, %s133
      %p135 = scmp.eq.s32.totalorder %s32, 0
      %p136 = por %p134, %p135
      %s138 = sadd.s32 %s137, 1
      %p141 = scmp.eq.s32.totalorder %s26, 3
      %p142 = scmp.ne.s32.totalorder %s137, %s139
      %p143 = scmp.eq.s32.totalorder %s26, 0
      %p144 = por %p142, %p143
      %p145 = scmp.ne.s32.totalorder %s137, %s139
      %p146 = scmp.eq.s32.totalorder %s31, 3
      %p147 = por %p145, %p146
      %p148 = scmp.ne.s32.totalorder %s139, %s140
      %p149 = scmp.eq.s32.totalorder %s31, 0
      %p150 = por %p148, %p149
      %p151 = scmp.ne.s32.totalorder %s139, %s140
      %p152 = scmp.eq.s32.totalorder %s32, 3
      %p153 = por %p151, %p152
      %p155 = scmp.ne.s32.totalorder %s140, %s154
      %p156 = scmp.eq.s32.totalorder %s32, 0
      %p157 = por %p155, %p156
      %s158 = smul.u32 %s33, 2
      %s159 = sadd.s32 %s158, %s35
      %s160 = smul.u32 %s52, 2
      %s161 = sadd.s32 %s160, %s44
      %s162 = ssub.s32 %s34, %s48
      %s163 = ssub.s32 %s159, %s161
      %s164 = sor.u32 %s162, %s163
      %p165 = scmp.eq.s32.totalorder %s164, 0
      %s167 = sadd.s32 %s166, 1
      %s168 = scalar_select %p165, %s166, %s167
      %p171 = pneg %p165
      %p172 = scmp.eq.s32.totalorder %s26, 3
      %p173 = por %p171, %p172
      %p174 = scmp.ne.s32.totalorder %s166, %s169
      %p175 = scmp.eq.s32.totalorder %s26, 0
      %p176 = por %p174, %p175
      %p177 = scmp.ne.s32.totalorder %s166, %s169
      %p178 = scmp.eq.s32.totalorder %s31, 3
      %p179 = por %p177, %p178
      %p180 = scmp.ne.s32.totalorder %s169, %s170
      %p181 = scmp.eq.s32.totalorder %s31, 0
      %p182 = por %p180, %p181
      %p183 = scmp.ne.s32.totalorder %s169, %s170
      %p184 = scmp.eq.s32.totalorder %s32, 3
      %p185 = por %p183, %p184
      %p187 = scmp.ne.s32.totalorder %s170, %s186
      %p188 = scmp.eq.s32.totalorder %s32, 0
      %p189 = por %p187, %p188
      %s190 = ssub.s32 %s33, %s52
      %s191 = ssub.s32 %s34, %s48
      %s192 = sor.u32 %s190, %s191
      %p193 = scmp.eq.s32.totalorder %s192, 0
      %s195 = sadd.s32 %s194, 1
      %s196 = scalar_select %p193, %s194, %s195
      %p199 = pneg %p193
      %p200 = scmp.eq.s32.totalorder %s26, 3
      %p201 = por %p199, %p200
      %p202 = scmp.ne.s32.totalorder %s194, %s197
      %p203 = scmp.eq.s32.totalorder %s26, 0
      %p204 = por %p202, %p203
      %p205 = scmp.ne.s32.totalorder %s194, %s197
      %p206 = scmp.eq.s32.totalorder %s31, 3
      %p207 = por %p205, %p206
      %p208 = scmp.ne.s32.totalorder %s197, %s198
      %p209 = scmp.eq.s32.totalorder %s31, 0
      %p210 = por %p208, %p209
      %p211 = scmp.ne.s32.totalorder %s197, %s198
      %p212 = scmp.eq.s32.totalorder %s32, 3
      %p213 = por %p211, %p212
      %p215 = scmp.ne.s32.totalorder %s198, %s214
      %p216 = scmp.eq.s32.totalorder %s32, 0
      %p217 = por %p215, %p216
      %s218 = ssub.s32 %s33, %s52
      %s219 = ssub.s32 %s34, %s48
      %s220 = sor.u32 %s218, %s219
      %p221 = scmp.eq.s32.totalorder %s220, 0
      %s223 = sadd.s32 %s222, 1
      %s224 = scalar_select %p221, %s222, %s223
      %p227 = pneg %p221
      %p228 = scmp.eq.s32.totalorder %s26, 3
      %p229 = por %p227, %p228
      %p230 = scmp.ne.s32.totalorder %s222, %s225
      %p231 = scmp.eq.s32.totalorder %s26, 0
      %p232 = por %p230, %p231
      %p233 = scmp.ne.s32.totalorder %s222, %s225
      %p234 = scmp.eq.s32.totalorder %s31, 3
      %p235 = por %p233, %p234
      %p236 = scmp.ne.s32.totalorder %s225, %s226
      %p237 = scmp.eq.s32.totalorder %s31, 0
      %p238 = por %p236, %p237
      %p239 = scmp.ne.s32.totalorder %s225, %s226
      %p240 = scmp.eq.s32.totalorder %s32, 3
      %p241 = por %p239, %p240
      %p243 = scmp.ne.s32.totalorder %s226, %s242
      %p244 = scmp.eq.s32.totalorder %s32, 0
      %p245 = por %p243, %p244
      %p246 = scmp.le.s32.totalorder 1, %s26
      %p247 = scmp.lt.s32.totalorder %s26, 5
      %p248 = pnand %p246, %p247
      %p249 = pneg %p248
      // Predicated region
      $region9: #{inverted_res_block_nhwc.6} parent=5 // pred_check
        _
      $region10: #{inverted_res_block_nhwc.6} parent=5 // pred_check_branch
        %251 = sbr.rel (%p248) target = $region12
      $region11: #{inverted_res_block_nhwc.6} parent=5 // pred_region
        %s252 = ssub.s32 %s26, 1
        // Predicated region
        $region13: #{inverted_res_block_nhwc.6} parent=11 // pred_check
          %p253 = pneg %p150
        $region14: #{inverted_res_block_nhwc.6} parent=11 // pred_check_branch
          %255 = sbr.rel (%p253) target = $region16
        $region15: #{inverted_res_block_nhwc.6} parent=11 // pred_region
          %s257 = ssub.s32 64, 64
          %258 = vsyncadd [#allocation9], %s257
          %s260 = sshll.u32 [#allocation8], 4
          %s261 = int_to_ptr.vmem [resolvable:$true] %s260
          %263 = dma.hbm_to_vmem [thread:$0]  %s3, 64, %s261, [#allocation9]
        $region16: #{inverted_res_block_nhwc.6} parent=11 // pred_fallthru
          _
      $region12: #{inverted_res_block_nhwc.6} parent=5 // pred_fallthru
        _
      %p264 = scmp.lt.s32.totalorder %s26, 4
      // Predicated region
      $region17: #{inverted_res_block_nhwc.6} parent=5 // pred_check
        %p265 = pneg %p264
      $region18: #{inverted_res_block_nhwc.6} parent=5 // pred_check_branch
        %267 = sbr.rel (%p265) target = $region20
      $region19: #{inverted_res_block_nhwc.6} parent=5 // pred_region
        // Predicated region
        $region21: #{inverted_res_block_nhwc.6} parent=19 // pred_check
          %p268 = pneg %p71
        $region22: #{inverted_res_block_nhwc.6} parent=19 // pred_check_branch
          %270 = sbr.rel (%p268) target = $region24
        $region23: #{inverted_res_block_nhwc.6} parent=19 // pred_region
          %s271 = sand.u32 %s61, 1
          %s272 = scalar_lea.sflag [#allocation3], %s271
          %s273 = sand.u32 %s61, 1
          %s274 = smul.addr %s273, 64
          %s275 = scalar_lea.vmem [#allocation2], %s274
          %s276 = smul.u32 %s33, 2
          %s277 = sadd.s32 %s276, %s35
          %s278 = smul.u32 8, %s277
          %s280 = ssub.s32 1024, 1024
          %281 = vsyncadd %s272, %s280
          %s282 = smul.addr %s278, 2
          %s283 = smul.addr %s34, 32
          %s284 = sadd.s32 %s282, %s283
          %s285 = smul.addr %s284, 64
          %s286 = scalar_lea.hbm %s0, %s285
          %s287 = sshll.u32 %s275, 4
          %s288 = int_to_ptr.vmem [resolvable:$true] %s287
          %293 = dma.hbm_to_vmem [thread:$0]  %s286, 1024, %s288, %s272, 64, 64, 4
        $region24: #{inverted_res_block_nhwc.6} parent=19 // pred_fallthru
          _
        // Predicated region
        $region25: #{inverted_res_block_nhwc.6} parent=19 // pred_check
          %p294 = pneg %p97
        $region26: #{inverted_res_block_nhwc.6} parent=19 // pred_check_branch
          %296 = sbr.rel (%p294) target = $region28
        $region27: #{inverted_res_block_nhwc.6} parent=19 // pred_region
          %s297 = sand.u32 %s26, 1
          %s298 = scalar_lea.sflag [#allocation6], %s297
          %s299 = sand.u32 %s87, 1
          %s300 = scalar_lea.vmem [#allocation5], %s299
          %s302 = ssub.s32 16, 16
          %303 = vsyncadd %s298, %s302
          %s304 = smul.addr %s34, 16
          %s305 = scalar_lea.hbm %s1, %s304
          %s307 = sshll.u32 %s300, 4
          %s308 = int_to_ptr.vmem [resolvable:$true] %s307
          %310 = dma.hbm_to_vmem [thread:$0]  %s305, 16, %s308, %s298
        $region28: #{inverted_res_block_nhwc.6} parent=19 // pred_fallthru
          _
        // Predicated region
        $region29: #{inverted_res_block_nhwc.6} parent=19 // pred_check
          %p311 = pneg %p123
        $region30: #{inverted_res_block_nhwc.6} parent=19 // pred_check_branch
          %313 = sbr.rel (%p311) target = $region32
        $region31: #{inverted_res_block_nhwc.6} parent=19 // pred_region
          %s314 = sand.u32 %s26, 1
          %s315 = scalar_lea.sflag [#allocation6], %s314
          %s316 = sand.u32 %s113, 1
          %s317 = scalar_lea.vmem [#allocation7], %s316
          %s319 = ssub.s32 16, 16
          %320 = vsyncadd %s315, %s319
          %s321 = smul.addr %s34, 16
          %s322 = scalar_lea.hbm %s2, %s321
          %s324 = sshll.u32 %s317, 4
          %s325 = int_to_ptr.vmem [resolvable:$true] %s324
          %327 = dma.hbm_to_vmem [thread:$0]  %s322, 16, %s325, %s315
        $region32: #{inverted_res_block_nhwc.6} parent=19 // pred_fallthru
          _
      $region20: #{inverted_res_block_nhwc.6} parent=5 // pred_fallthru
        _
      %p328 = scmp.le.s32.totalorder 1, %s26
      %p329 = scmp.lt.s32.totalorder %s26, 5
      %p330 = pnand %p328, %p329
      %p331 = pneg %p330
      // Predicated region
      $region33: #{inverted_res_block_nhwc.6} parent=5 // pred_check
        _
      $region34: #{inverted_res_block_nhwc.6} parent=5 // pred_check_branch
        %333 = sbr.rel (%p330) target = $region36
      $region35: #{inverted_res_block_nhwc.6} parent=5 // pred_region
        %s334 = ssub.s32 %s26, 1
        %s335 = sand.u32 %s64, 1
        %s336 = scalar_lea.sflag [#allocation3], %s335
        %s337 = sand.u32 %s64, 1
        %s338 = smul.addr %s337, 64
        %s339 = scalar_lea.vmem [#allocation2], %s338
        // Predicated region
        $region37: #{inverted_res_block_nhwc.6} parent=35 // pred_check
          %p340 = pneg %p77
        $region38: #{inverted_res_block_nhwc.6} parent=35 // pred_check_branch
          %342 = sbr.rel (%p340) target = $region40
        $region39: #{inverted_res_block_nhwc.6} parent=35 // pred_region
          %343 = dma.done %s336, 1024
        $region40: #{inverted_res_block_nhwc.6} parent=35 // pred_fallthru
          _
        %s344 = sand.u32 %s31, 1
        %s345 = scalar_lea.sflag [#allocation6], %s344
        %s346 = sand.u32 %s90, 1
        %s347 = scalar_lea.vmem [#allocation5], %s346
        // Predicated region
        $region41: #{inverted_res_block_nhwc.6} parent=35 // pred_check
          %p348 = pneg %p103
        $region42: #{inverted_res_block_nhwc.6} parent=35 // pred_check_branch
          %350 = sbr.rel (%p348) target = $region44
        $region43: #{inverted_res_block_nhwc.6} parent=35 // pred_region
          %351 = dma.done %s345, 16
        $region44: #{inverted_res_block_nhwc.6} parent=35 // pred_fallthru
          _
        %s352 = sand.u32 %s31, 1
        %s353 = scalar_lea.sflag [#allocation6], %s352
        %s354 = sand.u32 %s116, 1
        %s355 = scalar_lea.vmem [#allocation7], %s354
        // Predicated region
        $region45: #{inverted_res_block_nhwc.6} parent=35 // pred_check
          %p356 = pneg %p129
        $region46: #{inverted_res_block_nhwc.6} parent=35 // pred_check_branch
          %358 = sbr.rel (%p356) target = $region48
        $region47: #{inverted_res_block_nhwc.6} parent=35 // pred_region
          %359 = dma.done %s353, 16
        $region48: #{inverted_res_block_nhwc.6} parent=35 // pred_fallthru
          _
        // Predicated region
        $region49: #{inverted_res_block_nhwc.6} parent=35 // pred_check
          %p360 = pneg %p150
        $region50: #{inverted_res_block_nhwc.6} parent=35 // pred_check_branch
          %362 = sbr.rel (%p360) target = $region52
        $region51: #{inverted_res_block_nhwc.6} parent=35 // pred_region
          %363 = dma.done [#allocation9], 64
        $region52: #{inverted_res_block_nhwc.6} parent=35 // pred_fallthru
          _
        %s364 = sand.u32 %s64, 1
        %s365 = scalar_lea.sflag [#allocation3], %s364
        %s366 = sand.u32 %s64, 1
        %s367 = smul.addr %s366, 64
        %s368 = scalar_lea.vmem [#allocation2], %s367
        %p369 = pneg %p77
        %p370 = pneg %p74
        %s371 = sand.u32 %s31, 1
        %s372 = scalar_lea.sflag [#allocation6], %s371
        %s373 = sand.u32 %s90, 1
        %s374 = scalar_lea.vmem [#allocation5], %s373
        %p375 = pneg %p103
        %p376 = pneg %p100
        %s377 = sand.u32 %s31, 1
        %s378 = scalar_lea.sflag [#allocation6], %s377
        %s379 = sand.u32 %s116, 1
        %s380 = scalar_lea.vmem [#allocation7], %s379
        %p381 = pneg %p129
        %p382 = pneg %p126
        %p383 = pneg %p150
        %p384 = pneg %p147
        %p385 = pneg %p182
        %p386 = pneg %p179
        %s387 = sand.u32 %s169, 1
        %s388 = scalar_lea.sflag [#allocation4], %s387
        %s389 = sand.u32 %s169, 1
        %s390 = smul.addr %s389, 64
        %s391 = scalar_lea.vmem [#allocation10], %s390
        %p392 = pneg %p210
        %p393 = pneg %p207
        %s394 = sand.u32 %s31, 1
        %s395 = scalar_lea.sflag [#allocation12], %s394
        %s396 = sand.u32 %s197, 1
        %s397 = scalar_lea.vmem [#allocation11], %s396
        %p398 = pneg %p238
        %p399 = pneg %p235
        %s400 = sand.u32 %s31, 1
        %s401 = scalar_lea.sflag [#allocation12], %s400
        %s402 = sand.u32 %s225, 1
        %s403 = scalar_lea.vmem [#allocation13], %s402
        %s404 = smul.u32 %s36, 2
        %s405 = sadd.s32 %s404, %s38
        %s406 = smul.u32 8, %s405
        %s407 = smul.u32 %s36, 2
        %s408 = sadd.s32 %s407, %s38
        %s409 = smul.u32 8, %s408
        %v411 = vld [vmem:[%s339] sm:$0xf]
        %v412 = vld [vmem:[%s339 + $0x4] sm:$0xf]
        %v413 = vld [vmem:[%s339 + $0x8] sm:$0xf]
        %v414 = vld [vmem:[%s339 + $0xc] sm:$0xf]
        %v415 = vld [vmem:[%s339 + $0x10] sm:$0xf]
        %v416 = vld [vmem:[%s339 + $0x14] sm:$0xf]
        %v417 = vld [vmem:[%s339 + $0x18] sm:$0xf]
        %v418 = vld [vmem:[%s339 + $0x1c] sm:$0xf]
        %v419 = vld [vmem:[%s339 + $0x20] sm:$0xf]
        %v420 = vld [vmem:[%s339 + $0x24] sm:$0xf]
        %v421 = vld [vmem:[%s339 + $0x28] sm:$0xf]
        %v422 = vld [vmem:[%s339 + $0x2c] sm:$0xf]
        %v423 = vld [vmem:[%s339 + $0x30] sm:$0xf]
        %v424 = vld [vmem:[%s339 + $0x34] sm:$0xf]
        %v425 = vld [vmem:[%s339 + $0x38] sm:$0xf]
        %v426 = vld [vmem:[%s339 + $0x3c] sm:$0xf]
        %v427 = vunpack.c.l.bf16 %v411
        %v428 = vunpack.c.l.bf16 %v412
        %v429 = vunpack.c.l.bf16 %v413
        %v430 = vunpack.c.l.bf16 %v414
        %v431 = vunpack.c.l.bf16 %v415
        %v432 = vunpack.c.l.bf16 %v416
        %v433 = vunpack.c.l.bf16 %v417
        %v434 = vunpack.c.l.bf16 %v418
        %v435 = vunpack.c.l.bf16 %v419
        %v436 = vunpack.c.l.bf16 %v420
        %v437 = vunpack.c.l.bf16 %v421
        %v438 = vunpack.c.l.bf16 %v422
        %v439 = vunpack.c.l.bf16 %v423
        %v440 = vunpack.c.l.bf16 %v424
        %v441 = vunpack.c.l.bf16 %v425
        %v442 = vunpack.c.l.bf16 %v426
        %v443 = vld [vmem:[%s347] sm:$0x1]
        %v445 = vlaneseq
        %v446 = vshrl.u32 %v445, 7
        %v447 = vsub.s32 0, %v446
        %v448 = vrot.slane %v443, %v447
        %v450 = vmul.f32 %v427, %v448
        %v451 = vmul.f32 %v428, %v448
        %v452 = vmul.f32 %v429, %v448
        %v453 = vmul.f32 %v430, %v448
        %v454 = vmul.f32 %v431, %v448
        %v455 = vmul.f32 %v432, %v448
        %v456 = vmul.f32 %v433, %v448
        %v457 = vmul.f32 %v434, %v448
        %v458 = vmul.f32 %v435, %v448
        %v459 = vmul.f32 %v436, %v448
        %v460 = vmul.f32 %v437, %v448
        %v461 = vmul.f32 %v438, %v448
        %v462 = vmul.f32 %v439, %v448
        %v463 = vmul.f32 %v440, %v448
        %v464 = vmul.f32 %v441, %v448
        %v465 = vmul.f32 %v442, %v448
        %v466 = vld [vmem:[%s355] sm:$0x1]
        %v468 = vlaneseq
        %v469 = vshrl.u32 %v468, 7
        %v470 = vsub.s32 0, %v469
        %v471 = vrot.slane %v466, %v470
        %v473 = vadd.f32 %v450, %v471
        %v474 = vadd.f32 %v451, %v471
        %v475 = vadd.f32 %v452, %v471
        %v476 = vadd.f32 %v453, %v471
        %v477 = vadd.f32 %v454, %v471
        %v478 = vadd.f32 %v455, %v471
        %v479 = vadd.f32 %v456, %v471
        %v480 = vadd.f32 %v457, %v471
        %v481 = vadd.f32 %v458, %v471
        %v482 = vadd.f32 %v459, %v471
        %v483 = vadd.f32 %v460, %v471
        %v484 = vadd.f32 %v461, %v471
        %v485 = vadd.f32 %v462, %v471
        %v486 = vadd.f32 %v463, %v471
        %v487 = vadd.f32 %v464, %v471
        %v488 = vadd.f32 %v465, %v471
        %vm489 = vcmp.gt.f32.partialorder %v473, 0.0
        %vm490 = vcmp.gt.f32.partialorder %v474, 0.0
        %vm491 = vcmp.gt.f32.partialorder %v475, 0.0
        %vm492 = vcmp.gt.f32.partialorder %v476, 0.0
        %vm493 = vcmp.gt.f32.partialorder %v477, 0.0
        %vm494 = vcmp.gt.f32.partialorder %v478, 0.0
        %vm495 = vcmp.gt.f32.partialorder %v479, 0.0
        %vm496 = vcmp.gt.f32.partialorder %v480, 0.0
        %vm497 = vcmp.gt.f32.partialorder %v481, 0.0
        %vm498 = vcmp.gt.f32.partialorder %v482, 0.0
        %vm499 = vcmp.gt.f32.partialorder %v483, 0.0
        %vm500 = vcmp.gt.f32.partialorder %v484, 0.0
        %vm501 = vcmp.gt.f32.partialorder %v485, 0.0
        %vm502 = vcmp.gt.f32.partialorder %v486, 0.0
        %vm503 = vcmp.gt.f32.partialorder %v487, 0.0
        %vm504 = vcmp.gt.f32.partialorder %v488, 0.0
        %v505 = vmul.f32 %v473, 0.2
        %v506 = vmul.f32 %v474, 0.2
        %v507 = vmul.f32 %v475, 0.2
        %v508 = vmul.f32 %v476, 0.2
        %v509 = vmul.f32 %v477, 0.2
        %v510 = vmul.f32 %v478, 0.2
        %v511 = vmul.f32 %v479, 0.2
        %v512 = vmul.f32 %v480, 0.2
        %v513 = vmul.f32 %v481, 0.2
        %v514 = vmul.f32 %v482, 0.2
        %v515 = vmul.f32 %v483, 0.2
        %v516 = vmul.f32 %v484, 0.2
        %v517 = vmul.f32 %v485, 0.2
        %v518 = vmul.f32 %v486, 0.2
        %v519 = vmul.f32 %v487, 0.2
        %v520 = vmul.f32 %v488, 0.2
        %v521 = vsel %vm489, %v473, %v505
        %v522 = vsel %vm490, %v474, %v506
        %v523 = vsel %vm491, %v475, %v507
        %v524 = vsel %vm492, %v476, %v508
        %v525 = vsel %vm493, %v477, %v509
        %v526 = vsel %vm494, %v478, %v510
        %v527 = vsel %vm495, %v479, %v511
        %v528 = vsel %vm496, %v480, %v512
        %v529 = vsel %vm497, %v481, %v513
        %v530 = vsel %vm498, %v482, %v514
        %v531 = vsel %vm499, %v483, %v515
        %v532 = vsel %vm500, %v484, %v516
        %v533 = vsel %vm501, %v485, %v517
        %v534 = vsel %vm502, %v486, %v518
        %v535 = vsel %vm503, %v487, %v519
        %v536 = vsel %vm504, %v488, %v520
        %v537 = vpack.c.bf16 %v522, %v521
        %v538 = vpack.c.bf16 %v524, %v523
        %v539 = vpack.c.bf16 %v526, %v525
        %v540 = vpack.c.bf16 %v528, %v527
        %v541 = vpack.c.bf16 %v530, %v529
        %v542 = vpack.c.bf16 %v532, %v531
        %v543 = vpack.c.bf16 %v534, %v533
        %v544 = vpack.c.bf16 %v536, %v535
        %v545 = vld [vmem:[#allocation8] sm:$0xf]
        %vm546 = vcmask 64512
        %v548 = vsel %vm546, %v537, 0
        %v551 = vsel %vm546, %v538, 0
        %v554 = vsel %vm546, %v539, 0
        %v557 = vsel %vm546, %v540, 0
        %v560 = vsel %vm546, %v541, 0
        %v563 = vsel %vm546, %v542, 0
        %v566 = vsel %vm546, %v543, 0
        %v569 = vsel %vm546, %v544, 0
        %vm571 = vcmask 1043456
        %v573 = vsel %vm571, %v545, 0
        %575 = vmatprep.subr.bf16.mxu0 0
        %576 = vmatpush1.bf16.msra.mxu0 %v573
        %577 = vmatprep.subr.bf16.mxu0 0
        %578 = vmatpush1.bf16.msra.mxu0 0
        %579 = vmatprep.subr.bf16.mxu0 0
        %580 = vmatpush1.bf16.msra.mxu0 0
        %581 = vmatprep.subr.bf16.mxu0 0
        %582 = vmatpush1.bf16.msra.mxu0 0
        %583 = vmatprep.subr.bf16.mxu0 0
        %584 = vmatpush1.bf16.msra.mxu0 0
        %585 = vmatprep.subr.bf16.mxu0 0
        %586 = vmatpush1.bf16.msra.mxu0 0
        %587 = vmatprep.subr.bf16.mxu0 0
        %588 = vmatpush1.bf16.msra.mxu0 0
        %589 = vmatprep.subr.bf16.mxu0 0
        %590 = vmatpush1.bf16.msra.mxu0 0
        %591 = vmatprep.subr.bf16.mxu0 0
        %592 = vmatpush1.bf16.msra.mxu0 0
        %593 = vmatprep.subr.bf16.mxu0 0
        %594 = vmatpush1.bf16.msra.mxu0 0
        %595 = vmatprep.subr.bf16.mxu0 0
        %596 = vmatpush1.bf16.msra.mxu0 0
        %597 = vmatprep.subr.bf16.mxu0 0
        %598 = vmatpush1.bf16.msra.mxu0 0
        %599 = vmatprep.subr.bf16.mxu0 0
        %600 = vmatpush1.bf16.msra.mxu0 0
        %601 = vmatprep.subr.bf16.mxu0 0
        %602 = vmatpush1.bf16.msra.mxu0 0
        %603 = vmatprep.subr.bf16.mxu0 0
        %604 = vmatpush1.bf16.msra.mxu0 0
        %605 = vmatprep.subr.bf16.mxu0 0
        %606 = vmatpush1.bf16.msra.mxu0 0
        %607 = vmatprep.mubr.bf16.mxu0 0
        %608 = vmatmul.mubr.bf16.gmra.mrb[0].mxu0 %v548
        %v609 = vpop.f32.mrb[0].mxu0
        %v610 = vadd.f32 0.0, %v609
        %v611 = vpop.f32.mrb[0].mxu0
        %v612 = vpop.f32.mrb[0].mxu0
        %v613 = vadd.f32 0.0, %v612
        %v614 = vpop.f32.mrb[0].mxu0
        %615 = vmatprep.mubr.bf16.mxu0 0
        %616 = vmatmul.mubr.bf16.gmra.mrb[0].mxu0 %v551
        %v617 = vpop.f32.mrb[0].mxu0
        %v618 = vadd.f32 0.0, %v617
        %v619 = vpop.f32.mrb[0].mxu0
        %v620 = vpop.f32.mrb[0].mxu0
        %v621 = vadd.f32 0.0, %v620
        %v622 = vpop.f32.mrb[0].mxu0
        %623 = vmatprep.mubr.bf16.mxu0 0
        %624 = vmatmul.mubr.bf16.gmra.mrb[0].mxu0 %v554
        %v625 = vpop.f32.mrb[0].mxu0
        %v626 = vadd.f32 0.0, %v625
        %v627 = vpop.f32.mrb[0].mxu0
        %v628 = vpop.f32.mrb[0].mxu0
        %v629 = vadd.f32 0.0, %v628
        %v630 = vpop.f32.mrb[0].mxu0
        %631 = vmatprep.mubr.bf16.mxu0 0
        %632 = vmatmul.mubr.bf16.gmra.mrb[0].mxu0 %v557
        %v633 = vpop.f32.mrb[0].mxu0
        %v634 = vadd.f32 0.0, %v633
        %v635 = vpop.f32.mrb[0].mxu0
        %v636 = vpop.f32.mrb[0].mxu0
        %v637 = vadd.f32 0.0, %v636
        %v638 = vpop.f32.mrb[0].mxu0
        %639 = vmatprep.mubr.bf16.mxu0 0
        %640 = vmatmul.mubr.bf16.gmra.mrb[0].mxu0 %v560
        %v641 = vpop.f32.mrb[0].mxu0
        %v642 = vadd.f32 0.0, %v641
        %v643 = vpop.f32.mrb[0].mxu0
        %v644 = vpop.f32.mrb[0].mxu0
        %v645 = vadd.f32 0.0, %v644
        %v646 = vpop.f32.mrb[0].mxu0
        %647 = vmatprep.mubr.bf16.mxu0 0
        %648 = vmatmul.mubr.bf16.gmra.mrb[0].mxu0 %v563
        %v649 = vpop.f32.mrb[0].mxu0
        %v650 = vadd.f32 0.0, %v649
        %v651 = vpop.f32.mrb[0].mxu0
        %v652 = vpop.f32.mrb[0].mxu0
        %v653 = vadd.f32 0.0, %v652
        %v654 = vpop.f32.mrb[0].mxu0
        %655 = vmatprep.mubr.bf16.mxu0 0
        %656 = vmatmul.mubr.bf16.gmra.mrb[0].mxu0 %v566
        %v657 = vpop.f32.mrb[0].mxu0
        %v658 = vadd.f32 0.0, %v657
        %v659 = vpop.f32.mrb[0].mxu0
        %v660 = vpop.f32.mrb[0].mxu0
        %v661 = vadd.f32 0.0, %v660
        %v662 = vpop.f32.mrb[0].mxu0
        %663 = vmatprep.mubr.bf16.mxu0 0
        %664 = vmatmul.mubr.bf16.gmra.mrb[0].mxu0 %v569
        %v665 = vpop.f32.mrb[0].mxu0
        %v666 = vadd.f32 0.0, %v665
        %v667 = vpop.f32.mrb[0].mxu0
        %v668 = vpop.f32.mrb[0].mxu0
        %v669 = vadd.f32 0.0, %v668
        %v670 = vpop.f32.mrb[0].mxu0
        %671 = vdwg.mxu0
        %v672 = vpack.c.bf16 %v613, %v610
        %v673 = vpack.c.bf16 %v621, %v618
        %v674 = vpack.c.bf16 %v629, %v626
        %v675 = vpack.c.bf16 %v637, %v634
        %v676 = vpack.c.bf16 %v645, %v642
        %v677 = vpack.c.bf16 %v653, %v650
        %v678 = vpack.c.bf16 %v661, %v658
        %v679 = vpack.c.bf16 %v669, %v666
        %v688 = vunpack.c.l.b16 %v672
        %v689 = vunpack.c.h.b16 %v672
        %v690 = vunpack.c.l.b16 %v673
        %v691 = vunpack.c.h.b16 %v673
        %v692 = vunpack.c.l.b16 %v674
        %v693 = vunpack.c.h.b16 %v674
        %v694 = vunpack.c.l.b16 %v675
        %v695 = vunpack.c.h.b16 %v675
        %v696 = vunpack.c.l.b16 %v676
        %v697 = vunpack.c.h.b16 %v676
        %v698 = vunpack.c.l.b16 %v677
        %v699 = vunpack.c.h.b16 %v677
        %v700 = vunpack.c.l.b16 %v678
        %v701 = vunpack.c.h.b16 %v678
        %v702 = vunpack.c.l.b16 %v679
        %v703 = vunpack.c.h.b16 %v679
        %v704 = vpack.c.b16 %v688, %v688
        %v705 = vpack.c.b16 %v689, %v689
        %v706 = vpack.c.b16 %v690, %v690
        %v707 = vpack.c.b16 %v691, %v691
        %v708 = vpack.c.b16 %v692, %v692
        %v709 = vpack.c.b16 %v693, %v693
        %v710 = vpack.c.b16 %v694, %v694
        %v711 = vpack.c.b16 %v695, %v695
        %v712 = vpack.c.b16 %v696, %v696
        %v713 = vpack.c.b16 %v697, %v697
        %v714 = vpack.c.b16 %v698, %v698
        %v715 = vpack.c.b16 %v699, %v699
        %v716 = vpack.c.b16 %v700, %v700
        %v717 = vpack.c.b16 %v701, %v701
        %v718 = vpack.c.b16 %v702, %v702
        %v719 = vpack.c.b16 %v703, %v703
        %vm736 = vcmask 27648
        %737 = vst.msk [vmem:[%s391] sm:$0xf] %vm736, %v704
        %738 = vst.msk [vmem:[%s391 + $0x4] sm:$0xf] %vm736, %v705
        %739 = vst.msk [vmem:[%s391 + $0x8] sm:$0xf] %vm736, %v706
        %740 = vst.msk [vmem:[%s391 + $0xc] sm:$0xf] %vm736, %v707
        %741 = vst.msk [vmem:[%s391 + $0x10] sm:$0xf] %vm736, %v708
        %742 = vst.msk [vmem:[%s391 + $0x14] sm:$0xf] %vm736, %v709
        %743 = vst.msk [vmem:[%s391 + $0x18] sm:$0xf] %vm736, %v710
        %744 = vst.msk [vmem:[%s391 + $0x1c] sm:$0xf] %vm736, %v711
        %745 = vst.msk [vmem:[%s391 + $0x20] sm:$0xf] %vm736, %v712
        %746 = vst.msk [vmem:[%s391 + $0x24] sm:$0xf] %vm736, %v713
        %747 = vst.msk [vmem:[%s391 + $0x28] sm:$0xf] %vm736, %v714
        %748 = vst.msk [vmem:[%s391 + $0x2c] sm:$0xf] %vm736, %v715
        %749 = vst.msk [vmem:[%s391 + $0x30] sm:$0xf] %vm736, %v716
        %750 = vst.msk [vmem:[%s391 + $0x34] sm:$0xf] %vm736, %v717
        %751 = vst.msk [vmem:[%s391 + $0x38] sm:$0xf] %vm736, %v718
        %752 = vst.msk [vmem:[%s391 + $0x3c] sm:$0xf] %vm736, %v719
        %v753 = vunpack.c.l.bf16 %v672
        %v754 = vunpack.c.h.bf16 %v672
        %v755 = vunpack.c.l.bf16 %v673
        %v756 = vunpack.c.h.bf16 %v673
        %v757 = vunpack.c.l.bf16 %v674
        %v758 = vunpack.c.h.bf16 %v674
        %v759 = vunpack.c.l.bf16 %v675
        %v760 = vunpack.c.h.bf16 %v675
        %v761 = vunpack.c.l.bf16 %v676
        %v762 = vunpack.c.h.bf16 %v676
        %v763 = vunpack.c.l.bf16 %v677
        %v764 = vunpack.c.h.bf16 %v677
        %v765 = vunpack.c.l.bf16 %v678
        %v766 = vunpack.c.h.bf16 %v678
        %v767 = vunpack.c.l.bf16 %v679
        %v768 = vunpack.c.h.bf16 %v679
        %vm769 = vcmask 31744
        %v770 = vsel %vm769, %v753, 0.0
        %v771 = vsel %vm769, %v754, 0.0
        %v772 = vadd.f32 %v770, %v771
        %v773 = vsel %vm769, %v755, 0.0
        %v774 = vadd.f32 %v772, %v773
        %v775 = vsel %vm769, %v756, 0.0
        %v776 = vadd.f32 %v774, %v775
        %v777 = vsel %vm769, %v757, 0.0
        %v778 = vadd.f32 %v776, %v777
        %v779 = vsel %vm769, %v758, 0.0
        %v780 = vadd.f32 %v778, %v779
        %v781 = vsel %vm769, %v759, 0.0
        %v782 = vadd.f32 %v780, %v781
        %v783 = vsel %vm769, %v760, 0.0
        %v784 = vadd.f32 %v782, %v783
        %v785 = vsel %vm769, %v761, 0.0
        %v786 = vadd.f32 %v784, %v785
        %v787 = vsel %vm769, %v762, 0.0
        %v788 = vadd.f32 %v786, %v787
        %v789 = vsel %vm769, %v763, 0.0
        %v790 = vadd.f32 %v788, %v789
        %v791 = vsel %vm769, %v764, 0.0
        %v792 = vadd.f32 %v790, %v791
        %v793 = vsel %vm769, %v765, 0.0
        %v794 = vadd.f32 %v792, %v793
        %v795 = vsel %vm769, %v766, 0.0
        %v796 = vadd.f32 %v794, %v795
        %v797 = vsel %vm769, %v767, 0.0
        %v798 = vadd.f32 %v796, %v797
        %v799 = vsel %vm769, %v768, 0.0
        %v800 = vadd.f32 %v798, %v799
        %v801 = vrot.slane %v800, 4
        %v802 = vadd.f32 %v800, %v801
        %v803 = vrot.slane %v802, 2
        %v804 = vadd.f32 %v802, %v803
        %v805 = vrot.slane %v804, 1
        %v806 = vadd.f32 %v804, %v805
        %v807 = vmul.f32 %v753, %v753
        %v808 = vmul.f32 %v754, %v754
        %v809 = vmul.f32 %v755, %v755
        %v810 = vmul.f32 %v756, %v756
        %v811 = vmul.f32 %v757, %v757
        %v812 = vmul.f32 %v758, %v758
        %v813 = vmul.f32 %v759, %v759
        %v814 = vmul.f32 %v760, %v760
        %v815 = vmul.f32 %v761, %v761
        %v816 = vmul.f32 %v762, %v762
        %v817 = vmul.f32 %v763, %v763
        %v818 = vmul.f32 %v764, %v764
        %v819 = vmul.f32 %v765, %v765
        %v820 = vmul.f32 %v766, %v766
        %v821 = vmul.f32 %v767, %v767
        %v822 = vmul.f32 %v768, %v768
        %v823 = vsel %vm769, %v807, 0.0
        %v824 = vsel %vm769, %v808, 0.0
        %v825 = vadd.f32 %v823, %v824
        %v826 = vsel %vm769, %v809, 0.0
        %v827 = vadd.f32 %v825, %v826
        %v828 = vsel %vm769, %v810, 0.0
        %v829 = vadd.f32 %v827, %v828
        %v830 = vsel %vm769, %v811, 0.0
        %v831 = vadd.f32 %v829, %v830
        %v832 = vsel %vm769, %v812, 0.0
        %v833 = vadd.f32 %v831, %v832
        %v834 = vsel %vm769, %v813, 0.0
        %v835 = vadd.f32 %v833, %v834
        %v836 = vsel %vm769, %v814, 0.0
        %v837 = vadd.f32 %v835, %v836
        %v838 = vsel %vm769, %v815, 0.0
        %v839 = vadd.f32 %v837, %v838
        %v840 = vsel %vm769, %v816, 0.0
        %v841 = vadd.f32 %v839, %v840
        %v842 = vsel %vm769, %v817, 0.0
        %v843 = vadd.f32 %v841, %v842
        %v844 = vsel %vm769, %v818, 0.0
        %v845 = vadd.f32 %v843, %v844
        %v846 = vsel %vm769, %v819, 0.0
        %v847 = vadd.f32 %v845, %v846
        %v848 = vsel %vm769, %v820, 0.0
        %v849 = vadd.f32 %v847, %v848
        %v850 = vsel %vm769, %v821, 0.0
        %v851 = vadd.f32 %v849, %v850
        %v852 = vsel %vm769, %v822, 0.0
        %v853 = vadd.f32 %v851, %v852
        %v854 = vrot.slane %v853, 4
        %v855 = vadd.f32 %v853, %v854
        %v856 = vrot.slane %v855, 2
        %v857 = vadd.f32 %v855, %v856
        %v858 = vrot.slane %v857, 1
        %v859 = vadd.f32 %v857, %v858
        %p860 = scmp.eq.s32.totalorder %s38, 0
        // Predicated region
        $region53: #{inverted_res_block_nhwc.6} parent=35 // pred_check
          %p861 = pneg %p860
        $region54: #{inverted_res_block_nhwc.6} parent=35 // pred_check_branch
          %863 = sbr.rel (%p861) target = $region56
        $region55: #{inverted_res_block_nhwc.6} parent=35 // pred_region
          %vm864 = vcmask 24576
          %865 = vst.msk [vmem:[%s397] sm:$0x1] %vm864, %v806
          %866 = vst.msk [vmem:[%s403] sm:$0x1] %vm864, %v859
        $region56: #{inverted_res_block_nhwc.6} parent=35 // pred_fallthru
          _
        %p867 = scmp.ne.s32.totalorder %s38, 0
        // Predicated region
        $region57: #{inverted_res_block_nhwc.6} parent=35 // pred_check
          %p868 = pneg %p867
        $region58: #{inverted_res_block_nhwc.6} parent=35 // pred_check_branch
          %870 = sbr.rel (%p868) target = $region60
        $region59: #{inverted_res_block_nhwc.6} parent=35 // pred_region
          %v871 = vld [vmem:[%s397] sm:$0x1]
          %v872 = vadd.f32 %v871, %v806
          %vm873 = vcmask 24576
          %874 = vst.msk [vmem:[%s397] sm:$0x1] %vm873, %v872
          %v875 = vld [vmem:[%s403] sm:$0x1]
          %v876 = vadd.f32 %v875, %v859
          %877 = vst.msk [vmem:[%s403] sm:$0x1] %vm873, %v876
        $region60: #{inverted_res_block_nhwc.6} parent=35 // pred_fallthru
          _
        %s878 = sand.u32 %s169, 1
        %s879 = scalar_lea.sflag [#allocation4], %s878
        %s880 = sand.u32 %s169, 1
        %s881 = smul.addr %s880, 64
        %s882 = scalar_lea.vmem [#allocation10], %s881
        %s883 = sand.u32 %s31, 1
        %s884 = scalar_lea.sflag [#allocation12], %s883
        %s885 = sand.u32 %s197, 1
        %s886 = scalar_lea.vmem [#allocation11], %s885
        %s887 = sand.u32 %s31, 1
        %s888 = scalar_lea.sflag [#allocation12], %s887
        %s889 = sand.u32 %s225, 1
        %s890 = scalar_lea.vmem [#allocation13], %s889
        // Predicated region
        $region61: #{inverted_res_block_nhwc.6} parent=35 // pred_check
          %p891 = pneg %p179
        $region62: #{inverted_res_block_nhwc.6} parent=35 // pred_check_branch
          %893 = sbr.rel (%p891) target = $region64
        $region63: #{inverted_res_block_nhwc.6} parent=35 // pred_region
          %s894 = smul.u32 %s36, 2
          %s895 = sadd.s32 %s894, %s38
          %s896 = smul.u32 8, %s895
          %s898 = ssub.s32 1024, 1024
          %899 = vsyncadd %s879, %s898
          %s900 = smul.addr %s896, 2
          %s901 = smul.addr %s37, 32
          %s902 = sadd.s32 %s900, %s901
          %s903 = smul.addr %s902, 64
          %s904 = scalar_lea.hbm %s4, %s903
          %s905 = sshll.u32 %s882, 4
          %s906 = int_to_ptr.vmem [resolvable:$true] %s905
          %911 = dma.vmem_to_hbm [thread:$0]  %s906, 1024, %s904, %s879, 64, 64, 4
        $region64: #{inverted_res_block_nhwc.6} parent=35 // pred_fallthru
          _
        // Predicated region
        $region65: #{inverted_res_block_nhwc.6} parent=35 // pred_check
          %p912 = pneg %p207
        $region66: #{inverted_res_block_nhwc.6} parent=35 // pred_check_branch
          %914 = sbr.rel (%p912) target = $region68
        $region67: #{inverted_res_block_nhwc.6} parent=35 // pred_region
          %s916 = ssub.s32 16, 16
          %917 = vsyncadd %s884, %s916
          %s918 = smul.addr %s36, 2
          %s919 = sadd.s32 %s37, %s918
          %s920 = smul.addr %s919, 16
          %s921 = scalar_lea.hbm %s5, %s920
          %s923 = sshll.u32 %s886, 4
          %s924 = int_to_ptr.vmem [resolvable:$true] %s923
          %926 = dma.vmem_to_hbm [thread:$0]  %s924, 16, %s921, %s884
        $region68: #{inverted_res_block_nhwc.6} parent=35 // pred_fallthru
          _
        // Predicated region
        $region69: #{inverted_res_block_nhwc.6} parent=35 // pred_check
          %p927 = pneg %p235
        $region70: #{inverted_res_block_nhwc.6} parent=35 // pred_check_branch
          %929 = sbr.rel (%p927) target = $region72
        $region71: #{inverted_res_block_nhwc.6} parent=35 // pred_region
          %s931 = ssub.s32 16, 16
          %932 = vsyncadd %s888, %s931
          %s933 = smul.addr %s36, 2
          %s934 = sadd.s32 %s37, %s933
          %s935 = smul.addr %s934, 16
          %s936 = scalar_lea.hbm %s6, %s935
          %s938 = sshll.u32 %s890, 4
          %s939 = int_to_ptr.vmem [resolvable:$true] %s938
          %941 = dma.vmem_to_hbm [thread:$0]  %s939, 16, %s936, %s888
        $region72: #{inverted_res_block_nhwc.6} parent=35 // pred_fallthru
          _
      $region36: #{inverted_res_block_nhwc.6} parent=5 // pred_fallthru
        _
      %p942 = scmp.le.s32.totalorder 2, %s26
      // Predicated region
      $region73: #{inverted_res_block_nhwc.6} parent=5 // pred_check
        %p943 = pneg %p942
      $region74: #{inverted_res_block_nhwc.6} parent=5 // pred_check_branch
        %945 = sbr.rel (%p943) target = $region76
      $region75: #{inverted_res_block_nhwc.6} parent=5 // pred_region
        %s946 = ssub.s32 %s26, 2
        // Predicated region
        $region77: #{inverted_res_block_nhwc.6} parent=75 // pred_check
          %p947 = pneg %p185
        $region78: #{inverted_res_block_nhwc.6} parent=75 // pred_check_branch
          %949 = sbr.rel (%p947) target = $region80
        $region79: #{inverted_res_block_nhwc.6} parent=75 // pred_region
          %s950 = sand.u32 %s170, 1
          %s951 = scalar_lea.sflag [#allocation4], %s950
          %s952 = sand.u32 %s170, 1
          %s953 = smul.addr %s952, 64
          %s954 = scalar_lea.vmem [#allocation10], %s953
          %955 = dma.done %s951, 1024
        $region80: #{inverted_res_block_nhwc.6} parent=75 // pred_fallthru
          _
        // Predicated region
        $region81: #{inverted_res_block_nhwc.6} parent=75 // pred_check
          %p956 = pneg %p213
        $region82: #{inverted_res_block_nhwc.6} parent=75 // pred_check_branch
          %958 = sbr.rel (%p956) target = $region84
        $region83: #{inverted_res_block_nhwc.6} parent=75 // pred_region
          %s959 = sand.u32 %s32, 1
          %s960 = scalar_lea.sflag [#allocation12], %s959
          %s961 = sand.u32 %s198, 1
          %s962 = scalar_lea.vmem [#allocation11], %s961
          %963 = dma.done %s960, 16
        $region84: #{inverted_res_block_nhwc.6} parent=75 // pred_fallthru
          _
        // Predicated region
        $region85: #{inverted_res_block_nhwc.6} parent=75 // pred_check
          %p964 = pneg %p241
        $region86: #{inverted_res_block_nhwc.6} parent=75 // pred_check_branch
          %966 = sbr.rel (%p964) target = $region88
        $region87: #{inverted_res_block_nhwc.6} parent=75 // pred_region
          %s967 = sand.u32 %s32, 1
          %s968 = scalar_lea.sflag [#allocation12], %s967
          %s969 = sand.u32 %s226, 1
          %s970 = scalar_lea.vmem [#allocation13], %s969
          %971 = dma.done %s968, 16
        $region88: #{inverted_res_block_nhwc.6} parent=75 // pred_fallthru
          _
      $region76: #{inverted_res_block_nhwc.6} parent=5 // pred_fallthru
        _
    $region6: #{inverted_res_block_nhwc.6} parent=1 // loop_footer
      %s30 = sadd.s32 1, %s26
    $region7: #{inverted_res_block_nhwc.6} parent=1 // loop_footer_branch
      %25 = sbr.rel target = $region3
    $region8: #{inverted_res_block_nhwc.6} parent=1 // loop_exit
      _
    %972 = vsyncpa [#allocation3], 1
    %s973 = scalar_lea.sflag [#allocation3], 1
    %974 = vsyncpa %s973, 1
    %975 = vsyncpa [#allocation6], 1
    %s976 = scalar_lea.sflag [#allocation6], 1
    %977 = vsyncpa %s976, 1
    %978 = vsyncpa [#allocation9], 1
    %979 = vsyncpa [#allocation4], 1
    %s980 = scalar_lea.sflag [#allocation4], 1
    %981 = vsyncpa %s980, 1
    %982 = vsyncpa [#allocation12], 1
    %s983 = scalar_lea.sflag [#allocation12], 1
    %984 = vsyncpa %s983, 1

// kernel: inverted_res_block_nhwc.7
$region0: #{inverted_res_block_nhwc.7}
  #allocation0 [shape = 'u32[]', space=smem, size = 0x4, offset = 0x4, fixed_abs, tag = 'smem constant byte address 0x4 - core index']
  #allocation1 [shape = 'u32[144,128]{1,0:T(1,128)}', space=vmem, size = 0x12000, scoped, tag = 'internal scratch']
  %s0 = inlined_call_operand.hbm [shape: bf16[2,16,16,4], index: 0, kind: input, shape index: {}]
  %s1 = inlined_call_operand.hbm [shape: f32[2,1,4], index: 1, kind: input, shape index: {}]
  %s2 = inlined_call_operand.hbm [shape: f32[2,1,4], index: 2, kind: input, shape index: {}]
  %s3 = inlined_call_operand.hbm [shape: bf16[2,16,16,4], index: 3, kind: input, shape index: {}]
  %s4 = inlined_call_operand.hbm [shape: f32[2,16,16,4], index: 4, kind: output, shape index: {}]
  %s5 = sld [smem:[#allocation0]]
  $region65: #{inverted_res_block_nhwc.7} parent=0
    _
  %s7 = ssub.s32 1, %s5
  %s8 = scalar_select 0, %s7, %s5
  $region1: #{inverted_res_block_nhwc.7} parent=0
    #allocation2 [shape = 'u8[65536]{0}', space=vmem, size = 0x10000, scoped, tag = 'input window, operand 0']
    #allocation3 [shape = 's32[2]{0}', space=sflag, size = 0x8, scoped, tag = 'scoped memory for inverted_res_block_nhwc.7']
    #allocation4 [shape = 's32[2]{0}', space=sflag, size = 0x8, scoped, tag = 'scoped memory for inverted_res_block_nhwc.7']
    #allocation5 [shape = 'u8[1024]{0}', space=vmem, size = 0x400, scoped, tag = 'input window, operand 1']
    #allocation6 [shape = 's32[2]{0}', space=sflag, size = 0x8, scoped, tag = 'scoped memory for inverted_res_block_nhwc.7']
    #allocation7 [shape = 'u8[1024]{0}', space=vmem, size = 0x400, scoped, tag = 'input window, operand 2']
    #allocation8 [shape = 'u8[65536]{0}', space=vmem, size = 0x10000, scoped, tag = 'input window, operand 3']
    #allocation9 [shape = 's32[2]{0}', space=sflag, size = 0x8, scoped, tag = 'scoped memory for inverted_res_block_nhwc.7']
    #allocation10 [shape = 'u8[131072]{0}', space=vmem, size = 0x20000, scoped, tag = 'output window, operand 0']
    %9 = vsyncpa [#allocation3], 0
    %s10 = scalar_lea.sflag [#allocation3], 1
    %11 = vsyncpa %s10, 0
    %12 = vsyncpa [#allocation6], 0
    %s13 = scalar_lea.sflag [#allocation6], 1
    %14 = vsyncpa %s13, 0
    %15 = vsyncpa [#allocation9], 0
    %s16 = scalar_lea.sflag [#allocation9], 1
    %17 = vsyncpa %s16, 0
    %18 = vsyncpa [#allocation4], 0
    %s19 = scalar_lea.sflag [#allocation4], 1
    %20 = vsyncpa %s19, 0
    loop: start=0, step=1, limit=6
    $region2: #{inverted_res_block_nhwc.7} parent=1 // loop_pre_header
      _
    $region3: #{inverted_res_block_nhwc.7} parent=1 // loop_header
      %s22 = sphi 0, %s26
      %p23 = scmp.ge.s32.totalorder %s22, 6
      %s29 = sphi 0, %s41
      %s30 = sphi 0, %s37
      %s31 = sphi 0, %s29
      %s32 = sphi 0, %s30
      %s33 = sphi 0, %s31
      %s34 = sphi 0, %s32
      %s46 = sphi 0, %s48
      %s49 = sphi 0, %s46
      %s50 = sphi 0, %s49
      %s66 = sphi 0, %s50
      %s72 = sphi 0, %s74
      %s75 = sphi 0, %s72
      %s76 = sphi 0, %s75
      %s92 = sphi 0, %s76
      %s98 = sphi 0, %s100
      %s101 = sphi 0, %s98
      %s102 = sphi 0, %s101
      %s118 = sphi 0, %s102
      %s126 = sphi 0, %s128
      %s129 = sphi 0, %s126
      %s130 = sphi 0, %s129
      %s146 = sphi 0, %s130
      %s154 = sphi 0, %s156
      %s157 = sphi 0, %s154
      %s158 = sphi 0, %s157
      %s174 = sphi 0, %s158
    $region4: #{inverted_res_block_nhwc.7} parent=1 // loop_header_branch
      %25 = sbr.rel (%p23) target = $region8
    $region5: #{inverted_res_block_nhwc.7} parent=1 // loop_body
      %s27 = ssub.s32 %s22, 1
      %s28 = ssub.s32 %s22, 2
      %s35 = sadd.s32 1, %s30
      %p36 = scmp.ge.s32.totalorder %s35, 2
      %s37 = scalar_select %p36, 0, %s35
      %s38 = sadd.s32 1, %s29
      %s39 = scalar_select %p36, %s38, %s29
      %p40 = scmp.ge.s32.totalorder %s39, 2
      %s41 = scalar_select %p40, 0, %s39
      %s42 = ssub.s32 %s29, %s41
      %s43 = ssub.s32 %s30, %s37
      %s44 = sor.u32 %s42, %s43
      %p45 = scmp.eq.s32.totalorder %s44, 0
      %s47 = sadd.s32 %s46, 1
      %s48 = scalar_select %p45, %s46, %s47
      %p51 = pneg %p45
      %p52 = scmp.eq.s32.totalorder %s22, 3
      %p53 = por %p51, %p52
      %p54 = scmp.ne.s32.totalorder %s46, %s49
      %p55 = scmp.eq.s32.totalorder %s22, 0
      %p56 = por %p54, %p55
      %p57 = scmp.ne.s32.totalorder %s46, %s49
      %p58 = scmp.eq.s32.totalorder %s27, 3
      %p59 = por %p57, %p58
      %p60 = scmp.ne.s32.totalorder %s49, %s50
      %p61 = scmp.eq.s32.totalorder %s27, 0
      %p62 = por %p60, %p61
      %p63 = scmp.ne.s32.totalorder %s49, %s50
      %p64 = scmp.eq.s32.totalorder %s28, 3
      %p65 = por %p63, %p64
      %p67 = scmp.ne.s32.totalorder %s50, %s66
      %p68 = scmp.eq.s32.totalorder %s28, 0
      %p69 = por %p67, %p68
      %s70 = ssub.s32 %s29, %s41
      %p71 = scmp.eq.s32.totalorder %s70, 0
      %s73 = sadd.s32 %s72, 1
      %s74 = scalar_select %p71, %s72, %s73
      %p77 = pneg %p71
      %p78 = scmp.eq.s32.totalorder %s22, 3
      %p79 = por %p77, %p78
      %p80 = scmp.ne.s32.totalorder %s72, %s75
      %p81 = scmp.eq.s32.totalorder %s22, 0
      %p82 = por %p80, %p81
      %p83 = scmp.ne.s32.totalorder %s72, %s75
      %p84 = scmp.eq.s32.totalorder %s27, 3
      %p85 = por %p83, %p84
      %p86 = scmp.ne.s32.totalorder %s75, %s76
      %p87 = scmp.eq.s32.totalorder %s27, 0
      %p88 = por %p86, %p87
      %p89 = scmp.ne.s32.totalorder %s75, %s76
      %p90 = scmp.eq.s32.totalorder %s28, 3
      %p91 = por %p89, %p90
      %p93 = scmp.ne.s32.totalorder %s76, %s92
      %p94 = scmp.eq.s32.totalorder %s28, 0
      %p95 = por %p93, %p94
      %s96 = ssub.s32 %s29, %s41
      %p97 = scmp.eq.s32.totalorder %s96, 0
      %s99 = sadd.s32 %s98, 1
      %s100 = scalar_select %p97, %s98, %s99
      %p103 = pneg %p97
      %p104 = scmp.eq.s32.totalorder %s22, 3
      %p105 = por %p103, %p104
      %p106 = scmp.ne.s32.totalorder %s98, %s101
      %p107 = scmp.eq.s32.totalorder %s22, 0
      %p108 = por %p106, %p107
      %p109 = scmp.ne.s32.totalorder %s98, %s101
      %p110 = scmp.eq.s32.totalorder %s27, 3
      %p111 = por %p109, %p110
      %p112 = scmp.ne.s32.totalorder %s101, %s102
      %p113 = scmp.eq.s32.totalorder %s27, 0
      %p114 = por %p112, %p113
      %p115 = scmp.ne.s32.totalorder %s101, %s102
      %p116 = scmp.eq.s32.totalorder %s28, 3
      %p117 = por %p115, %p116
      %p119 = scmp.ne.s32.totalorder %s102, %s118
      %p120 = scmp.eq.s32.totalorder %s28, 0
      %p121 = por %p119, %p120
      %s122 = ssub.s32 %s29, %s41
      %s123 = ssub.s32 %s30, %s37
      %s124 = sor.u32 %s122, %s123
      %p125 = scmp.eq.s32.totalorder %s124, 0
      %s127 = sadd.s32 %s126, 1
      %s128 = scalar_select %p125, %s126, %s127
      %p131 = pneg %p125
      %p132 = scmp.eq.s32.totalorder %s22, 3
      %p133 = por %p131, %p132
      %p134 = scmp.ne.s32.totalorder %s126, %s129
      %p135 = scmp.eq.s32.totalorder %s22, 0
      %p136 = por %p134, %p135
      %p137 = scmp.ne.s32.totalorder %s126, %s129
      %p138 = scmp.eq.s32.totalorder %s27, 3
      %p139 = por %p137, %p138
      %p140 = scmp.ne.s32.totalorder %s129, %s130
      %p141 = scmp.eq.s32.totalorder %s27, 0
      %p142 = por %p140, %p141
      %p143 = scmp.ne.s32.totalorder %s129, %s130
      %p144 = scmp.eq.s32.totalorder %s28, 3
      %p145 = por %p143, %p144
      %p147 = scmp.ne.s32.totalorder %s130, %s146
      %p148 = scmp.eq.s32.totalorder %s28, 0
      %p149 = por %p147, %p148
      %s150 = ssub.s32 %s29, %s41
      %s151 = ssub.s32 %s30, %s37
      %s152 = sor.u32 %s150, %s151
      %p153 = scmp.eq.s32.totalorder %s152, 0
      %s155 = sadd.s32 %s154, 1
      %s156 = scalar_select %p153, %s154, %s155
      %p159 = pneg %p153
      %p160 = scmp.eq.s32.totalorder %s22, 3
      %p161 = por %p159, %p160
      %p162 = scmp.ne.s32.totalorder %s154, %s157
      %p163 = scmp.eq.s32.totalorder %s22, 0
      %p164 = por %p162, %p163
      %p165 = scmp.ne.s32.totalorder %s154, %s157
      %p166 = scmp.eq.s32.totalorder %s27, 3
      %p167 = por %p165, %p166
      %p168 = scmp.ne.s32.totalorder %s157, %s158
      %p169 = scmp.eq.s32.totalorder %s27, 0
      %p170 = por %p168, %p169
      %p171 = scmp.ne.s32.totalorder %s157, %s158
      %p172 = scmp.eq.s32.totalorder %s28, 3
      %p173 = por %p171, %p172
      %p175 = scmp.ne.s32.totalorder %s158, %s174
      %p176 = scmp.eq.s32.totalorder %s28, 0
      %p177 = por %p175, %p176
      %p178 = scmp.le.s32.totalorder 1, %s22
      %p179 = scmp.lt.s32.totalorder %s22, 5
      %p180 = pnand %p178, %p179
      %p181 = pneg %p180
      // Predicated region
      $region9: #{inverted_res_block_nhwc.7} parent=5 // pred_check
        _
      $region10: #{inverted_res_block_nhwc.7} parent=5 // pred_check_branch
        %183 = sbr.rel (%p180) target = $region12
      $region11: #{inverted_res_block_nhwc.7} parent=5 // pred_region
        %s184 = ssub.s32 %s22, 1
      $region12: #{inverted_res_block_nhwc.7} parent=5 // pred_fallthru
        _
      %p185 = scmp.lt.s32.totalorder %s22, 4
      // Predicated region
      $region13: #{inverted_res_block_nhwc.7} parent=5 // pred_check
        %p186 = pneg %p185
      $region14: #{inverted_res_block_nhwc.7} parent=5 // pred_check_branch
        %188 = sbr.rel (%p186) target = $region16
      $region15: #{inverted_res_block_nhwc.7} parent=5 // pred_region
        // Predicated region
        $region17: #{inverted_res_block_nhwc.7} parent=15 // pred_check
          %p189 = pneg %p56
        $region18: #{inverted_res_block_nhwc.7} parent=15 // pred_check_branch
          %191 = sbr.rel (%p189) target = $region20
        $region19: #{inverted_res_block_nhwc.7} parent=15 // pred_region
          %s192 = sand.u32 %s46, 1
          %s193 = scalar_lea.sflag [#allocation3], %s192
          %s194 = sand.u32 %s46, 1
          %s195 = smul.addr %s194, 64
          %s196 = scalar_lea.vmem [#allocation2], %s195
          %s197 = smul.u32 8, %s30
          %s199 = ssub.s32 1024, 1024
          %200 = vsyncadd %s193, %s199
          %s201 = smul.addr %s197, 2
          %s202 = smul.addr %s29, 32
          %s203 = sadd.s32 %s201, %s202
          %s204 = smul.addr %s203, 64
          %s205 = scalar_lea.hbm %s0, %s204
          %s206 = sshll.u32 %s196, 4
          %s207 = int_to_ptr.vmem [resolvable:$true] %s206
          %212 = dma.hbm_to_vmem [thread:$0]  %s205, 1024, %s207, %s193, 64, 64, 4
        $region20: #{inverted_res_block_nhwc.7} parent=15 // pred_fallthru
          _
        // Predicated region
        $region21: #{inverted_res_block_nhwc.7} parent=15 // pred_check
          %p213 = pneg %p82
        $region22: #{inverted_res_block_nhwc.7} parent=15 // pred_check_branch
          %215 = sbr.rel (%p213) target = $region24
        $region23: #{inverted_res_block_nhwc.7} parent=15 // pred_region
          %s216 = sand.u32 %s22, 1
          %s217 = scalar_lea.sflag [#allocation6], %s216
          %s218 = sand.u32 %s72, 1
          %s219 = scalar_lea.vmem [#allocation5], %s218
          %s221 = ssub.s32 16, 16
          %222 = vsyncadd %s217, %s221
          %s223 = smul.addr %s29, 16
          %s224 = scalar_lea.hbm %s1, %s223
          %s226 = sshll.u32 %s219, 4
          %s227 = int_to_ptr.vmem [resolvable:$true] %s226
          %229 = dma.hbm_to_vmem [thread:$0]  %s224, 16, %s227, %s217
        $region24: #{inverted_res_block_nhwc.7} parent=15 // pred_fallthru
          _
        // Predicated region
        $region25: #{inverted_res_block_nhwc.7} parent=15 // pred_check
          %p230 = pneg %p108
        $region26: #{inverted_res_block_nhwc.7} parent=15 // pred_check_branch
          %232 = sbr.rel (%p230) target = $region28
        $region27: #{inverted_res_block_nhwc.7} parent=15 // pred_region
          %s233 = sand.u32 %s22, 1
          %s234 = scalar_lea.sflag [#allocation6], %s233
          %s235 = sand.u32 %s98, 1
          %s236 = scalar_lea.vmem [#allocation7], %s235
          %s238 = ssub.s32 16, 16
          %239 = vsyncadd %s234, %s238
          %s240 = smul.addr %s29, 16
          %s241 = scalar_lea.hbm %s2, %s240
          %s243 = sshll.u32 %s236, 4
          %s244 = int_to_ptr.vmem [resolvable:$true] %s243
          %246 = dma.hbm_to_vmem [thread:$0]  %s241, 16, %s244, %s234
        $region28: #{inverted_res_block_nhwc.7} parent=15 // pred_fallthru
          _
        // Predicated region
        $region29: #{inverted_res_block_nhwc.7} parent=15 // pred_check
          %p247 = pneg %p136
        $region30: #{inverted_res_block_nhwc.7} parent=15 // pred_check_branch
          %249 = sbr.rel (%p247) target = $region32
        $region31: #{inverted_res_block_nhwc.7} parent=15 // pred_region
          %s250 = sand.u32 %s126, 1
          %s251 = scalar_lea.sflag [#allocation9], %s250
          %s252 = sand.u32 %s126, 1
          %s253 = smul.addr %s252, 64
          %s254 = scalar_lea.vmem [#allocation8], %s253
          %s255 = smul.u32 8, %s30
          %s257 = ssub.s32 1024, 1024
          %258 = vsyncadd %s251, %s257
          %s259 = smul.addr %s255, 2
          %s260 = smul.addr %s29, 32
          %s261 = sadd.s32 %s259, %s260
          %s262 = smul.addr %s261, 64
          %s263 = scalar_lea.hbm %s3, %s262
          %s264 = sshll.u32 %s254, 4
          %s265 = int_to_ptr.vmem [resolvable:$true] %s264
          %270 = dma.hbm_to_vmem [thread:$0]  %s263, 1024, %s265, %s251, 64, 64, 4
        $region32: #{inverted_res_block_nhwc.7} parent=15 // pred_fallthru
          _
      $region16: #{inverted_res_block_nhwc.7} parent=5 // pred_fallthru
        _
      %p271 = scmp.le.s32.totalorder 1, %s22
      %p272 = scmp.lt.s32.totalorder %s22, 5
      %p273 = pnand %p271, %p272
      %p274 = pneg %p273
      // Predicated region
      $region33: #{inverted_res_block_nhwc.7} parent=5 // pred_check
        _
      $region34: #{inverted_res_block_nhwc.7} parent=5 // pred_check_branch
        %276 = sbr.rel (%p273) target = $region36
      $region35: #{inverted_res_block_nhwc.7} parent=5 // pred_region
        %s277 = ssub.s32 %s22, 1
        %s278 = sand.u32 %s49, 1
        %s279 = scalar_lea.sflag [#allocation3], %s278
        %s280 = sand.u32 %s49, 1
        %s281 = smul.addr %s280, 64
        %s282 = scalar_lea.vmem [#allocation2], %s281
        // Predicated region
        $region37: #{inverted_res_block_nhwc.7} parent=35 // pred_check
          %p283 = pneg %p62
        $region38: #{inverted_res_block_nhwc.7} parent=35 // pred_check_branch
          %285 = sbr.rel (%p283) target = $region40
        $region39: #{inverted_res_block_nhwc.7} parent=35 // pred_region
          %286 = dma.done %s279, 1024
        $region40: #{inverted_res_block_nhwc.7} parent=35 // pred_fallthru
          _
        %s287 = sand.u32 %s27, 1
        %s288 = scalar_lea.sflag [#allocation6], %s287
        %s289 = sand.u32 %s75, 1
        %s290 = scalar_lea.vmem [#allocation5], %s289
        // Predicated region
        $region41: #{inverted_res_block_nhwc.7} parent=35 // pred_check
          %p291 = pneg %p88
        $region42: #{inverted_res_block_nhwc.7} parent=35 // pred_check_branch
          %293 = sbr.rel (%p291) target = $region44
        $region43: #{inverted_res_block_nhwc.7} parent=35 // pred_region
          %294 = dma.done %s288, 16
        $region44: #{inverted_res_block_nhwc.7} parent=35 // pred_fallthru
          _
        %s295 = sand.u32 %s27, 1
        %s296 = scalar_lea.sflag [#allocation6], %s295
        %s297 = sand.u32 %s101, 1
        %s298 = scalar_lea.vmem [#allocation7], %s297
        // Predicated region
        $region45: #{inverted_res_block_nhwc.7} parent=35 // pred_check
          %p299 = pneg %p114
        $region46: #{inverted_res_block_nhwc.7} parent=35 // pred_check_branch
          %301 = sbr.rel (%p299) target = $region48
        $region47: #{inverted_res_block_nhwc.7} parent=35 // pred_region
          %302 = dma.done %s296, 16
        $region48: #{inverted_res_block_nhwc.7} parent=35 // pred_fallthru
          _
        %s303 = sand.u32 %s129, 1
        %s304 = scalar_lea.sflag [#allocation9], %s303
        %s305 = sand.u32 %s129, 1
        %s306 = smul.addr %s305, 64
        %s307 = scalar_lea.vmem [#allocation8], %s306
        // Predicated region
        $region49: #{inverted_res_block_nhwc.7} parent=35 // pred_check
          %p308 = pneg %p142
        $region50: #{inverted_res_block_nhwc.7} parent=35 // pred_check_branch
          %310 = sbr.rel (%p308) target = $region52
        $region51: #{inverted_res_block_nhwc.7} parent=35 // pred_region
          %311 = dma.done %s304, 1024
        $region52: #{inverted_res_block_nhwc.7} parent=35 // pred_fallthru
          _
        %s312 = sand.u32 %s49, 1
        %s313 = scalar_lea.sflag [#allocation3], %s312
        %s314 = sand.u32 %s49, 1
        %s315 = smul.addr %s314, 64
        %s316 = scalar_lea.vmem [#allocation2], %s315
        %p317 = pneg %p62
        %p318 = pneg %p59
        %s319 = sand.u32 %s27, 1
        %s320 = scalar_lea.sflag [#allocation6], %s319
        %s321 = sand.u32 %s75, 1
        %s322 = scalar_lea.vmem [#allocation5], %s321
        %p323 = pneg %p88
        %p324 = pneg %p85
        %s325 = sand.u32 %s27, 1
        %s326 = scalar_lea.sflag [#allocation6], %s325
        %s327 = sand.u32 %s101, 1
        %s328 = scalar_lea.vmem [#allocation7], %s327
        %p329 = pneg %p114
        %p330 = pneg %p111
        %s331 = sand.u32 %s129, 1
        %s332 = scalar_lea.sflag [#allocation9], %s331
        %s333 = sand.u32 %s129, 1
        %s334 = smul.addr %s333, 64
        %s335 = scalar_lea.vmem [#allocation8], %s334
        %p336 = pneg %p142
        %p337 = pneg %p139
        %p338 = pneg %p170
        %p339 = pneg %p167
        %s340 = sand.u32 %s157, 1
        %s341 = scalar_lea.sflag [#allocation4], %s340
        %s342 = sand.u32 %s157, 1
        %s343 = smul.addr %s342, 128
        %s344 = scalar_lea.vmem [#allocation10], %s343
        %s345 = smul.u32 8, %s32
        %s346 = smul.u32 8, %s32
        %s347 = smul.u32 8, %s32
        %v348 = vld [vmem:[%s282] sm:$0xf]
        %v349 = vld [vmem:[%s282 + $0x4] sm:$0xf]
        %v350 = vld [vmem:[%s282 + $0x8] sm:$0xf]
        %v351 = vld [vmem:[%s282 + $0xc] sm:$0xf]
        %v352 = vld [vmem:[%s282 + $0x10] sm:$0xf]
        %v353 = vld [vmem:[%s282 + $0x14] sm:$0xf]
        %v354 = vld [vmem:[%s282 + $0x18] sm:$0xf]
        %v355 = vld [vmem:[%s282 + $0x1c] sm:$0xf]
        %v356 = vld [vmem:[%s282 + $0x20] sm:$0xf]
        %v357 = vld [vmem:[%s282 + $0x24] sm:$0xf]
        %v358 = vld [vmem:[%s282 + $0x28] sm:$0xf]
        %v359 = vld [vmem:[%s282 + $0x2c] sm:$0xf]
        %v360 = vld [vmem:[%s282 + $0x30] sm:$0xf]
        %v361 = vld [vmem:[%s282 + $0x34] sm:$0xf]
        %v362 = vld [vmem:[%s282 + $0x38] sm:$0xf]
        %v363 = vld [vmem:[%s282 + $0x3c] sm:$0xf]
        %v364 = vunpack.c.l.bf16 %v348
        %v365 = vunpack.c.l.bf16 %v349
        %v366 = vunpack.c.l.bf16 %v350
        %v367 = vunpack.c.l.bf16 %v351
        %v368 = vunpack.c.l.bf16 %v352
        %v369 = vunpack.c.l.bf16 %v353
        %v370 = vunpack.c.l.bf16 %v354
        %v371 = vunpack.c.l.bf16 %v355
        %v372 = vunpack.c.l.bf16 %v356
        %v373 = vunpack.c.l.bf16 %v357
        %v374 = vunpack.c.l.bf16 %v358
        %v375 = vunpack.c.l.bf16 %v359
        %v376 = vunpack.c.l.bf16 %v360
        %v377 = vunpack.c.l.bf16 %v361
        %v378 = vunpack.c.l.bf16 %v362
        %v379 = vunpack.c.l.bf16 %v363
        %v380 = vld [vmem:[%s290] sm:$0x1]
        %v382 = vlaneseq
        %v383 = vshrl.u32 %v382, 7
        %v384 = vsub.s32 0, %v383
        %v385 = vrot.slane %v380, %v384
        %v387 = vmul.f32 %v364, %v385
        %v388 = vmul.f32 %v365, %v385
        %v389 = vmul.f32 %v366, %v385
        %v390 = vmul.f32 %v367, %v385
        %v391 = vmul.f32 %v368, %v385
        %v392 = vmul.f32 %v369, %v385
        %v393 = vmul.f32 %v370, %v385
        %v394 = vmul.f32 %v371, %v385
        %v395 = vmul.f32 %v372, %v385
        %v396 = vmul.f32 %v373, %v385
        %v397 = vmul.f32 %v374, %v385
        %v398 = vmul.f32 %v375, %v385
        %v399 = vmul.f32 %v376, %v385
        %v400 = vmul.f32 %v377, %v385
        %v401 = vmul.f32 %v378, %v385
        %v402 = vmul.f32 %v379, %v385
        %v403 = vld [vmem:[%s298] sm:$0x1]
        %v405 = vlaneseq
        %v406 = vshrl.u32 %v405, 7
        %v407 = vsub.s32 0, %v406
        %v408 = vrot.slane %v403, %v407
        %v410 = vadd.f32 %v387, %v408
        %v411 = vadd.f32 %v388, %v408
        %v412 = vadd.f32 %v389, %v408
        %v413 = vadd.f32 %v390, %v408
        %v414 = vadd.f32 %v391, %v408
        %v415 = vadd.f32 %v392, %v408
        %v416 = vadd.f32 %v393, %v408
        %v417 = vadd.f32 %v394, %v408
        %v418 = vadd.f32 %v395, %v408
        %v419 = vadd.f32 %v396, %v408
        %v420 = vadd.f32 %v397, %v408
        %v421 = vadd.f32 %v398, %v408
        %v422 = vadd.f32 %v399, %v408
        %v423 = vadd.f32 %v400, %v408
        %v424 = vadd.f32 %v401, %v408
        %v425 = vadd.f32 %v402, %v408
        %v426 = vld [vmem:[%s307] sm:$0xf]
        %v427 = vld [vmem:[%s307 + $0x4] sm:$0xf]
        %v428 = vld [vmem:[%s307 + $0x8] sm:$0xf]
        %v429 = vld [vmem:[%s307 + $0xc] sm:$0xf]
        %v430 = vld [vmem:[%s307 + $0x10] sm:$0xf]
        %v431 = vld [vmem:[%s307 + $0x14] sm:$0xf]
        %v432 = vld [vmem:[%s307 + $0x18] sm:$0xf]
        %v433 = vld [vmem:[%s307 + $0x1c] sm:$0xf]
        %v434 = vld [vmem:[%s307 + $0x20] sm:$0xf]
        %v435 = vld [vmem:[%s307 + $0x24] sm:$0xf]
        %v436 = vld [vmem:[%s307 + $0x28] sm:$0xf]
        %v437 = vld [vmem:[%s307 + $0x2c] sm:$0xf]
        %v438 = vld [vmem:[%s307 + $0x30] sm:$0xf]
        %v439 = vld [vmem:[%s307 + $0x34] sm:$0xf]
        %v440 = vld [vmem:[%s307 + $0x38] sm:$0xf]
        %v441 = vld [vmem:[%s307 + $0x3c] sm:$0xf]
        %v442 = vunpack.c.l.bf16 %v426
        %v443 = vunpack.c.l.bf16 %v427
        %v444 = vunpack.c.l.bf16 %v428
        %v445 = vunpack.c.l.bf16 %v429
        %v446 = vunpack.c.l.bf16 %v430
        %v447 = vunpack.c.l.bf16 %v431
        %v448 = vunpack.c.l.bf16 %v432
        %v449 = vunpack.c.l.bf16 %v433
        %v450 = vunpack.c.l.bf16 %v434
        %v451 = vunpack.c.l.bf16 %v435
        %v452 = vunpack.c.l.bf16 %v436
        %v453 = vunpack.c.l.bf16 %v437
        %v454 = vunpack.c.l.bf16 %v438
        %v455 = vunpack.c.l.bf16 %v439
        %v456 = vunpack.c.l.bf16 %v440
        %v457 = vunpack.c.l.bf16 %v441
        %v458 = vadd.f32 %v410, %v442
        %v459 = vadd.f32 %v411, %v443
        %v460 = vadd.f32 %v412, %v444
        %v461 = vadd.f32 %v413, %v445
        %v462 = vadd.f32 %v414, %v446
        %v463 = vadd.f32 %v415, %v447
        %v464 = vadd.f32 %v416, %v448
        %v465 = vadd.f32 %v417, %v449
        %v466 = vadd.f32 %v418, %v450
        %v467 = vadd.f32 %v419, %v451
        %v468 = vadd.f32 %v420, %v452
        %v469 = vadd.f32 %v421, %v453
        %v470 = vadd.f32 %v422, %v454
        %v471 = vadd.f32 %v423, %v455
        %v472 = vadd.f32 %v424, %v456
        %v473 = vadd.f32 %v425, %v457
        %vm474 = vcmask 31744
        %475 = vst.msk [vmem:[%s344] sm:$0xff] %vm474, %v458
        %476 = vst.msk [vmem:[%s344 + $0x8] sm:$0xff] %vm474, %v459
        %477 = vst.msk [vmem:[%s344 + $0x10] sm:$0xff] %vm474, %v460
        %478 = vst.msk [vmem:[%s344 + $0x18] sm:$0xff] %vm474, %v461
        %479 = vst.msk [vmem:[%s344 + $0x20] sm:$0xff] %vm474, %v462
        %480 = vst.msk [vmem:[%s344 + $0x28] sm:$0xff] %vm474, %v463
        %481 = vst.msk [vmem:[%s344 + $0x30] sm:$0xff] %vm474, %v464
        %482 = vst.msk [vmem:[%s344 + $0x38] sm:$0xff] %vm474, %v465
        %483 = vst.msk [vmem:[%s344 + $0x40] sm:$0xff] %vm474, %v466
        %484 = vst.msk [vmem:[%s344 + $0x48] sm:$0xff] %vm474, %v467
        %485 = vst.msk [vmem:[%s344 + $0x50] sm:$0xff] %vm474, %v468
        %486 = vst.msk [vmem:[%s344 + $0x58] sm:$0xff] %vm474, %v469
        %487 = vst.msk [vmem:[%s344 + $0x60] sm:$0xff] %vm474, %v470
        %488 = vst.msk [vmem:[%s344 + $0x68] sm:$0xff] %vm474, %v471
        %489 = vst.msk [vmem:[%s344 + $0x70] sm:$0xff] %vm474, %v472
        %490 = vst.msk [vmem:[%s344 + $0x78] sm:$0xff] %vm474, %v473
        %s491 = sand.u32 %s157, 1
        %s492 = scalar_lea.sflag [#allocation4], %s491
        %s493 = sand.u32 %s157, 1
        %s494 = smul.addr %s493, 128
        %s495 = scalar_lea.vmem [#allocation10], %s494
        // Predicated region
        $region53: #{inverted_res_block_nhwc.7} parent=35 // pred_check
          %p496 = pneg %p167
        $region54: #{inverted_res_block_nhwc.7} parent=35 // pred_check_branch
          %498 = sbr.rel (%p496) target = $region56
        $region55: #{inverted_res_block_nhwc.7} parent=35 // pred_region
          %s499 = smul.u32 8, %s32
          %s501 = ssub.s32 2048, 2048
          %502 = vsyncadd %s492, %s501
          %s503 = smul.addr %s499, 2
          %s504 = smul.addr %s31, 32
          %s505 = sadd.s32 %s503, %s504
          %s506 = smul.addr %s505, 128
          %s507 = scalar_lea.hbm %s4, %s506
          %s508 = sshll.u32 %s495, 4
          %s509 = int_to_ptr.vmem [resolvable:$true] %s508
          %514 = dma.vmem_to_hbm [thread:$0]  %s509, 2048, %s507, %s492, 128, 128, 8
        $region56: #{inverted_res_block_nhwc.7} parent=35 // pred_fallthru
          _
      $region36: #{inverted_res_block_nhwc.7} parent=5 // pred_fallthru
        _
      %p515 = scmp.le.s32.totalorder 2, %s22
      // Predicated region
      $region57: #{inverted_res_block_nhwc.7} parent=5 // pred_check
        %p516 = pneg %p515
      $region58: #{inverted_res_block_nhwc.7} parent=5 // pred_check_branch
        %518 = sbr.rel (%p516) target = $region60
      $region59: #{inverted_res_block_nhwc.7} parent=5 // pred_region
        %s519 = ssub.s32 %s22, 2
        // Predicated region
        $region61: #{inverted_res_block_nhwc.7} parent=59 // pred_check
          %p520 = pneg %p173
        $region62: #{inverted_res_block_nhwc.7} parent=59 // pred_check_branch
          %522 = sbr.rel (%p520) target = $region64
        $region63: #{inverted_res_block_nhwc.7} parent=59 // pred_region
          %s523 = sand.u32 %s158, 1
          %s524 = scalar_lea.sflag [#allocation4], %s523
          %s525 = sand.u32 %s158, 1
          %s526 = smul.addr %s525, 128
          %s527 = scalar_lea.vmem [#allocation10], %s526
          %528 = dma.done %s524, 2048
        $region64: #{inverted_res_block_nhwc.7} parent=59 // pred_fallthru
          _
      $region60: #{inverted_res_block_nhwc.7} parent=5 // pred_fallthru
        _
    $region6: #{inverted_res_block_nhwc.7} parent=1 // loop_footer
      %s26 = sadd.s32 1, %s22
    $region7: #{inverted_res_block_nhwc.7} parent=1 // loop_footer_branch
      %21 = sbr.rel target = $region3
    $region8: #{inverted_res_block_nhwc.7} parent=1 // loop_exit
      _
    %529 = vsyncpa [#allocation3], 1
    %s530 = scalar_lea.sflag [#allocation3], 1
    %531 = vsyncpa %s530, 1
    %532 = vsyncpa [#allocation6], 1
    %s533 = scalar_lea.sflag [#allocation6], 1
    %534 = vsyncpa %s533, 1
    %535 = vsyncpa [#allocation9], 1
    %s536 = scalar_lea.sflag [#allocation9], 1
    %537 = vsyncpa %s536, 1
    %538 = vsyncpa [#allocation4], 1
    %s539 = scalar_lea.sflag [#allocation4], 1
    %540 = vsyncpa %s539, 1

// kernel: inverted_res_block_nhwc.5
$region0: #{inverted_res_block_nhwc.5}
  #allocation0 [shape = 'u32[]', space=smem, size = 0x4, offset = 0x4, fixed_abs, tag = 'smem constant byte address 0x4 - core index']
  #allocation1 [shape = 'u32[144,128]{1,0:T(1,128)}', space=vmem, size = 0x12000, scoped, tag = 'internal scratch']
  #allocation2 [shape = 'f32[10,18,8]{2,1,0:T(8,128)}', space=vmem, size = 0x1e000, scoped, tag = 'scratch operand']
  %s0 = inlined_call_operand.hbm [shape: bf16[2,16,16,4], index: 0, kind: input, shape index: {}, may-alias: {0,1,2}]
  %s1 = inlined_call_operand.hbm [shape: bf16[2,16,16,4], index: 1, kind: input, shape index: {}, may-alias: {0,1,2}]
  %s2 = inlined_call_operand.hbm [shape: bf16[2,16,16,4], index: 2, kind: input, shape index: {}, may-alias: {0,1,2}]
  %s3 = inlined_call_operand.hbm [shape: bf16[4,8], index: 3, kind: input, shape index: {}]
  %s4 = inlined_call_operand.hbm [shape: f32[2,1,8], index: 4, kind: input, shape index: {}]
  %s5 = inlined_call_operand.hbm [shape: f32[2,1,8], index: 5, kind: input, shape index: {}]
  %s6 = inlined_call_operand.hbm [shape: f32[3,3,8], index: 6, kind: input, shape index: {}]
  %s7 = inlined_call_operand.hbm [shape: f32[1,8], index: 7, kind: input, shape index: {}]
  %s8 = inlined_call_operand.hbm [shape: bf16[2,16,16,8], index: 8, kind: output, shape index: {0}]
  %s9 = inlined_call_operand.hbm [shape: f32[1,2,1,8], index: 9, kind: output, shape index: {1}]
  %s10 = inlined_call_operand.hbm [shape: f32[1,2,1,8], index: 10, kind: output, shape index: {2}]
  %11 = xla_tuple %s8, %s9, %s10
  %s12 = sld [smem:[#allocation0]]
  $region121: #{inverted_res_block_nhwc.5} parent=0
    _
  %s14 = ssub.s32 1, %s12
  %s15 = scalar_select 0, %s14, %s12
  $region1: #{inverted_res_block_nhwc.5} parent=0
    #allocation3 [shape = 'u8[8192]{0}', space=vmem, size = 0x2000, scoped, tag = 'input window, operand 0']
    #allocation4 [shape = 's32[2]{0}', space=sflag, size = 0x8, scoped, tag = 'scoped memory for inverted_res_block_nhwc.5']
    #allocation5 [shape = 's32[2]{0}', space=sflag, size = 0x8, scoped, tag = 'scoped memory for inverted_res_block_nhwc.5']
    #allocation6 [shape = 'u8[65536]{0}', space=vmem, size = 0x10000, scoped, tag = 'input window, operand 1']
    #allocation7 [shape = 's32[2]{0}', space=sflag, size = 0x8, scoped, tag = 'scoped memory for inverted_res_block_nhwc.5']
    #allocation8 [shape = 'u8[8192]{0}', space=vmem, size = 0x2000, scoped, tag = 'input window, operand 2']
    #allocation9 [shape = 'u8[1024]{0}', space=vmem, size = 0x400, scoped, tag = 'input window, operand 3, single buffered']
    #allocation10 [shape = 's32[1]{0}', space=sflag, size = 0x4, scoped, tag = 'scoped memory for inverted_res_block_nhwc.5']
    #allocation11 [shape = 'u8[1024]{0}', space=vmem, size = 0x400, scoped, tag = 'input window, operand 4']
    #allocation12 [shape = 'u8[1024]{0}', space=vmem, size = 0x400, scoped, tag = 'input window, operand 5']
    #allocation13 [shape = 'u8[6144]{0}', space=vmem, size = 0x1800, scoped, tag = 'input window, operand 6, single buffered']
    #allocation14 [shape = 'u8[512]{0}', space=vmem, size = 0x400, scoped, tag = 'input window, operand 7, single buffered']
    #allocation15 [shape = 's32[1]{0}', space=sflag, size = 0x4, scoped, tag = 'scoped memory for inverted_res_block_nhwc.5']
    #allocation16 [shape = 'u8[65536]{0}', space=vmem, size = 0x10000, scoped, tag = 'output window, operand 0']
    #allocation17 [shape = 'u8[1024]{0}', space=vmem, size = 0x400, scoped, tag = 'output window, operand 1']
    #allocation18 [shape = 's32[2]{0}', space=sflag, size = 0x8, scoped, tag = 'scoped memory for inverted_res_block_nhwc.5']
    #allocation19 [shape = 'u8[1024]{0}', space=vmem, size = 0x400, scoped, tag = 'output window, operand 2']
    %16 = vsyncpa [#allocation4], 0
    %s17 = scalar_lea.sflag [#allocation4], 1
    %18 = vsyncpa %s17, 0
    %19 = vsyncpa [#allocation7], 0
    %s20 = scalar_lea.sflag [#allocation7], 1
    %21 = vsyncpa %s20, 0
    %22 = vsyncpa [#allocation10], 0
    %23 = vsyncpa [#allocation15], 0
    %24 = vsyncpa [#allocation5], 0
    %s25 = scalar_lea.sflag [#allocation5], 1
    %26 = vsyncpa %s25, 0
    %27 = vsyncpa [#allocation18], 0
    %s28 = scalar_lea.sflag [#allocation18], 1
    %29 = vsyncpa %s28, 0
    loop: start=0, step=1, limit=6
    $region2: #{inverted_res_block_nhwc.5} parent=1 // loop_pre_header
      _
    $region3: #{inverted_res_block_nhwc.5} parent=1 // loop_header
      %s31 = sphi 0, %s35
      %p32 = scmp.ge.s32.totalorder %s31, 6
      %s38 = sphi 0, %s57
      %s39 = sphi 0, %s53
      %s40 = sphi 0, %s49
      %s41 = sphi 0, %s38
      %s42 = sphi 0, %s39
      %s43 = sphi 0, %s40
      %s44 = sphi 0, %s41
      %s45 = sphi 0, %s42
      %s46 = sphi 0, %s43
      %s74 = sphi 0, %s76
      %s77 = sphi 0, %s74
      %s78 = sphi 0, %s77
      %s94 = sphi 0, %s78
      %s106 = sphi 0, %s108
      %s109 = sphi 0, %s106
      %s110 = sphi 0, %s109
      %s126 = sphi 0, %s110
      %s146 = sphi 0, %s148
      %s149 = sphi 0, %s146
      %s150 = sphi 0, %s149
      %s166 = sphi 0, %s150
      %s170 = sphi 0, %s170
      %s172 = sphi 0, %s170
      %s173 = sphi 0, %s172
      %s187 = sphi 0, %s173
      %s193 = sphi 0, %s195
      %s196 = sphi 0, %s193
      %s197 = sphi 0, %s196
      %s213 = sphi 0, %s197
      %s219 = sphi 0, %s221
      %s222 = sphi 0, %s219
      %s223 = sphi 0, %s222
      %s239 = sphi 0, %s223
      %s243 = sphi 0, %s243
      %s245 = sphi 0, %s243
      %s246 = sphi 0, %s245
      %s260 = sphi 0, %s246
      %s264 = sphi 0, %s264
      %s266 = sphi 0, %s264
      %s267 = sphi 0, %s266
      %s281 = sphi 0, %s267
      %s293 = sphi 0, %s295
      %s296 = sphi 0, %s293
      %s297 = sphi 0, %s296
      %s313 = sphi 0, %s297
      %s321 = sphi 0, %s323
      %s324 = sphi 0, %s321
      %s325 = sphi 0, %s324
      %s341 = sphi 0, %s325
      %s349 = sphi 0, %s351
      %s352 = sphi 0, %s349
      %s353 = sphi 0, %s352
      %s369 = sphi 0, %s353
    $region4: #{inverted_res_block_nhwc.5} parent=1 // loop_header_branch
      %34 = sbr.rel (%p32) target = $region8
    $region5: #{inverted_res_block_nhwc.5} parent=1 // loop_body
      %s36 = ssub.s32 %s31, 1
      %s37 = ssub.s32 %s31, 2
      %s47 = sadd.s32 1, %s40
      %p48 = scmp.ge.s32.totalorder %s47, 2
      %s49 = scalar_select %p48, 0, %s47
      %s50 = sadd.s32 1, %s39
      %s51 = scalar_select %p48, %s50, %s39
      %p52 = scmp.ge.s32.totalorder %s51, 2
      %s53 = scalar_select %p52, 0, %s51
      %s54 = sadd.s32 1, %s38
      %s55 = scalar_select %p52, %s54, %s38
      %p56 = scmp.ge.s32.totalorder %s55, 1
      %s57 = scalar_select %p56, 0, %s55
      %s58 = smul.u32 %s38, 2
      %s59 = sadd.s32 %s58, %s40
      %p60 = scmp.eq.s32.totalorder %s59, 0
      %s61 = smul.u32 %s59, 8
      %s62 = ssub.s32 %s61, 1
      %s63 = scalar_select %p60, 1, %s62
      %s64 = smul.u32 %s57, 2
      %s65 = sadd.s32 %s64, %s49
      %p66 = scmp.eq.s32.totalorder %s65, 0
      %s67 = smul.u32 %s65, 8
      %s68 = ssub.s32 %s67, 1
      %s69 = scalar_select %p66, 1, %s68
      %s70 = ssub.s32 %s39, %s53
      %s71 = ssub.s32 %s63, %s69
      %s72 = sor.u32 %s70, %s71
      %p73 = scmp.eq.s32.totalorder %s72, 0
      %s75 = sadd.s32 %s74, 1
      %s76 = scalar_select %p73, %s74, %s75
      %p79 = pneg %p73
      %p80 = scmp.eq.s32.totalorder %s31, 3
      %p81 = por %p79, %p80
      %p82 = scmp.ne.s32.totalorder %s74, %s77
      %p83 = scmp.eq.s32.totalorder %s31, 0
      %p84 = por %p82, %p83
      %p85 = scmp.ne.s32.totalorder %s74, %s77
      %p86 = scmp.eq.s32.totalorder %s36, 3
      %p87 = por %p85, %p86
      %p88 = scmp.ne.s32.totalorder %s77, %s78
      %p89 = scmp.eq.s32.totalorder %s36, 0
      %p90 = por %p88, %p89
      %p91 = scmp.ne.s32.totalorder %s77, %s78
      %p92 = scmp.eq.s32.totalorder %s37, 3
      %p93 = por %p91, %p92
      %p95 = scmp.ne.s32.totalorder %s78, %s94
      %p96 = scmp.eq.s32.totalorder %s37, 0
      %p97 = por %p95, %p96
      %s98 = smul.u32 %s38, 2
      %s99 = sadd.s32 %s98, %s40
      %s100 = smul.u32 %s57, 2
      %s101 = sadd.s32 %s100, %s49
      %s102 = ssub.s32 %s39, %s53
      %s103 = ssub.s32 %s99, %s101
      %s104 = sor.u32 %s102, %s103
      %p105 = scmp.eq.s32.totalorder %s104, 0
      %s107 = sadd.s32 %s106, 1
      %s108 = scalar_select %p105, %s106, %s107
      %p111 = pneg %p105
      %p112 = scmp.eq.s32.totalorder %s31, 3
      %p113 = por %p111, %p112
      %p114 = scmp.ne.s32.totalorder %s106, %s109
      %p115 = scmp.eq.s32.totalorder %s31, 0
      %p116 = por %p114, %p115
      %p117 = scmp.ne.s32.totalorder %s106, %s109
      %p118 = scmp.eq.s32.totalorder %s36, 3
      %p119 = por %p117, %p118
      %p120 = scmp.ne.s32.totalorder %s109, %s110
      %p121 = scmp.eq.s32.totalorder %s36, 0
      %p122 = por %p120, %p121
      %p123 = scmp.ne.s32.totalorder %s109, %s110
      %p124 = scmp.eq.s32.totalorder %s37, 3
      %p125 = por %p123, %p124
      %p127 = scmp.ne.s32.totalorder %s110, %s126
      %p128 = scmp.eq.s32.totalorder %s37, 0
      %p129 = por %p127, %p128
      %s130 = smul.u32 %s38, 2
      %s131 = sadd.s32 %s130, %s40
      %p132 = scmp.eq.s32.totalorder %s131, 1
      %s133 = sadd.s32 %s131, 1
      %s134 = smul.u32 %s133, 8
      %s135 = scalar_select %p132, 14, %s134
      %s136 = smul.u32 %s57, 2
      %s137 = sadd.s32 %s136, %s49
      %p138 = scmp.eq.s32.totalorder %s137, 1
      %s139 = sadd.s32 %s137, 1
      %s140 = smul.u32 %s139, 8
      %s141 = scalar_select %p138, 14, %s140
      %s142 = ssub.s32 %s39, %s53
      %s143 = ssub.s32 %s135, %s141
      %s144 = sor.u32 %s142, %s143
      %p145 = scmp.eq.s32.totalorder %s144, 0
      %s147 = sadd.s32 %s146, 1
      %s148 = scalar_select %p145, %s146, %s147
      %p151 = pneg %p145
      %p152 = scmp.eq.s32.totalorder %s31, 3
      %p153 = por %p151, %p152
      %p154 = scmp.ne.s32.totalorder %s146, %s149
      %p155 = scmp.eq.s32.totalorder %s31, 0
      %p156 = por %p154, %p155
      %p157 = scmp.ne.s32.totalorder %s146, %s149
      %p158 = scmp.eq.s32.totalorder %s36, 3
      %p159 = por %p157, %p158
      %p160 = scmp.ne.s32.totalorder %s149, %s150
      %p161 = scmp.eq.s32.totalorder %s36, 0
      %p162 = por %p160, %p161
      %p163 = scmp.ne.s32.totalorder %s149, %s150
      %p164 = scmp.eq.s32.totalorder %s37, 3
      %p165 = por %p163, %p164
      %p167 = scmp.ne.s32.totalorder %s150, %s166
      %p168 = scmp.eq.s32.totalorder %s37, 0
      %p169 = por %p167, %p168
      %s171 = sadd.s32 %s170, 1
      %p174 = scmp.eq.s32.totalorder %s31, 3
      %p175 = scmp.ne.s32.totalorder %s170, %s172
      %p176 = scmp.eq.s32.totalorder %s31, 0
      %p177 = por %p175, %p176
      %p178 = scmp.ne.s32.totalorder %s170, %s172
      %p179 = scmp.eq.s32.totalorder %s36, 3
      %p180 = por %p178, %p179
      %p181 = scmp.ne.s32.totalorder %s172, %s173
      %p182 = scmp.eq.s32.totalorder %s36, 0
      %p183 = por %p181, %p182
      %p184 = scmp.ne.s32.totalorder %s172, %s173
      %p185 = scmp.eq.s32.totalorder %s37, 3
      %p186 = por %p184, %p185
      %p188 = scmp.ne.s32.totalorder %s173, %s187
      %p189 = scmp.eq.s32.totalorder %s37, 0
      %p190 = por %p188, %p189
      %s191 = ssub.s32 %s39, %s53
      %p192 = scmp.eq.s32.totalorder %s191, 0
      %s194 = sadd.s32 %s193, 1
      %s195 = scalar_select %p192, %s193, %s194
      %p198 = pneg %p192
      %p199 = scmp.eq.s32.totalorder %s31, 3
      %p200 = por %p198, %p199
      %p201 = scmp.ne.s32.totalorder %s193, %s196
      %p202 = scmp.eq.s32.totalorder %s31, 0
      %p203 = por %p201, %p202
      %p204 = scmp.ne.s32.totalorder %s193, %s196
      %p205 = scmp.eq.s32.totalorder %s36, 3
      %p206 = por %p204, %p205
      %p207 = scmp.ne.s32.totalorder %s196, %s197
      %p208 = scmp.eq.s32.totalorder %s36, 0
      %p209 = por %p207, %p208
      %p210 = scmp.ne.s32.totalorder %s196, %s197
      %p211 = scmp.eq.s32.totalorder %s37, 3
      %p212 = por %p210, %p211
      %p214 = scmp.ne.s32.totalorder %s197, %s213
      %p215 = scmp.eq.s32.totalorder %s37, 0
      %p216 = por %p214, %p215
      %s217 = ssub.s32 %s39, %s53
      %p218 = scmp.eq.s32.totalorder %s217, 0
      %s220 = sadd.s32 %s219, 1
      %s221 = scalar_select %p218, %s219, %s220
      %p224 = pneg %p218
      %p225 = scmp.eq.s32.totalorder %s31, 3
      %p226 = por %p224, %p225
      %p227 = scmp.ne.s32.totalorder %s219, %s222
      %p228 = scmp.eq.s32.totalorder %s31, 0
      %p229 = por %p227, %p228
      %p230 = scmp.ne.s32.totalorder %s219, %s222
      %p231 = scmp.eq.s32.totalorder %s36, 3
      %p232 = por %p230, %p231
      %p233 = scmp.ne.s32.totalorder %s222, %s223
      %p234 = scmp.eq.s32.totalorder %s36, 0
      %p235 = por %p233, %p234
      %p236 = scmp.ne.s32.totalorder %s222, %s223
      %p237 = scmp.eq.s32.totalorder %s37, 3
      %p238 = por %p236, %p237
      %p240 = scmp.ne.s32.totalorder %s223, %s239
      %p241 = scmp.eq.s32.totalorder %s37, 0
      %p242 = por %p240, %p241
      %s244 = sadd.s32 %s243, 1
      %p247 = scmp.eq.s32.totalorder %s31, 3
      %p248 = scmp.ne.s32.totalorder %s243, %s245
      %p249 = scmp.eq.s32.totalorder %s31, 0
      %p250 = por %p248, %p249
      %p251 = scmp.ne.s32.totalorder %s243, %s245
      %p252 = scmp.eq.s32.totalorder %s36, 3
      %p253 = por %p251, %p252
      %p254 = scmp.ne.s32.totalorder %s245, %s246
      %p255 = scmp.eq.s32.totalorder %s36, 0
      %p256 = por %p254, %p255
      %p257 = scmp.ne.s32.totalorder %s245, %s246
      %p258 = scmp.eq.s32.totalorder %s37, 3
      %p259 = por %p257, %p258
      %p261 = scmp.ne.s32.totalorder %s246, %s260
      %p262 = scmp.eq.s32.totalorder %s37, 0
      %p263 = por %p261, %p262
      %s265 = sadd.s32 %s264, 1
      %p268 = scmp.eq.s32.totalorder %s31, 3
      %p269 = scmp.ne.s32.totalorder %s264, %s266
      %p270 = scmp.eq.s32.totalorder %s31, 0
      %p271 = por %p269, %p270
      %p272 = scmp.ne.s32.totalorder %s264, %s266
      %p273 = scmp.eq.s32.totalorder %s36, 3
      %p274 = por %p272, %p273
      %p275 = scmp.ne.s32.totalorder %s266, %s267
      %p276 = scmp.eq.s32.totalorder %s36, 0
      %p277 = por %p275, %p276
      %p278 = scmp.ne.s32.totalorder %s266, %s267
      %p279 = scmp.eq.s32.totalorder %s37, 3
      %p280 = por %p278, %p279
      %p282 = scmp.ne.s32.totalorder %s267, %s281
      %p283 = scmp.eq.s32.totalorder %s37, 0
      %p284 = por %p282, %p283
      %s285 = smul.u32 %s38, 2
      %s286 = sadd.s32 %s285, %s40
      %s287 = smul.u32 %s57, 2
      %s288 = sadd.s32 %s287, %s49
      %s289 = ssub.s32 %s39, %s53
      %s290 = ssub.s32 %s286, %s288
      %s291 = sor.u32 %s289, %s290
      %p292 = scmp.eq.s32.totalorder %s291, 0
      %s294 = sadd.s32 %s293, 1
      %s295 = scalar_select %p292, %s293, %s294
      %p298 = pneg %p292
      %p299 = scmp.eq.s32.totalorder %s31, 3
      %p300 = por %p298, %p299
      %p301 = scmp.ne.s32.totalorder %s293, %s296
      %p302 = scmp.eq.s32.totalorder %s31, 0
      %p303 = por %p301, %p302
      %p304 = scmp.ne.s32.totalorder %s293, %s296
      %p305 = scmp.eq.s32.totalorder %s36, 3
      %p306 = por %p304, %p305
      %p307 = scmp.ne.s32.totalorder %s296, %s297
      %p308 = scmp.eq.s32.totalorder %s36, 0
      %p309 = por %p307, %p308
      %p310 = scmp.ne.s32.totalorder %s296, %s297
      %p311 = scmp.eq.s32.totalorder %s37, 3
      %p312 = por %p310, %p311
      %p314 = scmp.ne.s32.totalorder %s297, %s313
      %p315 = scmp.eq.s32.totalorder %s37, 0
      %p316 = por %p314, %p315
      %s317 = ssub.s32 %s38, %s57
      %s318 = ssub.s32 %s39, %s53
      %s319 = sor.u32 %s317, %s318
      %p320 = scmp.eq.s32.totalorder %s319, 0
      %s322 = sadd.s32 %s321, 1
      %s323 = scalar_select %p320, %s321, %s322
      %p326 = pneg %p320
      %p327 = scmp.eq.s32.totalorder %s31, 3
      %p328 = por %p326, %p327
      %p329 = scmp.ne.s32.totalorder %s321, %s324
      %p330 = scmp.eq.s32.totalorder %s31, 0
      %p331 = por %p329, %p330
      %p332 = scmp.ne.s32.totalorder %s321, %s324
      %p333 = scmp.eq.s32.totalorder %s36, 3
      %p334 = por %p332, %p333
      %p335 = scmp.ne.s32.totalorder %s324, %s325
      %p336 = scmp.eq.s32.totalorder %s36, 0
      %p337 = por %p335, %p336
      %p338 = scmp.ne.s32.totalorder %s324, %s325
      %p339 = scmp.eq.s32.totalorder %s37, 3
      %p340 = por %p338, %p339
      %p342 = scmp.ne.s32.totalorder %s325, %s341
      %p343 = scmp.eq.s32.totalorder %s37, 0
      %p344 = por %p342, %p343
      %s345 = ssub.s32 %s38, %s57
      %s346 = ssub.s32 %s39, %s53
      %s347 = sor.u32 %s345, %s346
      %p348 = scmp.eq.s32.totalorder %s347, 0
      %s350 = sadd.s32 %s349, 1
      %s351 = scalar_select %p348, %s349, %s350
      %p354 = pneg %p348
      %p355 = scmp.eq.s32.totalorder %s31, 3
      %p356 = por %p354, %p355
      %p357 = scmp.ne.s32.totalorder %s349, %s352
      %p358 = scmp.eq.s32.totalorder %s31, 0
      %p359 = por %p357, %p358
      %p360 = scmp.ne.s32.totalorder %s349, %s352
      %p361 = scmp.eq.s32.totalorder %s36, 3
      %p362 = por %p360, %p361
      %p363 = scmp.ne.s32.totalorder %s352, %s353
      %p364 = scmp.eq.s32.totalorder %s36, 0
      %p365 = por %p363, %p364
      %p366 = scmp.ne.s32.totalorder %s352, %s353
      %p367 = scmp.eq.s32.totalorder %s37, 3
      %p368 = por %p366, %p367
      %p370 = scmp.ne.s32.totalorder %s353, %s369
      %p371 = scmp.eq.s32.totalorder %s37, 0
      %p372 = por %p370, %p371
      %p373 = scmp.le.s32.totalorder 1, %s31
      %p374 = scmp.lt.s32.totalorder %s31, 5
      %p375 = pnand %p373, %p374
      %p376 = pneg %p375
      // Predicated region
      $region9: #{inverted_res_block_nhwc.5} parent=5 // pred_check
        _
      $region10: #{inverted_res_block_nhwc.5} parent=5 // pred_check_branch
        %378 = sbr.rel (%p375) target = $region12
      $region11: #{inverted_res_block_nhwc.5} parent=5 // pred_region
        %s379 = ssub.s32 %s31, 1
        // Predicated region
        $region13: #{inverted_res_block_nhwc.5} parent=11 // pred_check
          %p380 = pneg %p183
        $region14: #{inverted_res_block_nhwc.5} parent=11 // pred_check_branch
          %382 = sbr.rel (%p380) target = $region16
        $region15: #{inverted_res_block_nhwc.5} parent=11 // pred_region
          %s384 = ssub.s32 32, 32
          %385 = vsyncadd [#allocation10], %s384
          %s387 = sshll.u32 [#allocation9], 4
          %s388 = int_to_ptr.vmem [resolvable:$true] %s387
          %390 = dma.hbm_to_vmem [thread:$0]  %s3, 32, %s388, [#allocation10]
        $region16: #{inverted_res_block_nhwc.5} parent=11 // pred_fallthru
          _
        // Predicated region
        $region17: #{inverted_res_block_nhwc.5} parent=11 // pred_check
          %p391 = pneg %p256
        $region18: #{inverted_res_block_nhwc.5} parent=11 // pred_check_branch
          %393 = sbr.rel (%p391) target = $region20
        $region19: #{inverted_res_block_nhwc.5} parent=11 // pred_region
          %s395 = ssub.s32 192, 192
          %396 = vsyncadd [#allocation10], %s395
          %s397 = sshll.u32 [#allocation13], 4
          %s398 = int_to_ptr.vmem [resolvable:$true] %s397
          %403 = dma.hbm_to_vmem [thread:$0]  %s6, 192, %s398, [#allocation10], 64, 64, 4
        $region20: #{inverted_res_block_nhwc.5} parent=11 // pred_fallthru
          _
        // Predicated region
        $region21: #{inverted_res_block_nhwc.5} parent=11 // pred_check
          %p404 = pneg %p277
        $region22: #{inverted_res_block_nhwc.5} parent=11 // pred_check_branch
          %406 = sbr.rel (%p404) target = $region24
        $region23: #{inverted_res_block_nhwc.5} parent=11 // pred_region
          %s408 = ssub.s32 16, 16
          %409 = vsyncadd [#allocation15], %s408
          %s411 = sshll.u32 [#allocation14], 4
          %s412 = int_to_ptr.vmem [resolvable:$true] %s411
          %414 = dma.hbm_to_vmem [thread:$0]  %s7, 16, %s412, [#allocation15]
        $region24: #{inverted_res_block_nhwc.5} parent=11 // pred_fallthru
          _
      $region12: #{inverted_res_block_nhwc.5} parent=5 // pred_fallthru
        _
      %p415 = scmp.lt.s32.totalorder %s31, 4
      // Predicated region
      $region25: #{inverted_res_block_nhwc.5} parent=5 // pred_check
        %p416 = pneg %p415
      $region26: #{inverted_res_block_nhwc.5} parent=5 // pred_check_branch
        %418 = sbr.rel (%p416) target = $region28
      $region27: #{inverted_res_block_nhwc.5} parent=5 // pred_region
        // Predicated region
        $region29: #{inverted_res_block_nhwc.5} parent=27 // pred_check
          %p419 = pneg %p84
        $region30: #{inverted_res_block_nhwc.5} parent=27 // pred_check_branch
          %421 = sbr.rel (%p419) target = $region32
        $region31: #{inverted_res_block_nhwc.5} parent=27 // pred_region
          %s422 = sand.u32 %s31, 1
          %s423 = scalar_lea.sflag [#allocation4], %s422
          %s424 = sand.u32 %s74, 1
          %s425 = smul.addr %s424, 8
          %s426 = scalar_lea.vmem [#allocation3], %s425
          %s427 = smul.u32 %s38, 2
          %s428 = sadd.s32 %s427, %s40
          %p429 = scmp.eq.s32.totalorder %s428, 0
          %s430 = smul.u32 %s428, 8
          %s431 = ssub.s32 %s430, 1
          %s432 = scalar_select %p429, 1, %s431
          %s434 = ssub.s32 128, 128
          %435 = vsyncadd %s423, %s434
          %s436 = smul.addr %s432, 2
          %s437 = smul.addr %s39, 32
          %s438 = sadd.s32 %s436, %s437
          %s439 = smul.addr %s438, 64
          %s440 = scalar_lea.hbm %s0, %s439
          %s441 = sshll.u32 %s426, 4
          %s442 = int_to_ptr.vmem [resolvable:$true] %s441
          %447 = dma.hbm_to_vmem [thread:$0]  %s440, 128, %s442, %s423, 64, 64, 4
        $region32: #{inverted_res_block_nhwc.5} parent=27 // pred_fallthru
          _
        // Predicated region
        $region33: #{inverted_res_block_nhwc.5} parent=27 // pred_check
          %p448 = pneg %p116
        $region34: #{inverted_res_block_nhwc.5} parent=27 // pred_check_branch
          %450 = sbr.rel (%p448) target = $region36
        $region35: #{inverted_res_block_nhwc.5} parent=27 // pred_region
          %s451 = sand.u32 %s31, 1
          %s452 = scalar_lea.sflag [#allocation7], %s451
          %s453 = sand.u32 %s106, 1
          %s454 = smul.addr %s453, 64
          %s455 = scalar_lea.vmem [#allocation6], %s454
          %s456 = smul.u32 %s38, 2
          %s457 = sadd.s32 %s456, %s40
          %s458 = smul.u32 8, %s457
          %s460 = ssub.s32 1024, 1024
          %461 = vsyncadd %s452, %s460
          %s462 = smul.addr %s458, 2
          %s463 = smul.addr %s39, 32
          %s464 = sadd.s32 %s462, %s463
          %s465 = smul.addr %s464, 64
          %s466 = scalar_lea.hbm %s1, %s465
          %s467 = sshll.u32 %s455, 4
          %s468 = int_to_ptr.vmem [resolvable:$true] %s467
          %473 = dma.hbm_to_vmem [thread:$0]  %s466, 1024, %s468, %s452, 64, 64, 4
        $region36: #{inverted_res_block_nhwc.5} parent=27 // pred_fallthru
          _
        // Predicated region
        $region37: #{inverted_res_block_nhwc.5} parent=27 // pred_check
          %p474 = pneg %p156
        $region38: #{inverted_res_block_nhwc.5} parent=27 // pred_check_branch
          %476 = sbr.rel (%p474) target = $region40
        $region39: #{inverted_res_block_nhwc.5} parent=27 // pred_region
          %s477 = sand.u32 %s31, 1
          %s478 = scalar_lea.sflag [#allocation7], %s477
          %s479 = sand.u32 %s146, 1
          %s480 = smul.addr %s479, 8
          %s481 = scalar_lea.vmem [#allocation8], %s480
          %s482 = smul.u32 %s38, 2
          %s483 = sadd.s32 %s482, %s40
          %p484 = scmp.eq.s32.totalorder %s483, 1
          %s485 = sadd.s32 %s483, 1
          %s486 = smul.u32 %s485, 8
          %s487 = scalar_select %p484, 14, %s486
          %s489 = ssub.s32 128, 128
          %490 = vsyncadd %s478, %s489
          %s491 = smul.addr %s487, 2
          %s492 = smul.addr %s39, 32
          %s493 = sadd.s32 %s491, %s492
          %s494 = smul.addr %s493, 64
          %s495 = scalar_lea.hbm %s2, %s494
          %s496 = sshll.u32 %s481, 4
          %s497 = int_to_ptr.vmem [resolvable:$true] %s496
          %502 = dma.hbm_to_vmem [thread:$0]  %s495, 128, %s497, %s478, 64, 64, 4
        $region40: #{inverted_res_block_nhwc.5} parent=27 // pred_fallthru
          _
        // Predicated region
        $region41: #{inverted_res_block_nhwc.5} parent=27 // pred_check
          %p503 = pneg %p203
        $region42: #{inverted_res_block_nhwc.5} parent=27 // pred_check_branch
          %505 = sbr.rel (%p503) target = $region44
        $region43: #{inverted_res_block_nhwc.5} parent=27 // pred_region
          %s506 = sand.u32 %s31, 1
          %s507 = scalar_lea.sflag [#allocation4], %s506
          %s508 = sand.u32 %s193, 1
          %s509 = scalar_lea.vmem [#allocation11], %s508
          %s511 = ssub.s32 16, 16
          %512 = vsyncadd %s507, %s511
          %s513 = smul.addr %s39, 16
          %s514 = scalar_lea.hbm %s4, %s513
          %s516 = sshll.u32 %s509, 4
          %s517 = int_to_ptr.vmem [resolvable:$true] %s516
          %519 = dma.hbm_to_vmem [thread:$0]  %s514, 16, %s517, %s507
        $region44: #{inverted_res_block_nhwc.5} parent=27 // pred_fallthru
          _
        // Predicated region
        $region45: #{inverted_res_block_nhwc.5} parent=27 // pred_check
          %p520 = pneg %p229
        $region46: #{inverted_res_block_nhwc.5} parent=27 // pred_check_branch
          %522 = sbr.rel (%p520) target = $region48
        $region47: #{inverted_res_block_nhwc.5} parent=27 // pred_region
          %s523 = sand.u32 %s31, 1
          %s524 = scalar_lea.sflag [#allocation7], %s523
          %s525 = sand.u32 %s219, 1
          %s526 = scalar_lea.vmem [#allocation12], %s525
          %s528 = ssub.s32 16, 16
          %529 = vsyncadd %s524, %s528
          %s530 = smul.addr %s39, 16
          %s531 = scalar_lea.hbm %s5, %s530
          %s533 = sshll.u32 %s526, 4
          %s534 = int_to_ptr.vmem [resolvable:$true] %s533
          %536 = dma.hbm_to_vmem [thread:$0]  %s531, 16, %s534, %s524
        $region48: #{inverted_res_block_nhwc.5} parent=27 // pred_fallthru
          _
      $region28: #{inverted_res_block_nhwc.5} parent=5 // pred_fallthru
        _
      %p537 = scmp.le.s32.totalorder 1, %s31
      %p538 = scmp.lt.s32.totalorder %s31, 5
      %p539 = pnand %p537, %p538
      %p540 = pneg %p539
      // Predicated region
      $region49: #{inverted_res_block_nhwc.5} parent=5 // pred_check
        _
      $region50: #{inverted_res_block_nhwc.5} parent=5 // pred_check_branch
        %542 = sbr.rel (%p539) target = $region52
      $region51: #{inverted_res_block_nhwc.5} parent=5 // pred_region
        %s543 = ssub.s32 %s31, 1
        %s544 = sand.u32 %s36, 1
        %s545 = scalar_lea.sflag [#allocation4], %s544
        %s546 = sand.u32 %s77, 1
        %s547 = smul.addr %s546, 8
        %s548 = scalar_lea.vmem [#allocation3], %s547
        // Predicated region
        $region53: #{inverted_res_block_nhwc.5} parent=51 // pred_check
          %p549 = pneg %p90
        $region54: #{inverted_res_block_nhwc.5} parent=51 // pred_check_branch
          %551 = sbr.rel (%p549) target = $region56
        $region55: #{inverted_res_block_nhwc.5} parent=51 // pred_region
          %552 = dma.done %s545, 128
        $region56: #{inverted_res_block_nhwc.5} parent=51 // pred_fallthru
          _
        %s553 = sand.u32 %s36, 1
        %s554 = scalar_lea.sflag [#allocation7], %s553
        %s555 = sand.u32 %s109, 1
        %s556 = smul.addr %s555, 64
        %s557 = scalar_lea.vmem [#allocation6], %s556
        // Predicated region
        $region57: #{inverted_res_block_nhwc.5} parent=51 // pred_check
          %p558 = pneg %p122
        $region58: #{inverted_res_block_nhwc.5} parent=51 // pred_check_branch
          %560 = sbr.rel (%p558) target = $region60
        $region59: #{inverted_res_block_nhwc.5} parent=51 // pred_region
          %561 = dma.done %s554, 1024
        $region60: #{inverted_res_block_nhwc.5} parent=51 // pred_fallthru
          _
        %s562 = sand.u32 %s36, 1
        %s563 = scalar_lea.sflag [#allocation7], %s562
        %s564 = sand.u32 %s149, 1
        %s565 = smul.addr %s564, 8
        %s566 = scalar_lea.vmem [#allocation8], %s565
        // Predicated region
        $region61: #{inverted_res_block_nhwc.5} parent=51 // pred_check
          %p567 = pneg %p162
        $region62: #{inverted_res_block_nhwc.5} parent=51 // pred_check_branch
          %569 = sbr.rel (%p567) target = $region64
        $region63: #{inverted_res_block_nhwc.5} parent=51 // pred_region
          %570 = dma.done %s563, 128
        $region64: #{inverted_res_block_nhwc.5} parent=51 // pred_fallthru
          _
        // Predicated region
        $region65: #{inverted_res_block_nhwc.5} parent=51 // pred_check
          %p571 = pneg %p183
        $region66: #{inverted_res_block_nhwc.5} parent=51 // pred_check_branch
          %573 = sbr.rel (%p571) target = $region68
        $region67: #{inverted_res_block_nhwc.5} parent=51 // pred_region
          %574 = dma.done [#allocation10], 32
        $region68: #{inverted_res_block_nhwc.5} parent=51 // pred_fallthru
          _
        %s575 = sand.u32 %s36, 1
        %s576 = scalar_lea.sflag [#allocation4], %s575
        %s577 = sand.u32 %s196, 1
        %s578 = scalar_lea.vmem [#allocation11], %s577
        // Predicated region
        $region69: #{inverted_res_block_nhwc.5} parent=51 // pred_check
          %p579 = pneg %p209
        $region70: #{inverted_res_block_nhwc.5} parent=51 // pred_check_branch
          %581 = sbr.rel (%p579) target = $region72
        $region71: #{inverted_res_block_nhwc.5} parent=51 // pred_region
          %582 = dma.done %s576, 16
        $region72: #{inverted_res_block_nhwc.5} parent=51 // pred_fallthru
          _
        %s583 = sand.u32 %s36, 1
        %s584 = scalar_lea.sflag [#allocation7], %s583
        %s585 = sand.u32 %s222, 1
        %s586 = scalar_lea.vmem [#allocation12], %s585
        // Predicated region
        $region73: #{inverted_res_block_nhwc.5} parent=51 // pred_check
          %p587 = pneg %p235
        $region74: #{inverted_res_block_nhwc.5} parent=51 // pred_check_branch
          %589 = sbr.rel (%p587) target = $region76
        $region75: #{inverted_res_block_nhwc.5} parent=51 // pred_region
          %590 = dma.done %s584, 16
        $region76: #{inverted_res_block_nhwc.5} parent=51 // pred_fallthru
          _
        // Predicated region
        $region77: #{inverted_res_block_nhwc.5} parent=51 // pred_check
          %p591 = pneg %p256
        $region78: #{inverted_res_block_nhwc.5} parent=51 // pred_check_branch
          %593 = sbr.rel (%p591) target = $region80
        $region79: #{inverted_res_block_nhwc.5} parent=51 // pred_region
          %594 = dma.done [#allocation10], 192
        $region80: #{inverted_res_block_nhwc.5} parent=51 // pred_fallthru
          _
        // Predicated region
        $region81: #{inverted_res_block_nhwc.5} parent=51 // pred_check
          %p595 = pneg %p277
        $region82: #{inverted_res_block_nhwc.5} parent=51 // pred_check_branch
          %597 = sbr.rel (%p595) target = $region84
        $region83: #{inverted_res_block_nhwc.5} parent=51 // pred_region
          %598 = dma.done [#allocation15], 16
        $region84: #{inverted_res_block_nhwc.5} parent=51 // pred_fallthru
          _
        %s599 = sand.u32 %s36, 1
        %s600 = scalar_lea.sflag [#allocation4], %s599
        %s601 = sand.u32 %s77, 1
        %s602 = smul.addr %s601, 8
        %s603 = scalar_lea.vmem [#allocation3], %s602
        %p604 = pneg %p90
        %p605 = pneg %p87
        %s606 = sand.u32 %s36, 1
        %s607 = scalar_lea.sflag [#allocation7], %s606
        %s608 = sand.u32 %s109, 1
        %s609 = smul.addr %s608, 64
        %s610 = scalar_lea.vmem [#allocation6], %s609
        %p611 = pneg %p122
        %p612 = pneg %p119
        %s613 = sand.u32 %s36, 1
        %s614 = scalar_lea.sflag [#allocation7], %s613
        %s615 = sand.u32 %s149, 1
        %s616 = smul.addr %s615, 8
        %s617 = scalar_lea.vmem [#allocation8], %s616
        %p618 = pneg %p162
        %p619 = pneg %p159
        %p620 = pneg %p183
        %p621 = pneg %p180
        %s622 = sand.u32 %s36, 1
        %s623 = scalar_lea.sflag [#allocation4], %s622
        %s624 = sand.u32 %s196, 1
        %s625 = scalar_lea.vmem [#allocation11], %s624
        %p626 = pneg %p209
        %p627 = pneg %p206
        %s628 = sand.u32 %s36, 1
        %s629 = scalar_lea.sflag [#allocation7], %s628
        %s630 = sand.u32 %s222, 1
        %s631 = scalar_lea.vmem [#allocation12], %s630
        %p632 = pneg %p235
        %p633 = pneg %p232
        %p634 = pneg %p256
        %p635 = pneg %p253
        %p636 = pneg %p277
        %p637 = pneg %p274
        %p638 = pneg %p309
        %p639 = pneg %p306
        %s640 = sand.u32 %s296, 1
        %s641 = scalar_lea.sflag [#allocation5], %s640
        %s642 = sand.u32 %s296, 1
        %s643 = smul.addr %s642, 64
        %s644 = scalar_lea.vmem [#allocation16], %s643
        %p645 = pneg %p337
        %p646 = pneg %p334
        %s647 = sand.u32 %s36, 1
        %s648 = scalar_lea.sflag [#allocation18], %s647
        %s649 = sand.u32 %s324, 1
        %s650 = scalar_lea.vmem [#allocation17], %s649
        %p651 = pneg %p365
        %p652 = pneg %p362
        %s653 = sand.u32 %s36, 1
        %s654 = scalar_lea.sflag [#allocation18], %s653
        %s655 = sand.u32 %s352, 1
        %s656 = scalar_lea.vmem [#allocation19], %s655
        %s657 = smul.u32 %s41, 2
        %s658 = sadd.s32 %s657, %s43
        %p659 = scmp.eq.s32.totalorder %s658, 0
        %s660 = smul.u32 %s658, 8
        %s661 = ssub.s32 %s660, 1
        %s662 = scalar_select %p659, 1, %s661
        %s663 = smul.u32 %s41, 2
        %s664 = sadd.s32 %s663, %s43
        %s665 = smul.u32 8, %s664
        %s666 = smul.u32 %s41, 2
        %s667 = sadd.s32 %s666, %s43
        %p668 = scmp.eq.s32.totalorder %s667, 1
        %s669 = sadd.s32 %s667, 1
        %s670 = smul.u32 %s669, 8
        %s671 = scalar_select %p668, 14, %s670
        %s672 = smul.u32 %s41, 2
        %s673 = sadd.s32 %s672, %s43
        %s674 = smul.u32 8, %s673
        %v676 = vld [vmem:[%s578] sm:$0x1]
        %v677 = vld [vmem:[%s586] sm:$0x1]
        %v678 = vld [vmem:[%s557] sm:$0xf]
        %v679 = vld [vmem:[%s557 + $0x4] sm:$0xf]
        %v680 = vld [vmem:[%s557 + $0x8] sm:$0xf]
        %v681 = vld [vmem:[%s557 + $0xc] sm:$0xf]
        %v682 = vld [vmem:[%s557 + $0x10] sm:$0xf]
        %v683 = vld [vmem:[%s557 + $0x14] sm:$0xf]
        %v684 = vld [vmem:[%s557 + $0x18] sm:$0xf]
        %v685 = vld [vmem:[%s557 + $0x1c] sm:$0xf]
        %v686 = vld [vmem:[%s557 + $0x20] sm:$0xf]
        %v687 = vld [vmem:[%s557 + $0x24] sm:$0xf]
        %v688 = vld [vmem:[%s557 + $0x28] sm:$0xf]
        %v689 = vld [vmem:[%s557 + $0x2c] sm:$0xf]
        %v690 = vld [vmem:[%s557 + $0x30] sm:$0xf]
        %v691 = vld [vmem:[%s557 + $0x34] sm:$0xf]
        %v692 = vld [vmem:[%s557 + $0x38] sm:$0xf]
        %v693 = vld [vmem:[%s557 + $0x3c] sm:$0xf]
        %v694 = vld [vmem:[#allocation9] sm:$0x3]
        %v711 = vunpack.c.l.b16 %v678
        %v712 = vunpack.c.l.b16 %v679
        %v713 = vunpack.c.l.b16 %v680
        %v714 = vunpack.c.l.b16 %v681
        %v715 = vunpack.c.l.b16 %v682
        %v716 = vunpack.c.l.b16 %v683
        %v717 = vunpack.c.l.b16 %v684
        %v718 = vunpack.c.l.b16 %v685
        %v719 = vunpack.c.l.b16 %v686
        %v720 = vunpack.c.l.b16 %v687
        %v721 = vunpack.c.l.b16 %v688
        %v722 = vunpack.c.l.b16 %v689
        %v723 = vunpack.c.l.b16 %v690
        %v724 = vunpack.c.l.b16 %v691
        %v725 = vunpack.c.l.b16 %v692
        %v726 = vunpack.c.l.b16 %v693
        %v727 = vpack.c.b16 %v712, %v711
        %v728 = vpack.c.b16 %v714, %v713
        %v729 = vpack.c.b16 %v716, %v715
        %v730 = vpack.c.b16 %v718, %v717
        %v731 = vpack.c.b16 %v720, %v719
        %v732 = vpack.c.b16 %v722, %v721
        %v733 = vpack.c.b16 %v724, %v723
        %v734 = vpack.c.b16 %v726, %v725
        %vm735 = vcmask 31744
        %v737 = vsel %vm735, %v727, 0
        %v740 = vsel %vm735, %v728, 0
        %v743 = vsel %vm735, %v729, 0
        %v746 = vsel %vm735, %v730, 0
        %v749 = vsel %vm735, %v731, 0
        %v752 = vsel %vm735, %v732, 0
        %v755 = vsel %vm735, %v733, 0
        %v758 = vsel %vm735, %v734, 0
        %vm760 = vcmask 1041408
        %v762 = vsel %vm760, %v694, 0
        %764 = vmatprep.subr.bf16.mxu0 0
        %765 = vmatpush1.bf16.msra.mxu0 %v762
        %766 = vmatprep.subr.bf16.mxu0 0
        %767 = vmatpush1.bf16.msra.mxu0 0
        %768 = vmatprep.subr.bf16.mxu0 0
        %769 = vmatpush1.bf16.msra.mxu0 0
        %770 = vmatprep.subr.bf16.mxu0 0
        %771 = vmatpush1.bf16.msra.mxu0 0
        %772 = vmatprep.subr.bf16.mxu0 0
        %773 = vmatpush1.bf16.msra.mxu0 0
        %774 = vmatprep.subr.bf16.mxu0 0
        %775 = vmatpush1.bf16.msra.mxu0 0
        %776 = vmatprep.subr.bf16.mxu0 0
        %777 = vmatpush1.bf16.msra.mxu0 0
        %778 = vmatprep.subr.bf16.mxu0 0
        %779 = vmatpush1.bf16.msra.mxu0 0
        %780 = vmatprep.subr.bf16.mxu0 0
        %781 = vmatpush1.bf16.msra.mxu0 0
        %782 = vmatprep.subr.bf16.mxu0 0
        %783 = vmatpush1.bf16.msra.mxu0 0
        %784 = vmatprep.subr.bf16.mxu0 0
        %785 = vmatpush1.bf16.msra.mxu0 0
        %786 = vmatprep.subr.bf16.mxu0 0
        %787 = vmatpush1.bf16.msra.mxu0 0
        %788 = vmatprep.subr.bf16.mxu0 0
        %789 = vmatpush1.bf16.msra.mxu0 0
        %790 = vmatprep.subr.bf16.mxu0 0
        %791 = vmatpush1.bf16.msra.mxu0 0
        %792 = vmatprep.subr.bf16.mxu0 0
        %793 = vmatpush1.bf16.msra.mxu0 0
        %794 = vmatprep.subr.bf16.mxu0 0
        %795 = vmatpush1.bf16.msra.mxu0 0
        %796 = vmatprep.mubr.bf16.mxu0 0
        %797 = vmatmul.mubr.bf16.gmra.mrb[0].mxu0 %v737
        %v798 = vpop.f32.mrb[0].mxu0
        %v799 = vadd.f32 0.0, %v798
        %v800 = vpop.f32.mrb[0].mxu0
        %v801 = vpop.f32.mrb[0].mxu0
        %v802 = vadd.f32 0.0, %v801
        %v803 = vpop.f32.mrb[0].mxu0
        %804 = vmatprep.mubr.bf16.mxu0 0
        %805 = vmatmul.mubr.bf16.gmra.mrb[0].mxu0 %v740
        %v806 = vpop.f32.mrb[0].mxu0
        %v807 = vadd.f32 0.0, %v806
        %v808 = vpop.f32.mrb[0].mxu0
        %v809 = vpop.f32.mrb[0].mxu0
        %v810 = vadd.f32 0.0, %v809
        %v811 = vpop.f32.mrb[0].mxu0
        %812 = vmatprep.mubr.bf16.mxu0 0
        %813 = vmatmul.mubr.bf16.gmra.mrb[0].mxu0 %v743
        %v814 = vpop.f32.mrb[0].mxu0
        %v815 = vadd.f32 0.0, %v814
        %v816 = vpop.f32.mrb[0].mxu0
        %v817 = vpop.f32.mrb[0].mxu0
        %v818 = vadd.f32 0.0, %v817
        %v819 = vpop.f32.mrb[0].mxu0
        %820 = vmatprep.mubr.bf16.mxu0 0
        %821 = vmatmul.mubr.bf16.gmra.mrb[0].mxu0 %v746
        %v822 = vpop.f32.mrb[0].mxu0
        %v823 = vadd.f32 0.0, %v822
        %v824 = vpop.f32.mrb[0].mxu0
        %v825 = vpop.f32.mrb[0].mxu0
        %v826 = vadd.f32 0.0, %v825
        %v827 = vpop.f32.mrb[0].mxu0
        %828 = vmatprep.mubr.bf16.mxu0 0
        %829 = vmatmul.mubr.bf16.gmra.mrb[0].mxu0 %v749
        %v830 = vpop.f32.mrb[0].mxu0
        %v831 = vadd.f32 0.0, %v830
        %v832 = vpop.f32.mrb[0].mxu0
        %v833 = vpop.f32.mrb[0].mxu0
        %v834 = vadd.f32 0.0, %v833
        %v835 = vpop.f32.mrb[0].mxu0
        %836 = vmatprep.mubr.bf16.mxu0 0
        %837 = vmatmul.mubr.bf16.gmra.mrb[0].mxu0 %v752
        %v838 = vpop.f32.mrb[0].mxu0
        %v839 = vadd.f32 0.0, %v838
        %v840 = vpop.f32.mrb[0].mxu0
        %v841 = vpop.f32.mrb[0].mxu0
        %v842 = vadd.f32 0.0, %v841
        %v843 = vpop.f32.mrb[0].mxu0
        %844 = vmatprep.mubr.bf16.mxu0 0
        %845 = vmatmul.mubr.bf16.gmra.mrb[0].mxu0 %v755
        %v846 = vpop.f32.mrb[0].mxu0
        %v847 = vadd.f32 0.0, %v846
        %v848 = vpop.f32.mrb[0].mxu0
        %v849 = vpop.f32.mrb[0].mxu0
        %v850 = vadd.f32 0.0, %v849
        %v851 = vpop.f32.mrb[0].mxu0
        %852 = vmatprep.mubr.bf16.mxu0 0
        %853 = vmatmul.mubr.bf16.gmra.mrb[0].mxu0 %v758
        %v854 = vpop.f32.mrb[0].mxu0
        %v855 = vadd.f32 0.0, %v854
        %v856 = vpop.f32.mrb[0].mxu0
        %v857 = vpop.f32.mrb[0].mxu0
        %v858 = vadd.f32 0.0, %v857
        %v859 = vpop.f32.mrb[0].mxu0
        %860 = vdwg.mxu0
        %v862 = vlaneseq
        %v863 = vshrl.u32 %v862, 7
        %v864 = vsub.s32 0, %v863
        %v865 = vrot.slane %v676, %v864
        %v867 = vmul.f32 %v799, %v865
        %v868 = vmul.f32 %v802, %v865
        %v869 = vmul.f32 %v807, %v865
        %v870 = vmul.f32 %v810, %v865
        %v871 = vmul.f32 %v815, %v865
        %v872 = vmul.f32 %v818, %v865
        %v873 = vmul.f32 %v823, %v865
        %v874 = vmul.f32 %v826, %v865
        %v875 = vmul.f32 %v831, %v865
        %v876 = vmul.f32 %v834, %v865
        %v877 = vmul.f32 %v839, %v865
        %v878 = vmul.f32 %v842, %v865
        %v879 = vmul.f32 %v847, %v865
        %v880 = vmul.f32 %v850, %v865
        %v881 = vmul.f32 %v855, %v865
        %v882 = vmul.f32 %v858, %v865
        %v884 = vlaneseq
        %v885 = vshrl.u32 %v884, 7
        %v886 = vsub.s32 0, %v885
        %v887 = vrot.slane %v677, %v886
        %v889 = vadd.f32 %v867, %v887
        %v890 = vadd.f32 %v868, %v887
        %v891 = vadd.f32 %v869, %v887
        %v892 = vadd.f32 %v870, %v887
        %v893 = vadd.f32 %v871, %v887
        %v894 = vadd.f32 %v872, %v887
        %v895 = vadd.f32 %v873, %v887
        %v896 = vadd.f32 %v874, %v887
        %v897 = vadd.f32 %v875, %v887
        %v898 = vadd.f32 %v876, %v887
        %v899 = vadd.f32 %v877, %v887
        %v900 = vadd.f32 %v878, %v887
        %v901 = vadd.f32 %v879, %v887
        %v902 = vadd.f32 %v880, %v887
        %v903 = vadd.f32 %v881, %v887
        %v904 = vadd.f32 %v882, %v887
        %vm905 = vcmp.gt.f32.partialorder %v889, 0.0
        %vm906 = vcmp.gt.f32.partialorder %v890, 0.0
        %vm907 = vcmp.gt.f32.partialorder %v891, 0.0
        %vm908 = vcmp.gt.f32.partialorder %v892, 0.0
        %vm909 = vcmp.gt.f32.partialorder %v893, 0.0
        %vm910 = vcmp.gt.f32.partialorder %v894, 0.0
        %vm911 = vcmp.gt.f32.partialorder %v895, 0.0
        %vm912 = vcmp.gt.f32.partialorder %v896, 0.0
        %vm913 = vcmp.gt.f32.partialorder %v897, 0.0
        %vm914 = vcmp.gt.f32.partialorder %v898, 0.0
        %vm915 = vcmp.gt.f32.partialorder %v899, 0.0
        %vm916 = vcmp.gt.f32.partialorder %v900, 0.0
        %vm917 = vcmp.gt.f32.partialorder %v901, 0.0
        %vm918 = vcmp.gt.f32.partialorder %v902, 0.0
        %vm919 = vcmp.gt.f32.partialorder %v903, 0.0
        %vm920 = vcmp.gt.f32.partialorder %v904, 0.0
        %v921 = vmul.f32 %v889, 0.2
        %v922 = vmul.f32 %v890, 0.2
        %v923 = vmul.f32 %v891, 0.2
        %v924 = vmul.f32 %v892, 0.2
        %v925 = vmul.f32 %v893, 0.2
        %v926 = vmul.f32 %v894, 0.2
        %v927 = vmul.f32 %v895, 0.2
        %v928 = vmul.f32 %v896, 0.2
        %v929 = vmul.f32 %v897, 0.2
        %v930 = vmul.f32 %v898, 0.2
        %v931 = vmul.f32 %v899, 0.2
        %v932 = vmul.f32 %v900, 0.2
        %v933 = vmul.f32 %v901, 0.2
        %v934 = vmul.f32 %v902, 0.2
        %v935 = vmul.f32 %v903, 0.2
        %v936 = vmul.f32 %v904, 0.2
        %v937 = vsel %vm905, %v889, %v921
        %v938 = vsel %vm906, %v890, %v922
        %v939 = vsel %vm907, %v891, %v923
        %v940 = vsel %vm908, %v892, %v924
        %v941 = vsel %vm909, %v893, %v925
        %v942 = vsel %vm910, %v894, %v926
        %v943 = vsel %vm911, %v895, %v927
        %v944 = vsel %vm912, %v896, %v928
        %v945 = vsel %vm913, %v897, %v929
        %v946 = vsel %vm914, %v898, %v930
        %v947 = vsel %vm915, %v899, %v931
        %v948 = vsel %vm916, %v900, %v932
        %v949 = vsel %vm917, %v901, %v933
        %v950 = vsel %vm918, %v902, %v934
        %v951 = vsel %vm919, %v903, %v935
        %v952 = vsel %vm920, %v904, %v936
        %s953 = scalar_lea.vmem [#allocation2], 24
        %vm954 = vcmask 64512
        %955 = vst.msk [vmem:[%s953 + $0x1] sm:$0xff] %vm954, %v937
        %956 = vst.msk [vmem:[%s953 + $0x9] sm:$0xff] %vm954, %v938
        %957 = vst.msk [vmem:[%s953 + $0x19] sm:$0xff] %vm954, %v939
        %958 = vst.msk [vmem:[%s953 + $0x21] sm:$0xff] %vm954, %v940
        %959 = vst.msk [vmem:[%s953 + $0x31] sm:$0xff] %vm954, %v941
        %960 = vst.msk [vmem:[%s953 + $0x39] sm:$0xff] %vm954, %v942
        %961 = vst.msk [vmem:[%s953 + $0x49] sm:$0xff] %vm954, %v943
        %962 = vst.msk [vmem:[%s953 + $0x51] sm:$0xff] %vm954, %v944
        %963 = vst.msk [vmem:[%s953 + $0x61] sm:$0xff] %vm954, %v945
        %964 = vst.msk [vmem:[%s953 + $0x69] sm:$0xff] %vm954, %v946
        %965 = vst.msk [vmem:[%s953 + $0x79] sm:$0xff] %vm954, %v947
        %966 = vst.msk [vmem:[%s953 + $0x81] sm:$0xff] %vm954, %v948
        %967 = vst.msk [vmem:[%s953 + $0x91] sm:$0xff] %vm954, %v949
        %968 = vst.msk [vmem:[%s953 + $0x99] sm:$0xff] %vm954, %v950
        %969 = vst.msk [vmem:[%s953 + $0xa9] sm:$0xff] %vm954, %v951
        %970 = vst.msk [vmem:[%s953 + $0xb1] sm:$0xff] %vm954, %v952
        %v971 = vld [vmem:[%s548] sm:$0xf]
        %v972 = vld [vmem:[%s548 + $0x4] sm:$0xf]
        %v973 = vld [vmem:[#allocation9] sm:$0x3]
        %v976 = vunpack.c.l.b16 %v971
        %v977 = vunpack.c.l.b16 %v972
        %v978 = vpack.c.b16 %v977, %v976
        %v980 = vsel %vm735, %v978, 0
        %v983 = vsel %vm760, %v973, 0
        %985 = vmatprep.subr.bf16.mxu0 0
        %986 = vmatpush1.bf16.msra.mxu0 %v983
        %987 = vmatprep.subr.bf16.mxu0 0
        %988 = vmatpush1.bf16.msra.mxu0 0
        %989 = vmatprep.subr.bf16.mxu0 0
        %990 = vmatpush1.bf16.msra.mxu0 0
        %991 = vmatprep.subr.bf16.mxu0 0
        %992 = vmatpush1.bf16.msra.mxu0 0
        %993 = vmatprep.subr.bf16.mxu0 0
        %994 = vmatpush1.bf16.msra.mxu0 0
        %995 = vmatprep.subr.bf16.mxu0 0
        %996 = vmatpush1.bf16.msra.mxu0 0
        %997 = vmatprep.subr.bf16.mxu0 0
        %998 = vmatpush1.bf16.msra.mxu0 0
        %999 = vmatprep.subr.bf16.mxu0 0
        %1000 = vmatpush1.bf16.msra.mxu0 0
        %1001 = vmatprep.subr.bf16.mxu0 0
        %1002 = vmatpush1.bf16.msra.mxu0 0
        %1003 = vmatprep.subr.bf16.mxu0 0
        %1004 = vmatpush1.bf16.msra.mxu0 0
        %1005 = vmatprep.subr.bf16.mxu0 0
        %1006 = vmatpush1.bf16.msra.mxu0 0
        %1007 = vmatprep.subr.bf16.mxu0 0
        %1008 = vmatpush1.bf16.msra.mxu0 0
        %1009 = vmatprep.subr.bf16.mxu0 0
        %1010 = vmatpush1.bf16.msra.mxu0 0
        %1011 = vmatprep.subr.bf16.mxu0 0
        %1012 = vmatpush1.bf16.msra.mxu0 0
        %1013 = vmatprep.subr.bf16.mxu0 0
        %1014 = vmatpush1.bf16.msra.mxu0 0
        %1015 = vmatprep.subr.bf16.mxu0 0
        %1016 = vmatpush1.bf16.msra.mxu0 0
        %1017 = vmatprep.mubr.bf16.mxu0 0
        %1018 = vmatmul.mubr.bf16.gmra.mrb[0].mxu0 %v980
        %v1019 = vpop.f32.mrb[0].mxu0
        %v1020 = vadd.f32 0.0, %v1019
        %v1021 = vpop.f32.mrb[0].mxu0
        %v1022 = vpop.f32.mrb[0].mxu0
        %v1023 = vadd.f32 0.0, %v1022
        %v1024 = vpop.f32.mrb[0].mxu0
        %1025 = vdwg.mxu0
        %v1026 = vmul.f32 %v1020, %v865
        %v1027 = vmul.f32 %v1023, %v865
        %v1028 = vadd.f32 %v1026, %v887
        %v1029 = vadd.f32 %v1027, %v887
        %vm1030 = vcmp.gt.f32.partialorder %v1028, 0.0
        %vm1031 = vcmp.gt.f32.partialorder %v1029, 0.0
        %v1032 = vmul.f32 %v1028, 0.2
        %v1033 = vmul.f32 %v1029, 0.2
        %v1034 = vsel %vm1030, %v1028, %v1032
        %v1035 = vsel %vm1031, %v1029, %v1033
        %1036 = vst.msk [vmem:[#allocation2 + $0x1] sm:$0xff] %vm954, %v1034
        %1037 = vst.msk [vmem:[#allocation2 + $0x9] sm:$0xff] %vm954, %v1035
        %v1038 = vld [vmem:[%s566] sm:$0xf]
        %v1039 = vld [vmem:[%s566 + $0x4] sm:$0xf]
        %v1040 = vld [vmem:[#allocation9] sm:$0x3]
        %v1043 = vunpack.c.l.b16 %v1038
        %v1044 = vunpack.c.l.b16 %v1039
        %v1045 = vpack.c.b16 %v1044, %v1043
        %v1047 = vsel %vm735, %v1045, 0
        %v1050 = vsel %vm760, %v1040, 0
        %1052 = vmatprep.subr.bf16.mxu0 0
        %1053 = vmatpush1.bf16.msra.mxu0 %v1050
        %1054 = vmatprep.subr.bf16.mxu0 0
        %1055 = vmatpush1.bf16.msra.mxu0 0
        %1056 = vmatprep.subr.bf16.mxu0 0
        %1057 = vmatpush1.bf16.msra.mxu0 0
        %1058 = vmatprep.subr.bf16.mxu0 0
        %1059 = vmatpush1.bf16.msra.mxu0 0
        %1060 = vmatprep.subr.bf16.mxu0 0
        %1061 = vmatpush1.bf16.msra.mxu0 0
        %1062 = vmatprep.subr.bf16.mxu0 0
        %1063 = vmatpush1.bf16.msra.mxu0 0
        %1064 = vmatprep.subr.bf16.mxu0 0
        %1065 = vmatpush1.bf16.msra.mxu0 0
        %1066 = vmatprep.subr.bf16.mxu0 0
        %1067 = vmatpush1.bf16.msra.mxu0 0
        %1068 = vmatprep.subr.bf16.mxu0 0
        %1069 = vmatpush1.bf16.msra.mxu0 0
        %1070 = vmatprep.subr.bf16.mxu0 0
        %1071 = vmatpush1.bf16.msra.mxu0 0
        %1072 = vmatprep.subr.bf16.mxu0 0
        %1073 = vmatpush1.bf16.msra.mxu0 0
        %1074 = vmatprep.subr.bf16.mxu0 0
        %1075 = vmatpush1.bf16.msra.mxu0 0
        %1076 = vmatprep.subr.bf16.mxu0 0
        %1077 = vmatpush1.bf16.msra.mxu0 0
        %1078 = vmatprep.subr.bf16.mxu0 0
        %1079 = vmatpush1.bf16.msra.mxu0 0
        %1080 = vmatprep.subr.bf16.mxu0 0
        %1081 = vmatpush1.bf16.msra.mxu0 0
        %1082 = vmatprep.subr.bf16.mxu0 0
        %1083 = vmatpush1.bf16.msra.mxu0 0
        %1084 = vmatprep.mubr.bf16.mxu0 0
        %1085 = vmatmul.mubr.bf16.gmra.mrb[0].mxu0 %v1047
        %v1086 = vpop.f32.mrb[0].mxu0
        %v1087 = vadd.f32 0.0, %v1086
        %v1088 = vpop.f32.mrb[0].mxu0
        %v1089 = vpop.f32.mrb[0].mxu0
        %v1090 = vadd.f32 0.0, %v1089
        %v1091 = vpop.f32.mrb[0].mxu0
        %1092 = vdwg.mxu0
        %v1093 = vmul.f32 %v1087, %v865
        %v1094 = vmul.f32 %v1090, %v865
        %v1095 = vadd.f32 %v1093, %v887
        %v1096 = vadd.f32 %v1094, %v887
        %vm1097 = vcmp.gt.f32.partialorder %v1095, 0.0
        %vm1098 = vcmp.gt.f32.partialorder %v1096, 0.0
        %v1099 = vmul.f32 %v1095, 0.2
        %v1100 = vmul.f32 %v1096, 0.2
        %v1101 = vsel %vm1097, %v1095, %v1099
        %v1102 = vsel %vm1098, %v1096, %v1100
        %s1103 = scalar_lea.vmem [#allocation2], 216
        %1104 = vst.msk [vmem:[%s1103 + $0x1] sm:$0xff] %vm954, %v1101
        %1105 = vst.msk [vmem:[%s1103 + $0x9] sm:$0xff] %vm954, %v1102
        %v1106 = vld [vmem:[#allocation2 + $0x2] sm:$0x1]
        %v1107 = vld [vmem:[#allocation2 + $0x1a] sm:$0x1]
        %v1108 = vld [vmem:[#allocation2 + $0x32] sm:$0x1]
        %v1109 = vld [vmem:[#allocation2 + $0x4a] sm:$0x1]
        %v1110 = vld [vmem:[#allocation2 + $0x62] sm:$0x1]
        %v1111 = vld [vmem:[#allocation2 + $0x7a] sm:$0x1]
        %v1112 = vld [vmem:[#allocation2 + $0x92] sm:$0x1]
        %v1113 = vld [vmem:[#allocation2 + $0xaa] sm:$0x1]
        %v1114 = vld [vmem:[#allocation2 + $0xc2] sm:$0x1]
        %v1115 = vld [vmem:[#allocation2 + $0xda] sm:$0x1]
        %vm1116 = vcmask 57344
        %1117 = vst.msk [vmem:[#allocation2] sm:$0x1] %vm1116, %v1106
        %1118 = vst.msk [vmem:[#allocation2 + $0x18] sm:$0x1] %vm1116, %v1107
        %1119 = vst.msk [vmem:[#allocation2 + $0x30] sm:$0x1] %vm1116, %v1108
        %1120 = vst.msk [vmem:[#allocation2 + $0x48] sm:$0x1] %vm1116, %v1109
        %1121 = vst.msk [vmem:[#allocation2 + $0x60] sm:$0x1] %vm1116, %v1110
        %1122 = vst.msk [vmem:[#allocation2 + $0x78] sm:$0x1] %vm1116, %v1111
        %1123 = vst.msk [vmem:[#allocation2 + $0x90] sm:$0x1] %vm1116, %v1112
        %1124 = vst.msk [vmem:[#allocation2 + $0xa8] sm:$0x1] %vm1116, %v1113
        %1125 = vst.msk [vmem:[#allocation2 + $0xc0] sm:$0x1] %vm1116, %v1114
        %1126 = vst.msk [vmem:[#allocation2 + $0xd8] sm:$0x1] %vm1116, %v1115
        %v1127 = vld [vmem:[#allocation2 + $0xf] sm:$0x1]
        %v1128 = vld [vmem:[#allocation2 + $0x27] sm:$0x1]
        %v1129 = vld [vmem:[#allocation2 + $0x3f] sm:$0x1]
        %v1130 = vld [vmem:[#allocation2 + $0x57] sm:$0x1]
        %v1131 = vld [vmem:[#allocation2 + $0x6f] sm:$0x1]
        %v1132 = vld [vmem:[#allocation2 + $0x87] sm:$0x1]
        %v1133 = vld [vmem:[#allocation2 + $0x9f] sm:$0x1]
        %v1134 = vld [vmem:[#allocation2 + $0xb7] sm:$0x1]
        %v1135 = vld [vmem:[#allocation2 + $0xcf] sm:$0x1]
        %v1136 = vld [vmem:[#allocation2 + $0xe7] sm:$0x1]
        %1137 = vst.msk [vmem:[#allocation2 + $0x11] sm:$0x1] %vm1116, %v1127
        %1138 = vst.msk [vmem:[#allocation2 + $0x29] sm:$0x1] %vm1116, %v1128
        %1139 = vst.msk [vmem:[#allocation2 + $0x41] sm:$0x1] %vm1116, %v1129
        %1140 = vst.msk [vmem:[#allocation2 + $0x59] sm:$0x1] %vm1116, %v1130
        %1141 = vst.msk [vmem:[#allocation2 + $0x71] sm:$0x1] %vm1116, %v1131
        %1142 = vst.msk [vmem:[#allocation2 + $0x89] sm:$0x1] %vm1116, %v1132
        %1143 = vst.msk [vmem:[#allocation2 + $0xa1] sm:$0x1] %vm1116, %v1133
        %1144 = vst.msk [vmem:[#allocation2 + $0xb9] sm:$0x1] %vm1116, %v1134
        %1145 = vst.msk [vmem:[#allocation2 + $0xd1] sm:$0x1] %vm1116, %v1135
        %1146 = vst.msk [vmem:[#allocation2 + $0xe9] sm:$0x1] %vm1116, %v1136
        %v1147 = vld [vmem:[#allocation13] sm:$0x7]
        %v1148 = vld [vmem:[#allocation13 + $0x4] sm:$0x7]
        %v1149 = vld [vmem:[#allocation13 + $0x8] sm:$0x7]
        %v1150 = vld [vmem:[#allocation14] sm:$0x1]
        %v1151 = vld [vmem:[#allocation2] sm:$0xff]
        %v1152 = vld [vmem:[#allocation2 + $0x8] sm:$0xff]
        %v1153 = vld [vmem:[#allocation2 + $0x18] sm:$0xff]
        %v1154 = vld [vmem:[#allocation2 + $0x20] sm:$0xff]
        %v1155 = vld [vmem:[#allocation2 + $0x30] sm:$0xff]
        %v1156 = vld [vmem:[#allocation2 + $0x38] sm:$0xff]
        %v1157 = vld [vmem:[#allocation2 + $0x48] sm:$0xff]
        %v1158 = vld [vmem:[#allocation2 + $0x50] sm:$0xff]
        %v1159 = vld [vmem:[#allocation2 + $0x60] sm:$0xff]
        %v1160 = vld [vmem:[#allocation2 + $0x68] sm:$0xff]
        %v1161 = vld [vmem:[#allocation2 + $0x78] sm:$0xff]
        %v1162 = vld [vmem:[#allocation2 + $0x80] sm:$0xff]
        %v1163 = vld [vmem:[#allocation2 + $0x90] sm:$0xff]
        %v1164 = vld [vmem:[#allocation2 + $0x98] sm:$0xff]
        %v1165 = vld [vmem:[#allocation2 + $0xa8] sm:$0xff]
        %v1166 = vld [vmem:[#allocation2 + $0xb0] sm:$0xff]
        %v1167 = vlaneseq
        %v1168 = vshrl.u32 %v1167, 7
        %v1169 = vsub.s32 0, %v1168
        %v1170 = vrot.slane %v1147, %v1169
        %v1171 = vmul.f32 %v1151, %v1170
        %v1172 = vmul.f32 %v1152, %v1170
        %v1173 = vmul.f32 %v1153, %v1170
        %v1174 = vmul.f32 %v1154, %v1170
        %v1175 = vmul.f32 %v1155, %v1170
        %v1176 = vmul.f32 %v1156, %v1170
        %v1177 = vmul.f32 %v1157, %v1170
        %v1178 = vmul.f32 %v1158, %v1170
        %v1179 = vmul.f32 %v1159, %v1170
        %v1180 = vmul.f32 %v1160, %v1170
        %v1181 = vmul.f32 %v1161, %v1170
        %v1182 = vmul.f32 %v1162, %v1170
        %v1183 = vmul.f32 %v1163, %v1170
        %v1184 = vmul.f32 %v1164, %v1170
        %v1185 = vmul.f32 %v1165, %v1170
        %v1186 = vmul.f32 %v1166, %v1170
        %v1188 = vlaneseq
        %v1189 = vshrl.u32 %v1188, 7
        %v1190 = vsub.s32 0, %v1189
        %v1191 = vrot.slane %v1150, %v1190
        %v1193 = vadd.f32 %v1171, %v1191
        %v1194 = vadd.f32 %v1172, %v1191
        %v1195 = vadd.f32 %v1173, %v1191
        %v1196 = vadd.f32 %v1174, %v1191
        %v1197 = vadd.f32 %v1175, %v1191
        %v1198 = vadd.f32 %v1176, %v1191
        %v1199 = vadd.f32 %v1177, %v1191
        %v1200 = vadd.f32 %v1178, %v1191
        %v1201 = vadd.f32 %v1179, %v1191
        %v1202 = vadd.f32 %v1180, %v1191
        %v1203 = vadd.f32 %v1181, %v1191
        %v1204 = vadd.f32 %v1182, %v1191
        %v1205 = vadd.f32 %v1183, %v1191
        %v1206 = vadd.f32 %v1184, %v1191
        %v1207 = vadd.f32 %v1185, %v1191
        %v1208 = vadd.f32 %v1186, %v1191
        %v1209 = vld [vmem:[#allocation2 + $0x1] sm:$0xff]
        %v1210 = vld [vmem:[#allocation2 + $0x9] sm:$0xff]
        %v1211 = vld [vmem:[#allocation2 + $0x19] sm:$0xff]
        %v1212 = vld [vmem:[#allocation2 + $0x21] sm:$0xff]
        %v1213 = vld [vmem:[#allocation2 + $0x31] sm:$0xff]
        %v1214 = vld [vmem:[#allocation2 + $0x39] sm:$0xff]
        %v1215 = vld [vmem:[#allocation2 + $0x49] sm:$0xff]
        %v1216 = vld [vmem:[#allocation2 + $0x51] sm:$0xff]
        %v1217 = vld [vmem:[#allocation2 + $0x61] sm:$0xff]
        %v1218 = vld [vmem:[#allocation2 + $0x69] sm:$0xff]
        %v1219 = vld [vmem:[#allocation2 + $0x79] sm:$0xff]
        %v1220 = vld [vmem:[#allocation2 + $0x81] sm:$0xff]
        %v1221 = vld [vmem:[#allocation2 + $0x91] sm:$0xff]
        %v1222 = vld [vmem:[#allocation2 + $0x99] sm:$0xff]
        %v1223 = vld [vmem:[#allocation2 + $0xa9] sm:$0xff]
        %v1224 = vld [vmem:[#allocation2 + $0xb1] sm:$0xff]
        %v1225 = vlaneseq
        %v1226 = vshrl.u32 %v1225, 7
        %v1227 = vsub.s32 1, %v1226
        %v1228 = vrot.slane %v1147, %v1227
        %v1229 = vmul.f32 %v1209, %v1228
        %v1230 = vmul.f32 %v1210, %v1228
        %v1231 = vmul.f32 %v1211, %v1228
        %v1232 = vmul.f32 %v1212, %v1228
        %v1233 = vmul.f32 %v1213, %v1228
        %v1234 = vmul.f32 %v1214, %v1228
        %v1235 = vmul.f32 %v1215, %v1228
        %v1236 = vmul.f32 %v1216, %v1228
        %v1237 = vmul.f32 %v1217, %v1228
        %v1238 = vmul.f32 %v1218, %v1228
        %v1239 = vmul.f32 %v1219, %v1228
        %v1240 = vmul.f32 %v1220, %v1228
        %v1241 = vmul.f32 %v1221, %v1228
        %v1242 = vmul.f32 %v1222, %v1228
        %v1243 = vmul.f32 %v1223, %v1228
        %v1244 = vmul.f32 %v1224, %v1228
        %v1245 = vadd.f32 %v1193, %v1229
        %v1246 = vadd.f32 %v1194, %v1230
        %v1247 = vadd.f32 %v1195, %v1231
        %v1248 = vadd.f32 %v1196, %v1232
        %v1249 = vadd.f32 %v1197, %v1233
        %v1250 = vadd.f32 %v1198, %v1234
        %v1251 = vadd.f32 %v1199, %v1235
        %v1252 = vadd.f32 %v1200, %v1236
        %v1253 = vadd.f32 %v1201, %v1237
        %v1254 = vadd.f32 %v1202, %v1238
        %v1255 = vadd.f32 %v1203, %v1239
        %v1256 = vadd.f32 %v1204, %v1240
        %v1257 = vadd.f32 %v1205, %v1241
        %v1258 = vadd.f32 %v1206, %v1242
        %v1259 = vadd.f32 %v1207, %v1243
        %v1260 = vadd.f32 %v1208, %v1244
        %v1261 = vld [vmem:[#allocation2 + $0x2] sm:$0xff]
        %v1262 = vld [vmem:[#allocation2 + $0xa] sm:$0xff]
        %v1263 = vld [vmem:[#allocation2 + $0x1a] sm:$0xff]
        %v1264 = vld [vmem:[#allocation2 + $0x22] sm:$0xff]
        %v1265 = vld [vmem:[#allocation2 + $0x32] sm:$0xff]
        %v1266 = vld [vmem:[#allocation2 + $0x3a] sm:$0xff]
        %v1267 = vld [vmem:[#allocation2 + $0x4a] sm:$0xff]
        %v1268 = vld [vmem:[#allocation2 + $0x52] sm:$0xff]
        %v1269 = vld [vmem:[#allocation2 + $0x62] sm:$0xff]
        %v1270 = vld [vmem:[#allocation2 + $0x6a] sm:$0xff]
        %v1271 = vld [vmem:[#allocation2 + $0x7a] sm:$0xff]
        %v1272 = vld [vmem:[#allocation2 + $0x82] sm:$0xff]
        %v1273 = vld [vmem:[#allocation2 + $0x92] sm:$0xff]
        %v1274 = vld [vmem:[#allocation2 + $0x9a] sm:$0xff]
        %v1275 = vld [vmem:[#allocation2 + $0xaa] sm:$0xff]
        %v1276 = vld [vmem:[#allocation2 + $0xb2] sm:$0xff]
        %v1277 = vlaneseq
        %v1278 = vshrl.u32 %v1277, 7
        %v1279 = vsub.s32 2, %v1278
        %v1280 = vrot.slane %v1147, %v1279
        %v1281 = vmul.f32 %v1261, %v1280
        %v1282 = vmul.f32 %v1262, %v1280
        %v1283 = vmul.f32 %v1263, %v1280
        %v1284 = vmul.f32 %v1264, %v1280
        %v1285 = vmul.f32 %v1265, %v1280
        %v1286 = vmul.f32 %v1266, %v1280
        %v1287 = vmul.f32 %v1267, %v1280
        %v1288 = vmul.f32 %v1268, %v1280
        %v1289 = vmul.f32 %v1269, %v1280
        %v1290 = vmul.f32 %v1270, %v1280
        %v1291 = vmul.f32 %v1271, %v1280
        %v1292 = vmul.f32 %v1272, %v1280
        %v1293 = vmul.f32 %v1273, %v1280
        %v1294 = vmul.f32 %v1274, %v1280
        %v1295 = vmul.f32 %v1275, %v1280
        %v1296 = vmul.f32 %v1276, %v1280
        %v1297 = vadd.f32 %v1245, %v1281
        %v1298 = vadd.f32 %v1246, %v1282
        %v1299 = vadd.f32 %v1247, %v1283
        %v1300 = vadd.f32 %v1248, %v1284
        %v1301 = vadd.f32 %v1249, %v1285
        %v1302 = vadd.f32 %v1250, %v1286
        %v1303 = vadd.f32 %v1251, %v1287
        %v1304 = vadd.f32 %v1252, %v1288
        %v1305 = vadd.f32 %v1253, %v1289
        %v1306 = vadd.f32 %v1254, %v1290
        %v1307 = vadd.f32 %v1255, %v1291
        %v1308 = vadd.f32 %v1256, %v1292
        %v1309 = vadd.f32 %v1257, %v1293
        %v1310 = vadd.f32 %v1258, %v1294
        %v1311 = vadd.f32 %v1259, %v1295
        %v1312 = vadd.f32 %v1260, %v1296
        %v1313 = vld [vmem:[%s953] sm:$0xff]
        %v1314 = vld [vmem:[%s953 + $0x8] sm:$0xff]
        %v1315 = vld [vmem:[%s953 + $0x18] sm:$0xff]
        %v1316 = vld [vmem:[%s953 + $0x20] sm:$0xff]
        %v1317 = vld [vmem:[%s953 + $0x30] sm:$0xff]
        %v1318 = vld [vmem:[%s953 + $0x38] sm:$0xff]
        %v1319 = vld [vmem:[%s953 + $0x48] sm:$0xff]
        %v1320 = vld [vmem:[%s953 + $0x50] sm:$0xff]
        %v1321 = vld [vmem:[%s953 + $0x60] sm:$0xff]
        %v1322 = vld [vmem:[%s953 + $0x68] sm:$0xff]
        %v1323 = vld [vmem:[%s953 + $0x78] sm:$0xff]
        %v1324 = vld [vmem:[%s953 + $0x80] sm:$0xff]
        %v1325 = vld [vmem:[%s953 + $0x90] sm:$0xff]
        %v1326 = vld [vmem:[%s953 + $0x98] sm:$0xff]
        %v1327 = vld [vmem:[%s953 + $0xa8] sm:$0xff]
        %v1328 = vld [vmem:[%s953 + $0xb0] sm:$0xff]
        %v1329 = vlaneseq
        %v1330 = vshrl.u32 %v1329, 7
        %v1331 = vsub.s32 0, %v1330
        %v1332 = vrot.slane %v1148, %v1331
        %v1333 = vmul.f32 %v1313, %v1332
        %v1334 = vmul.f32 %v1314, %v1332
        %v1335 = vmul.f32 %v1315, %v1332
        %v1336 = vmul.f32 %v1316, %v1332
        %v1337 = vmul.f32 %v1317, %v1332
        %v1338 = vmul.f32 %v1318, %v1332
        %v1339 = vmul.f32 %v1319, %v1332
        %v1340 = vmul.f32 %v1320, %v1332
        %v1341 = vmul.f32 %v1321, %v1332
        %v1342 = vmul.f32 %v1322, %v1332
        %v1343 = vmul.f32 %v1323, %v1332
        %v1344 = vmul.f32 %v1324, %v1332
        %v1345 = vmul.f32 %v1325, %v1332
        %v1346 = vmul.f32 %v1326, %v1332
        %v1347 = vmul.f32 %v1327, %v1332
        %v1348 = vmul.f32 %v1328, %v1332
        %v1349 = vadd.f32 %v1297, %v1333
        %v1350 = vadd.f32 %v1298, %v1334
        %v1351 = vadd.f32 %v1299, %v1335
        %v1352 = vadd.f32 %v1300, %v1336
        %v1353 = vadd.f32 %v1301, %v1337
        %v1354 = vadd.f32 %v1302, %v1338
        %v1355 = vadd.f32 %v1303, %v1339
        %v1356 = vadd.f32 %v1304, %v1340
        %v1357 = vadd.f32 %v1305, %v1341
        %v1358 = vadd.f32 %v1306, %v1342
        %v1359 = vadd.f32 %v1307, %v1343
        %v1360 = vadd.f32 %v1308, %v1344
        %v1361 = vadd.f32 %v1309, %v1345
        %v1362 = vadd.f32 %v1310, %v1346
        %v1363 = vadd.f32 %v1311, %v1347
        %v1364 = vadd.f32 %v1312, %v1348
        %v1365 = vld [vmem:[%s953 + $0x1] sm:$0xff]
        %v1366 = vld [vmem:[%s953 + $0x9] sm:$0xff]
        %v1367 = vld [vmem:[%s953 + $0x19] sm:$0xff]
        %v1368 = vld [vmem:[%s953 + $0x21] sm:$0xff]
        %v1369 = vld [vmem:[%s953 + $0x31] sm:$0xff]
        %v1370 = vld [vmem:[%s953 + $0x39] sm:$0xff]
        %v1371 = vld [vmem:[%s953 + $0x49] sm:$0xff]
        %v1372 = vld [vmem:[%s953 + $0x51] sm:$0xff]
        %v1373 = vld [vmem:[%s953 + $0x61] sm:$0xff]
        %v1374 = vld [vmem:[%s953 + $0x69] sm:$0xff]
        %v1375 = vld [vmem:[%s953 + $0x79] sm:$0xff]
        %v1376 = vld [vmem:[%s953 + $0x81] sm:$0xff]
        %v1377 = vld [vmem:[%s953 + $0x91] sm:$0xff]
        %v1378 = vld [vmem:[%s953 + $0x99] sm:$0xff]
        %v1379 = vld [vmem:[%s953 + $0xa9] sm:$0xff]
        %v1380 = vld [vmem:[%s953 + $0xb1] sm:$0xff]
        %v1381 = vlaneseq
        %v1382 = vshrl.u32 %v1381, 7
        %v1383 = vsub.s32 1, %v1382
        %v1384 = vrot.slane %v1148, %v1383
        %v1385 = vmul.f32 %v1365, %v1384
        %v1386 = vmul.f32 %v1366, %v1384
        %v1387 = vmul.f32 %v1367, %v1384
        %v1388 = vmul.f32 %v1368, %v1384
        %v1389 = vmul.f32 %v1369, %v1384
        %v1390 = vmul.f32 %v1370, %v1384
        %v1391 = vmul.f32 %v1371, %v1384
        %v1392 = vmul.f32 %v1372, %v1384
        %v1393 = vmul.f32 %v1373, %v1384
        %v1394 = vmul.f32 %v1374, %v1384
        %v1395 = vmul.f32 %v1375, %v1384
        %v1396 = vmul.f32 %v1376, %v1384
        %v1397 = vmul.f32 %v1377, %v1384
        %v1398 = vmul.f32 %v1378, %v1384
        %v1399 = vmul.f32 %v1379, %v1384
        %v1400 = vmul.f32 %v1380, %v1384
        %v1401 = vadd.f32 %v1349, %v1385
        %v1402 = vadd.f32 %v1350, %v1386
        %v1403 = vadd.f32 %v1351, %v1387
        %v1404 = vadd.f32 %v1352, %v1388
        %v1405 = vadd.f32 %v1353, %v1389
        %v1406 = vadd.f32 %v1354, %v1390
        %v1407 = vadd.f32 %v1355, %v1391
        %v1408 = vadd.f32 %v1356, %v1392
        %v1409 = vadd.f32 %v1357, %v1393
        %v1410 = vadd.f32 %v1358, %v1394
        %v1411 = vadd.f32 %v1359, %v1395
        %v1412 = vadd.f32 %v1360, %v1396
        %v1413 = vadd.f32 %v1361, %v1397
        %v1414 = vadd.f32 %v1362, %v1398
        %v1415 = vadd.f32 %v1363, %v1399
        %v1416 = vadd.f32 %v1364, %v1400
        %v1417 = vld [vmem:[%s953 + $0x2] sm:$0xff]
        %v1418 = vld [vmem:[%s953 + $0xa] sm:$0xff]
        %v1419 = vld [vmem:[%s953 + $0x1a] sm:$0xff]
        %v1420 = vld [vmem:[%s953 + $0x22] sm:$0xff]
        %v1421 = vld [vmem:[%s953 + $0x32] sm:$0xff]
        %v1422 = vld [vmem:[%s953 + $0x3a] sm:$0xff]
        %v1423 = vld [vmem:[%s953 + $0x4a] sm:$0xff]
        %v1424 = vld [vmem:[%s953 + $0x52] sm:$0xff]
        %v1425 = vld [vmem:[%s953 + $0x62] sm:$0xff]
        %v1426 = vld [vmem:[%s953 + $0x6a] sm:$0xff]
        %v1427 = vld [vmem:[%s953 + $0x7a] sm:$0xff]
        %v1428 = vld [vmem:[%s953 + $0x82] sm:$0xff]
        %v1429 = vld [vmem:[%s953 + $0x92] sm:$0xff]
        %v1430 = vld [vmem:[%s953 + $0x9a] sm:$0xff]
        %v1431 = vld [vmem:[%s953 + $0xaa] sm:$0xff]
        %v1432 = vld [vmem:[%s953 + $0xb2] sm:$0xff]
        %v1433 = vlaneseq
        %v1434 = vshrl.u32 %v1433, 7
        %v1435 = vsub.s32 2, %v1434
        %v1436 = vrot.slane %v1148, %v1435
        %v1437 = vmul.f32 %v1417, %v1436
        %v1438 = vmul.f32 %v1418, %v1436
        %v1439 = vmul.f32 %v1419, %v1436
        %v1440 = vmul.f32 %v1420, %v1436
        %v1441 = vmul.f32 %v1421, %v1436
        %v1442 = vmul.f32 %v1422, %v1436
        %v1443 = vmul.f32 %v1423, %v1436
        %v1444 = vmul.f32 %v1424, %v1436
        %v1445 = vmul.f32 %v1425, %v1436
        %v1446 = vmul.f32 %v1426, %v1436
        %v1447 = vmul.f32 %v1427, %v1436
        %v1448 = vmul.f32 %v1428, %v1436
        %v1449 = vmul.f32 %v1429, %v1436
        %v1450 = vmul.f32 %v1430, %v1436
        %v1451 = vmul.f32 %v1431, %v1436
        %v1452 = vmul.f32 %v1432, %v1436
        %v1453 = vadd.f32 %v1401, %v1437
        %v1454 = vadd.f32 %v1402, %v1438
        %v1455 = vadd.f32 %v1403, %v1439
        %v1456 = vadd.f32 %v1404, %v1440
        %v1457 = vadd.f32 %v1405, %v1441
        %v1458 = vadd.f32 %v1406, %v1442
        %v1459 = vadd.f32 %v1407, %v1443
        %v1460 = vadd.f32 %v1408, %v1444
        %v1461 = vadd.f32 %v1409, %v1445
        %v1462 = vadd.f32 %v1410, %v1446
        %v1463 = vadd.f32 %v1411, %v1447
        %v1464 = vadd.f32 %v1412, %v1448
        %v1465 = vadd.f32 %v1413, %v1449
        %v1466 = vadd.f32 %v1414, %v1450
        %v1467 = vadd.f32 %v1415, %v1451
        %v1468 = vadd.f32 %v1416, %v1452
        %s1469 = scalar_lea.vmem [#allocation2], 48
        %v1470 = vld [vmem:[%s1469] sm:$0xff]
        %v1471 = vld [vmem:[%s1469 + $0x8] sm:$0xff]
        %v1472 = vld [vmem:[%s1469 + $0x18] sm:$0xff]
        %v1473 = vld [vmem:[%s1469 + $0x20] sm:$0xff]
        %v1474 = vld [vmem:[%s1469 + $0x30] sm:$0xff]
        %v1475 = vld [vmem:[%s1469 + $0x38] sm:$0xff]
        %v1476 = vld [vmem:[%s1469 + $0x48] sm:$0xff]
        %v1477 = vld [vmem:[%s1469 + $0x50] sm:$0xff]
        %v1478 = vld [vmem:[%s1469 + $0x60] sm:$0xff]
        %v1479 = vld [vmem:[%s1469 + $0x68] sm:$0xff]
        %v1480 = vld [vmem:[%s1469 + $0x78] sm:$0xff]
        %v1481 = vld [vmem:[%s1469 + $0x80] sm:$0xff]
        %v1482 = vld [vmem:[%s1469 + $0x90] sm:$0xff]
        %v1483 = vld [vmem:[%s1469 + $0x98] sm:$0xff]
        %v1484 = vld [vmem:[%s1469 + $0xa8] sm:$0xff]
        %v1485 = vld [vmem:[%s1469 + $0xb0] sm:$0xff]
        %v1486 = vlaneseq
        %v1487 = vshrl.u32 %v1486, 7
        %v1488 = vsub.s32 0, %v1487
        %v1489 = vrot.slane %v1149, %v1488
        %v1490 = vmul.f32 %v1470, %v1489
        %v1491 = vmul.f32 %v1471, %v1489
        %v1492 = vmul.f32 %v1472, %v1489
        %v1493 = vmul.f32 %v1473, %v1489
        %v1494 = vmul.f32 %v1474, %v1489
        %v1495 = vmul.f32 %v1475, %v1489
        %v1496 = vmul.f32 %v1476, %v1489
        %v1497 = vmul.f32 %v1477, %v1489
        %v1498 = vmul.f32 %v1478, %v1489
        %v1499 = vmul.f32 %v1479, %v1489
        %v1500 = vmul.f32 %v1480, %v1489
        %v1501 = vmul.f32 %v1481, %v1489
        %v1502 = vmul.f32 %v1482, %v1489
        %v1503 = vmul.f32 %v1483, %v1489
        %v1504 = vmul.f32 %v1484, %v1489
        %v1505 = vmul.f32 %v1485, %v1489
        %v1506 = vadd.f32 %v1453, %v1490
        %v1507 = vadd.f32 %v1454, %v1491
        %v1508 = vadd.f32 %v1455, %v1492
        %v1509 = vadd.f32 %v1456, %v1493
        %v1510 = vadd.f32 %v1457, %v1494
        %v1511 = vadd.f32 %v1458, %v1495
        %v1512 = vadd.f32 %v1459, %v1496
        %v1513 = vadd.f32 %v1460, %v1497
        %v1514 = vadd.f32 %v1461, %v1498
        %v1515 = vadd.f32 %v1462, %v1499
        %v1516 = vadd.f32 %v1463, %v1500
        %v1517 = vadd.f32 %v1464, %v1501
        %v1518 = vadd.f32 %v1465, %v1502
        %v1519 = vadd.f32 %v1466, %v1503
        %v1520 = vadd.f32 %v1467, %v1504
        %v1521 = vadd.f32 %v1468, %v1505
        %v1522 = vld [vmem:[%s1469 + $0x1] sm:$0xff]
        %v1523 = vld [vmem:[%s1469 + $0x9] sm:$0xff]
        %v1524 = vld [vmem:[%s1469 + $0x19] sm:$0xff]
        %v1525 = vld [vmem:[%s1469 + $0x21] sm:$0xff]
        %v1526 = vld [vmem:[%s1469 + $0x31] sm:$0xff]
        %v1527 = vld [vmem:[%s1469 + $0x39] sm:$0xff]
        %v1528 = vld [vmem:[%s1469 + $0x49] sm:$0xff]
        %v1529 = vld [vmem:[%s1469 + $0x51] sm:$0xff]
        %v1530 = vld [vmem:[%s1469 + $0x61] sm:$0xff]
        %v1531 = vld [vmem:[%s1469 + $0x69] sm:$0xff]
        %v1532 = vld [vmem:[%s1469 + $0x79] sm:$0xff]
        %v1533 = vld [vmem:[%s1469 + $0x81] sm:$0xff]
        %v1534 = vld [vmem:[%s1469 + $0x91] sm:$0xff]
        %v1535 = vld [vmem:[%s1469 + $0x99] sm:$0xff]
        %v1536 = vld [vmem:[%s1469 + $0xa9] sm:$0xff]
        %v1537 = vld [vmem:[%s1469 + $0xb1] sm:$0xff]
        %v1538 = vlaneseq
        %v1539 = vshrl.u32 %v1538, 7
        %v1540 = vsub.s32 1, %v1539
        %v1541 = vrot.slane %v1149, %v1540
        %v1542 = vmul.f32 %v1522, %v1541
        %v1543 = vmul.f32 %v1523, %v1541
        %v1544 = vmul.f32 %v1524, %v1541
        %v1545 = vmul.f32 %v1525, %v1541
        %v1546 = vmul.f32 %v1526, %v1541
        %v1547 = vmul.f32 %v1527, %v1541
        %v1548 = vmul.f32 %v1528, %v1541
        %v1549 = vmul.f32 %v1529, %v1541
        %v1550 = vmul.f32 %v1530, %v1541
        %v1551 = vmul.f32 %v1531, %v1541
        %v1552 = vmul.f32 %v1532, %v1541
        %v1553 = vmul.f32 %v1533, %v1541
        %v1554 = vmul.f32 %v1534, %v1541
        %v1555 = vmul.f32 %v1535, %v1541
        %v1556 = vmul.f32 %v1536, %v1541
        %v1557 = vmul.f32 %v1537, %v1541
        %v1558 = vadd.f32 %v1506, %v1542
        %v1559 = vadd.f32 %v1507, %v1543
        %v1560 = vadd.f32 %v1508, %v1544
        %v1561 = vadd.f32 %v1509, %v1545
        %v1562 = vadd.f32 %v1510, %v1546
        %v1563 = vadd.f32 %v1511, %v1547
        %v1564 = vadd.f32 %v1512, %v1548
        %v1565 = vadd.f32 %v1513, %v1549
        %v1566 = vadd.f32 %v1514, %v1550
        %v1567 = vadd.f32 %v1515, %v1551
        %v1568 = vadd.f32 %v1516, %v1552
        %v1569 = vadd.f32 %v1517, %v1553
        %v1570 = vadd.f32 %v1518, %v1554
        %v1571 = vadd.f32 %v1519, %v1555
        %v1572 = vadd.f32 %v1520, %v1556
        %v1573 = vadd.f32 %v1521, %v1557
        %v1574 = vld [vmem:[%s1469 + $0x2] sm:$0xff]
        %v1575 = vld [vmem:[%s1469 + $0xa] sm:$0xff]
        %v1576 = vld [vmem:[%s1469 + $0x1a] sm:$0xff]
        %v1577 = vld [vmem:[%s1469 + $0x22] sm:$0xff]
        %v1578 = vld [vmem:[%s1469 + $0x32] sm:$0xff]
        %v1579 = vld [vmem:[%s1469 + $0x3a] sm:$0xff]
        %v1580 = vld [vmem:[%s1469 + $0x4a] sm:$0xff]
        %v1581 = vld [vmem:[%s1469 + $0x52] sm:$0xff]
        %v1582 = vld [vmem:[%s1469 + $0x62] sm:$0xff]
        %v1583 = vld [vmem:[%s1469 + $0x6a] sm:$0xff]
        %v1584 = vld [vmem:[%s1469 + $0x7a] sm:$0xff]
        %v1585 = vld [vmem:[%s1469 + $0x82] sm:$0xff]
        %v1586 = vld [vmem:[%s1469 + $0x92] sm:$0xff]
        %v1587 = vld [vmem:[%s1469 + $0x9a] sm:$0xff]
        %v1588 = vld [vmem:[%s1469 + $0xaa] sm:$0xff]
        %v1589 = vld [vmem:[%s1469 + $0xb2] sm:$0xff]
        %v1590 = vlaneseq
        %v1591 = vshrl.u32 %v1590, 7
        %v1592 = vsub.s32 2, %v1591
        %v1593 = vrot.slane %v1149, %v1592
        %v1594 = vmul.f32 %v1574, %v1593
        %v1595 = vmul.f32 %v1575, %v1593
        %v1596 = vmul.f32 %v1576, %v1593
        %v1597 = vmul.f32 %v1577, %v1593
        %v1598 = vmul.f32 %v1578, %v1593
        %v1599 = vmul.f32 %v1579, %v1593
        %v1600 = vmul.f32 %v1580, %v1593
        %v1601 = vmul.f32 %v1581, %v1593
        %v1602 = vmul.f32 %v1582, %v1593
        %v1603 = vmul.f32 %v1583, %v1593
        %v1604 = vmul.f32 %v1584, %v1593
        %v1605 = vmul.f32 %v1585, %v1593
        %v1606 = vmul.f32 %v1586, %v1593
        %v1607 = vmul.f32 %v1587, %v1593
        %v1608 = vmul.f32 %v1588, %v1593
        %v1609 = vmul.f32 %v1589, %v1593
        %v1610 = vadd.f32 %v1558, %v1594
        %v1611 = vadd.f32 %v1559, %v1595
        %v1612 = vadd.f32 %v1560, %v1596
        %v1613 = vadd.f32 %v1561, %v1597
        %v1614 = vadd.f32 %v1562, %v1598
        %v1615 = vadd.f32 %v1563, %v1599
        %v1616 = vadd.f32 %v1564, %v1600
        %v1617 = vadd.f32 %v1565, %v1601
        %v1618 = vadd.f32 %v1566, %v1602
        %v1619 = vadd.f32 %v1567, %v1603
        %v1620 = vadd.f32 %v1568, %v1604
        %v1621 = vadd.f32 %v1569, %v1605
        %v1622 = vadd.f32 %v1570, %v1606
        %v1623 = vadd.f32 %v1571, %v1607
        %v1624 = vadd.f32 %v1572, %v1608
        %v1625 = vadd.f32 %v1573, %v1609
        %v1626 = vpack.c.bf16 %v1611, %v1610
        %v1627 = vpack.c.bf16 %v1613, %v1612
        %v1628 = vpack.c.bf16 %v1615, %v1614
        %v1629 = vpack.c.bf16 %v1617, %v1616
        %v1630 = vpack.c.bf16 %v1619, %v1618
        %v1631 = vpack.c.bf16 %v1621, %v1620
        %v1632 = vpack.c.bf16 %v1623, %v1622
        %v1633 = vpack.c.bf16 %v1625, %v1624
        %v1642 = vunpack.c.l.b16 %v1626
        %v1643 = vunpack.c.h.b16 %v1626
        %v1644 = vunpack.c.l.b16 %v1627
        %v1645 = vunpack.c.h.b16 %v1627
        %v1646 = vunpack.c.l.b16 %v1628
        %v1647 = vunpack.c.h.b16 %v1628
        %v1648 = vunpack.c.l.b16 %v1629
        %v1649 = vunpack.c.h.b16 %v1629
        %v1650 = vunpack.c.l.b16 %v1630
        %v1651 = vunpack.c.h.b16 %v1630
        %v1652 = vunpack.c.l.b16 %v1631
        %v1653 = vunpack.c.h.b16 %v1631
        %v1654 = vunpack.c.l.b16 %v1632
        %v1655 = vunpack.c.h.b16 %v1632
        %v1656 = vunpack.c.l.b16 %v1633
        %v1657 = vunpack.c.h.b16 %v1633
        %v1658 = vpack.c.b16 %v1642, %v1642
        %v1659 = vpack.c.b16 %v1643, %v1643
        %v1660 = vpack.c.b16 %v1644, %v1644
        %v1661 = vpack.c.b16 %v1645, %v1645
        %v1662 = vpack.c.b16 %v1646, %v1646
        %v1663 = vpack.c.b16 %v1647, %v1647
        %v1664 = vpack.c.b16 %v1648, %v1648
        %v1665 = vpack.c.b16 %v1649, %v1649
        %v1666 = vpack.c.b16 %v1650, %v1650
        %v1667 = vpack.c.b16 %v1651, %v1651
        %v1668 = vpack.c.b16 %v1652, %v1652
        %v1669 = vpack.c.b16 %v1653, %v1653
        %v1670 = vpack.c.b16 %v1654, %v1654
        %v1671 = vpack.c.b16 %v1655, %v1655
        %v1672 = vpack.c.b16 %v1656, %v1656
        %v1673 = vpack.c.b16 %v1657, %v1657
        %vm1690 = vcmask 60416
        %1691 = vst.msk [vmem:[%s644] sm:$0xf] %vm1690, %v1658
        %1692 = vst.msk [vmem:[%s644 + $0x4] sm:$0xf] %vm1690, %v1659
        %1693 = vst.msk [vmem:[%s644 + $0x8] sm:$0xf] %vm1690, %v1660
        %1694 = vst.msk [vmem:[%s644 + $0xc] sm:$0xf] %vm1690, %v1661
        %1695 = vst.msk [vmem:[%s644 + $0x10] sm:$0xf] %vm1690, %v1662
        %1696 = vst.msk [vmem:[%s644 + $0x14] sm:$0xf] %vm1690, %v1663
        %1697 = vst.msk [vmem:[%s644 + $0x18] sm:$0xf] %vm1690, %v1664
        %1698 = vst.msk [vmem:[%s644 + $0x1c] sm:$0xf] %vm1690, %v1665
        %1699 = vst.msk [vmem:[%s644 + $0x20] sm:$0xf] %vm1690, %v1666
        %1700 = vst.msk [vmem:[%s644 + $0x24] sm:$0xf] %vm1690, %v1667
        %1701 = vst.msk [vmem:[%s644 + $0x28] sm:$0xf] %vm1690, %v1668
        %1702 = vst.msk [vmem:[%s644 + $0x2c] sm:$0xf] %vm1690, %v1669
        %1703 = vst.msk [vmem:[%s644 + $0x30] sm:$0xf] %vm1690, %v1670
        %1704 = vst.msk [vmem:[%s644 + $0x34] sm:$0xf] %vm1690, %v1671
        %1705 = vst.msk [vmem:[%s644 + $0x38] sm:$0xf] %vm1690, %v1672
        %1706 = vst.msk [vmem:[%s644 + $0x3c] sm:$0xf] %vm1690, %v1673
        %v1707 = vunpack.c.l.bf16 %v1626
        %v1708 = vunpack.c.h.bf16 %v1626
        %v1709 = vunpack.c.l.bf16 %v1627
        %v1710 = vunpack.c.h.bf16 %v1627
        %v1711 = vunpack.c.l.bf16 %v1628
        %v1712 = vunpack.c.h.bf16 %v1628
        %v1713 = vunpack.c.l.bf16 %v1629
        %v1714 = vunpack.c.h.bf16 %v1629
        %v1715 = vunpack.c.l.bf16 %v1630
        %v1716 = vunpack.c.h.bf16 %v1630
        %v1717 = vunpack.c.l.bf16 %v1631
        %v1718 = vunpack.c.h.bf16 %v1631
        %v1719 = vunpack.c.l.bf16 %v1632
        %v1720 = vunpack.c.h.bf16 %v1632
        %v1721 = vunpack.c.l.bf16 %v1633
        %v1722 = vunpack.c.h.bf16 %v1633
        %v1723 = vsel %vm954, %v1707, 0.0
        %v1724 = vsel %vm954, %v1708, 0.0
        %v1725 = vadd.f32 %v1723, %v1724
        %v1726 = vsel %vm954, %v1709, 0.0
        %v1727 = vadd.f32 %v1725, %v1726
        %v1728 = vsel %vm954, %v1710, 0.0
        %v1729 = vadd.f32 %v1727, %v1728
        %v1730 = vsel %vm954, %v1711, 0.0
        %v1731 = vadd.f32 %v1729, %v1730
        %v1732 = vsel %vm954, %v1712, 0.0
        %v1733 = vadd.f32 %v1731, %v1732
        %v1734 = vsel %vm954, %v1713, 0.0
        %v1735 = vadd.f32 %v1733, %v1734
        %v1736 = vsel %vm954, %v1714, 0.0
        %v1737 = vadd.f32 %v1735, %v1736
        %v1738 = vsel %vm954, %v1715, 0.0
        %v1739 = vadd.f32 %v1737, %v1738
        %v1740 = vsel %vm954, %v1716, 0.0
        %v1741 = vadd.f32 %v1739, %v1740
        %v1742 = vsel %vm954, %v1717, 0.0
        %v1743 = vadd.f32 %v1741, %v1742
        %v1744 = vsel %vm954, %v1718, 0.0
        %v1745 = vadd.f32 %v1743, %v1744
        %v1746 = vsel %vm954, %v1719, 0.0
        %v1747 = vadd.f32 %v1745, %v1746
        %v1748 = vsel %vm954, %v1720, 0.0
        %v1749 = vadd.f32 %v1747, %v1748
        %v1750 = vsel %vm954, %v1721, 0.0
        %v1751 = vadd.f32 %v1749, %v1750
        %v1752 = vsel %vm954, %v1722, 0.0
        %v1753 = vadd.f32 %v1751, %v1752
        %v1754 = vrot.slane %v1753, 4
        %v1755 = vadd.f32 %v1753, %v1754
        %v1756 = vrot.slane %v1755, 2
        %v1757 = vadd.f32 %v1755, %v1756
        %v1758 = vrot.slane %v1757, 1
        %v1759 = vadd.f32 %v1757, %v1758
        %v1760 = vmul.f32 %v1707, %v1707
        %v1761 = vmul.f32 %v1708, %v1708
        %v1762 = vmul.f32 %v1709, %v1709
        %v1763 = vmul.f32 %v1710, %v1710
        %v1764 = vmul.f32 %v1711, %v1711
        %v1765 = vmul.f32 %v1712, %v1712
        %v1766 = vmul.f32 %v1713, %v1713
        %v1767 = vmul.f32 %v1714, %v1714
        %v1768 = vmul.f32 %v1715, %v1715
        %v1769 = vmul.f32 %v1716, %v1716
        %v1770 = vmul.f32 %v1717, %v1717
        %v1771 = vmul.f32 %v1718, %v1718
        %v1772 = vmul.f32 %v1719, %v1719
        %v1773 = vmul.f32 %v1720, %v1720
        %v1774 = vmul.f32 %v1721, %v1721
        %v1775 = vmul.f32 %v1722, %v1722
        %v1776 = vsel %vm954, %v1760, 0.0
        %v1777 = vsel %vm954, %v1761, 0.0
        %v1778 = vadd.f32 %v1776, %v1777
        %v1779 = vsel %vm954, %v1762, 0.0
        %v1780 = vadd.f32 %v1778, %v1779
        %v1781 = vsel %vm954, %v1763, 0.0
        %v1782 = vadd.f32 %v1780, %v1781
        %v1783 = vsel %vm954, %v1764, 0.0
        %v1784 = vadd.f32 %v1782, %v1783
        %v1785 = vsel %vm954, %v1765, 0.0
        %v1786 = vadd.f32 %v1784, %v1785
        %v1787 = vsel %vm954, %v1766, 0.0
        %v1788 = vadd.f32 %v1786, %v1787
        %v1789 = vsel %vm954, %v1767, 0.0
        %v1790 = vadd.f32 %v1788, %v1789
        %v1791 = vsel %vm954, %v1768, 0.0
        %v1792 = vadd.f32 %v1790, %v1791
        %v1793 = vsel %vm954, %v1769, 0.0
        %v1794 = vadd.f32 %v1792, %v1793
        %v1795 = vsel %vm954, %v1770, 0.0
        %v1796 = vadd.f32 %v1794, %v1795
        %v1797 = vsel %vm954, %v1771, 0.0
        %v1798 = vadd.f32 %v1796, %v1797
        %v1799 = vsel %vm954, %v1772, 0.0
        %v1800 = vadd.f32 %v1798, %v1799
        %v1801 = vsel %vm954, %v1773, 0.0
        %v1802 = vadd.f32 %v1800, %v1801
        %v1803 = vsel %vm954, %v1774, 0.0
        %v1804 = vadd.f32 %v1802, %v1803
        %v1805 = vsel %vm954, %v1775, 0.0
        %v1806 = vadd.f32 %v1804, %v1805
        %v1807 = vrot.slane %v1806, 4
        %v1808 = vadd.f32 %v1806, %v1807
        %v1809 = vrot.slane %v1808, 2
        %v1810 = vadd.f32 %v1808, %v1809
        %v1811 = vrot.slane %v1810, 1
        %v1812 = vadd.f32 %v1810, %v1811
        %p1813 = scmp.eq.s32.totalorder %s43, 0
        // Predicated region
        $region85: #{inverted_res_block_nhwc.5} parent=51 // pred_check
          %p1814 = pneg %p1813
        $region86: #{inverted_res_block_nhwc.5} parent=51 // pred_check_branch
          %1816 = sbr.rel (%p1814) target = $region88
        $region87: #{inverted_res_block_nhwc.5} parent=51 // pred_region
          %1817 = vst.msk [vmem:[%s650] sm:$0x1] %vm1116, %v1759
          %1818 = vst.msk [vmem:[%s656] sm:$0x1] %vm1116, %v1812
        $region88: #{inverted_res_block_nhwc.5} parent=51 // pred_fallthru
          _
        %p1819 = scmp.ne.s32.totalorder %s43, 0
        // Predicated region
        $region89: #{inverted_res_block_nhwc.5} parent=51 // pred_check
          %p1820 = pneg %p1819
        $region90: #{inverted_res_block_nhwc.5} parent=51 // pred_check_branch
          %1822 = sbr.rel (%p1820) target = $region92
        $region91: #{inverted_res_block_nhwc.5} parent=51 // pred_region
          %v1823 = vld [vmem:[%s650] sm:$0x1]
          %v1824 = vadd.f32 %v1823, %v1759
          %1825 = vst.msk [vmem:[%s650] sm:$0x1] %vm1116, %v1824
          %v1826 = vld [vmem:[%s656] sm:$0x1]
          %v1827 = vadd.f32 %v1826, %v1812
          %1828 = vst.msk [vmem:[%s656] sm:$0x1] %vm1116, %v1827
        $region92: #{inverted_res_block_nhwc.5} parent=51 // pred_fallthru
          _
        %s1829 = sand.u32 %s296, 1
        %s1830 = scalar_lea.sflag [#allocation5], %s1829
        %s1831 = sand.u32 %s296, 1
        %s1832 = smul.addr %s1831, 64
        %s1833 = scalar_lea.vmem [#allocation16], %s1832
        %s1834 = sand.u32 %s36, 1
        %s1835 = scalar_lea.sflag [#allocation18], %s1834
        %s1836 = sand.u32 %s324, 1
        %s1837 = scalar_lea.vmem [#allocation17], %s1836
        %s1838 = sand.u32 %s36, 1
        %s1839 = scalar_lea.sflag [#allocation18], %s1838
        %s1840 = sand.u32 %s352, 1
        %s1841 = scalar_lea.vmem [#allocation19], %s1840
        // Predicated region
        $region93: #{inverted_res_block_nhwc.5} parent=51 // pred_check
          %p1842 = pneg %p306
        $region94: #{inverted_res_block_nhwc.5} parent=51 // pred_check_branch
          %1844 = sbr.rel (%p1842) target = $region96
        $region95: #{inverted_res_block_nhwc.5} parent=51 // pred_region
          %s1845 = smul.u32 %s41, 2
          %s1846 = sadd.s32 %s1845, %s43
          %s1847 = smul.u32 8, %s1846
          %s1849 = ssub.s32 1024, 1024
          %1850 = vsyncadd %s1830, %s1849
          %s1851 = smul.addr %s1847, 2
          %s1852 = smul.addr %s42, 32
          %s1853 = sadd.s32 %s1851, %s1852
          %s1854 = smul.addr %s1853, 64
          %s1855 = scalar_lea.hbm %s8, %s1854
          %s1856 = sshll.u32 %s1833, 4
          %s1857 = int_to_ptr.vmem [resolvable:$true] %s1856
          %1862 = dma.vmem_to_hbm [thread:$0]  %s1857, 1024, %s1855, %s1830, 64, 64, 4
        $region96: #{inverted_res_block_nhwc.5} parent=51 // pred_fallthru
          _
        // Predicated region
        $region97: #{inverted_res_block_nhwc.5} parent=51 // pred_check
          %p1863 = pneg %p334
        $region98: #{inverted_res_block_nhwc.5} parent=51 // pred_check_branch
          %1865 = sbr.rel (%p1863) target = $region100
        $region99: #{inverted_res_block_nhwc.5} parent=51 // pred_region
          %s1867 = ssub.s32 16, 16
          %1868 = vsyncadd %s1835, %s1867
          %s1869 = smul.addr %s41, 2
          %s1870 = sadd.s32 %s42, %s1869
          %s1871 = smul.addr %s1870, 16
          %s1872 = scalar_lea.hbm %s9, %s1871
          %s1874 = sshll.u32 %s1837, 4
          %s1875 = int_to_ptr.vmem [resolvable:$true] %s1874
          %1877 = dma.vmem_to_hbm [thread:$0]  %s1875, 16, %s1872, %s1835
        $region100: #{inverted_res_block_nhwc.5} parent=51 // pred_fallthru
          _
        // Predicated region
        $region101: #{inverted_res_block_nhwc.5} parent=51 // pred_check
          %p1878 = pneg %p362
        $region102: #{inverted_res_block_nhwc.5} parent=51 // pred_check_branch
          %1880 = sbr.rel (%p1878) target = $region104
        $region103: #{inverted_res_block_nhwc.5} parent=51 // pred_region
          %s1882 = ssub.s32 16, 16
          %1883 = vsyncadd %s1839, %s1882
          %s1884 = smul.addr %s41, 2
          %s1885 = sadd.s32 %s42, %s1884
          %s1886 = smul.addr %s1885, 16
          %s1887 = scalar_lea.hbm %s10, %s1886
          %s1889 = sshll.u32 %s1841, 4
          %s1890 = int_to_ptr.vmem [resolvable:$true] %s1889
          %1892 = dma.vmem_to_hbm [thread:$0]  %s1890, 16, %s1887, %s1839
        $region104: #{inverted_res_block_nhwc.5} parent=51 // pred_fallthru
          _
      $region52: #{inverted_res_block_nhwc.5} parent=5 // pred_fallthru
        _
      %p1893 = scmp.le.s32.totalorder 2, %s31
      // Predicated region
      $region105: #{inverted_res_block_nhwc.5} parent=5 // pred_check
        %p1894 = pneg %p1893
      $region106: #{inverted_res_block_nhwc.5} parent=5 // pred_check_branch
        %1896 = sbr.rel (%p1894) target = $region108
      $region107: #{inverted_res_block_nhwc.5} parent=5 // pred_region
        %s1897 = ssub.s32 %s31, 2
        // Predicated region
        $region109: #{inverted_res_block_nhwc.5} parent=107 // pred_check
          %p1898 = pneg %p312
        $region110: #{inverted_res_block_nhwc.5} parent=107 // pred_check_branch
          %1900 = sbr.rel (%p1898) target = $region112
        $region111: #{inverted_res_block_nhwc.5} parent=107 // pred_region
          %s1901 = sand.u32 %s297, 1
          %s1902 = scalar_lea.sflag [#allocation5], %s1901
          %s1903 = sand.u32 %s297, 1
          %s1904 = smul.addr %s1903, 64
          %s1905 = scalar_lea.vmem [#allocation16], %s1904
          %1906 = dma.done %s1902, 1024
        $region112: #{inverted_res_block_nhwc.5} parent=107 // pred_fallthru
          _
        // Predicated region
        $region113: #{inverted_res_block_nhwc.5} parent=107 // pred_check
          %p1907 = pneg %p340
        $region114: #{inverted_res_block_nhwc.5} parent=107 // pred_check_branch
          %1909 = sbr.rel (%p1907) target = $region116
        $region115: #{inverted_res_block_nhwc.5} parent=107 // pred_region
          %s1910 = sand.u32 %s37, 1
          %s1911 = scalar_lea.sflag [#allocation18], %s1910
          %s1912 = sand.u32 %s325, 1
          %s1913 = scalar_lea.vmem [#allocation17], %s1912
          %1914 = dma.done %s1911, 16
        $region116: #{inverted_res_block_nhwc.5} parent=107 // pred_fallthru
          _
        // Predicated region
        $region117: #{inverted_res_block_nhwc.5} parent=107 // pred_check
          %p1915 = pneg %p368
        $region118: #{inverted_res_block_nhwc.5} parent=107 // pred_check_branch
          %1917 = sbr.rel (%p1915) target = $region120
        $region119: #{inverted_res_block_nhwc.5} parent=107 // pred_region
          %s1918 = sand.u32 %s37, 1
          %s1919 = scalar_lea.sflag [#allocation18], %s1918
          %s1920 = sand.u32 %s353, 1
          %s1921 = scalar_lea.vmem [#allocation19], %s1920
          %1922 = dma.done %s1919, 16
        $region120: #{inverted_res_block_nhwc.5} parent=107 // pred_fallthru
          _
      $region108: #{inverted_res_block_nhwc.5} parent=5 // pred_fallthru
        _
    $region6: #{inverted_res_block_nhwc.5} parent=1 // loop_footer
      %s35 = sadd.s32 1, %s31
    $region7: #{inverted_res_block_nhwc.5} parent=1 // loop_footer_branch
      %30 = sbr.rel target = $region3
    $region8: #{inverted_res_block_nhwc.5} parent=1 // loop_exit
      _
    %1923 = vsyncpa [#allocation4], 1
    %s1924 = scalar_lea.sflag [#allocation4], 1
    %1925 = vsyncpa %s1924, 1
    %1926 = vsyncpa [#allocation7], 1
    %s1927 = scalar_lea.sflag [#allocation7], 1
    %1928 = vsyncpa %s1927, 1
    %1929 = vsyncpa [#allocation10], 1
    %1930 = vsyncpa [#allocation15], 1
    %1931 = vsyncpa [#allocation5], 1
    %s1932 = scalar_lea.sflag [#allocation5], 1
    %1933 = vsyncpa %s1932, 1
    %1934 = vsyncpa [#allocation18], 1
    %s1935 = scalar_lea.sflag [#allocation18], 1
    %1936 = vsyncpa %s1935, 1

</llo_original>
